<compile_context>
chip_gen: v7x
topology: tpu7x:2x2x1
jax: 0.10.0
libtpu: 0.0.40
codegen_flags: <defaults>
</compile_context>

<pallas_src>
import math
import functools

import jax
import jax.numpy as jnp
from jax.experimental import pallas as pl
from jax.experimental.pallas import tpu as pltpu


def _layernorm_f32(h, gamma, beta, eps=1e-5):
    # nn.LayerNorm semantics: biased variance, eps inside the sqrt. Stats in f32.
    h = h.astype(jnp.float32)
    mu = jnp.mean(h, axis=-1, keepdims=True)
    var = jnp.mean(jnp.square(h - mu), axis=-1, keepdims=True)
    return (h - mu) * jax.lax.rsqrt(var + eps) * gamma + beta


def transformer_block_kernel(
    # inputs (refs)
    x_ref,
    ln1_g_ref, ln1_b_ref,
    wqkv_ref, bqkv_ref,          # (D, 3D) compute_dtype, (1, 3D) f32  (Q part pre-scaled)
    wo_ref, bo_ref,              # (D, D)  compute_dtype, (1, D)  f32
    ln2_g_ref, ln2_b_ref,
    w1_ref, b1_ref, w2_ref, b2_ref,
    # output
    o_ref,
    *, num_heads: int, head_dim: int, compute_dtype,
):
    f32 = jnp.float32
    cdt = compute_dtype
    H, hd = num_heads, head_dim
    x = x_ref[0].astype(f32)                                    # (T, D)
    T, D = x.shape

    # ---- LayerNorm 1 (f32 stats) ----
    h1 = _layernorm_f32(x, ln1_g_ref[...], ln1_b_ref[...])

    # ---- fused QKV projection: ONE lane-dense (T,D) @ (D,3D) MXU matmul ----
    # (1/sqrt(hd) is already folded into the Q columns of wqkv / bqkv.)
    qkv = jnp.dot(h1.astype(cdt), wqkv_ref[...],
                  preferred_element_type=f32) + bqkv_ref[...]    # (T, 3D) f32

    # ---- multi-head attention: per-head static lane slices, heads accumulate
    #      straight into one (T, D) f32 accumulator (== einsum('hqd,hde->qe')) ----
    wo = wo_ref[...]                                             # (D, D) compute_dtype
    attn_acc = None
    for h in range(H):                                           # H=4: small static unroll
        lo = h * hd
        q_h = qkv[:, lo:lo + hd].astype(cdt)                     # (T, hd)
        k_h = qkv[:, D + lo:D + lo + hd].astype(cdt)             # (T, hd)
        v_h = qkv[:, 2 * D + lo:2 * D + lo + hd].astype(cdt)     # (T, hd)

        # scores: contract last dims (no explicit transpose), f32 accumulate
        s = jnp.einsum('qd,kd->qk', q_h, k_h,
                       preferred_element_type=f32)               # (T, T)
        s = s - jnp.max(s, axis=-1, keepdims=True)
        p = jnp.exp(s)
        p = p * pl.reciprocal(jnp.sum(p, axis=-1, keepdims=True), approx=True)
        # TODO(synk): for production T, replace this dense (T,T) softmax with a
        # flash-style online-softmax kv-tile loop (pltpu.emit_pipeline / extra grid
        # axis) so the working set fits v7x's 64 MiB per-TC VMEM.

        ctx = jnp.dot(p.astype(cdt), v_h, preferred_element_type=f32)       # (T, hd)
        part = jnp.dot(ctx.astype(cdt), wo[lo:lo + hd, :],
                       preferred_element_type=f32)                          # (T, D)
        attn_acc = part if attn_acc is None else attn_acc + part

    x2 = x + attn_acc + bo_ref[...]                              # residual 1 (f32)

    # ---- LayerNorm 2 + MLP ----
    h2 = _layernorm_f32(x2, ln2_g_ref[...], ln2_b_ref[...])
    m = jnp.dot(h2.astype(cdt), w1_ref[...],
                preferred_element_type=f32) + b1_ref[...]
    m = jnp.maximum(m, 0.0)                                      # ReLU
    m = jnp.dot(m.astype(cdt), w2_ref[...],
                preferred_element_type=f32) + b2_ref[...]

    o_ref[0] = (x2 + m).astype(o_ref.dtype)                      # residual 2


def pack_params(params, *, num_heads, compute_dtype=jnp.bfloat16):
    """One-time host-side weight prep: fused lane-dense QKV (Q pre-scaled), f32 biases."""
    f32 = jnp.float32
    D = params["wq"].shape[0]
    hd = D // num_heads
    scale = 1.0 / math.sqrt(hd)

    # Fused QKV weight (D, 3D): columns [Q heads..., K heads..., V heads...],
    # with the 1/sqrt(head_dim) folded into the Q block (weight AND bias).
    wqkv = jnp.concatenate([params["wq"] * scale, params["wk"], params["wv"]],
                           axis=1).astype(compute_dtype)                      # (D, 3D)
    bqkv = jnp.concatenate([params["bq"] * scale, params["bk"], params["bv"]],
                           axis=1).astype(f32)                                # (1, 3D)

    return [
        params["ln1_g"].astype(f32), params["ln1_b"].astype(f32),
        wqkv, bqkv,
        params["wo"].astype(compute_dtype), params["bo"].astype(f32),
        params["ln2_g"].astype(f32), params["ln2_b"].astype(f32),
        params["w1"].astype(compute_dtype), params["b1"].astype(f32),
        params["w2"].astype(compute_dtype), params["b2"].astype(f32),
    ]


def transformer_block(x, packed_params, *, num_heads):
    B, T, D = x.shape
    assert D % num_heads == 0
    H = num_heads
    hd = D // H
    compute_dtype = packed_params[2].dtype        # wqkv dtype drives the MXU input dtype
    Hm = packed_params[8].shape[-1]

    x_spec = pl.BlockSpec((1, T, D), lambda b: (b, 0, 0))
    # Constant-index weight blocks (single logical block == full array).
    # TODO(synk): at production sizes, single-buffer these constants
    # (pipeline_mode=pl.Buffered(1)) and add a "parallel" query-tile grid axis so a
    # B=1 call still keeps both v7x TensorCores busy.
    param_specs = [pl.BlockSpec(p.shape, lambda b, _n=p.ndim: (0,) * _n)
                   for p in packed_params]

    flops = 2 * B * (T * D * 3 * D        # fused QKV projection
                     + 2 * T * T * D      # QK^T and PV (summed over heads)
                     + T * D * D          # out projection
                     + 2 * T * D * Hm)    # MLP
    transcendentals = B * (H * T * T + 2 * T)
    bytes_accessed = 2 * B * T * D * 4 + sum(int(p.size) * p.dtype.itemsize
                                             for p in packed_params)

    kernel = functools.partial(transformer_block_kernel,
                               num_heads=H, head_dim=hd, compute_dtype=compute_dtype)

    return pl.pallas_call(
        kernel,
        out_shape=jax.ShapeDtypeStruct((B, T, D), x.dtype),
        grid_spec=pltpu.PrefetchScalarGridSpec(
            num_scalar_prefetch=0,
            grid=(B,),
            in_specs=[x_spec] + param_specs,
            out_specs=pl.BlockSpec((1, T, D), lambda b: (b, 0, 0)),
        ),
        compiler_params=pltpu.CompilerParams(
            dimension_semantics=("parallel",),
            vmem_limit_bytes=64 * 1024 * 1024),
        cost_estimate=pl.CostEstimate(flops=int(flops),
                                      transcendentals=int(transcendentals),
                                      bytes_accessed=int(bytes_accessed)),
    )(x, *packed_params)


# ---------- pure-JAX reference for verification ----------
def reference_block(x, params, *, num_heads):
    B, T, D = x.shape
    hd = D // num_heads

    def ln(h, g, b):
        mu = jnp.mean(h, axis=-1, keepdims=True)
        var = jnp.mean((h - mu) ** 2, axis=-1, keepdims=True)
        return (h - mu) / jnp.sqrt(var + 1e-5) * g + b

    h1 = ln(x, params["ln1_g"], params["ln1_b"])
    q = h1 @ params["wq"] + params["bq"]
    k = h1 @ params["wk"] + params["bk"]
    v = h1 @ params["wv"] + params["bv"]
    q = q.reshape(B, T, num_heads, hd).transpose(0, 2, 1, 3)
    k = k.reshape(B, T, num_heads, hd).transpose(0, 2, 1, 3)
    v = v.reshape(B, T, num_heads, hd).transpose(0, 2, 1, 3)
    s = jnp.einsum("bhqd,bhkd->bhqk", q, k) / math.sqrt(hd)
    p = jax.nn.softmax(s, axis=-1)
    a = jnp.einsum("bhqk,bhkd->bhqd", p, v).transpose(0, 2, 1, 3).reshape(B, T, D)
    a = a @ params["wo"] + params["bo"]
    x2 = x + a
    h2 = ln(x2, params["ln2_g"], params["ln2_b"])
    m = jnp.maximum(h2 @ params["w1"] + params["b1"], 0.0)
    m = m @ params["w2"] + params["b2"]
    return x2 + m


def init_params(key, embed_dim, mlp_hidden_dim):
    D, H = embed_dim, mlp_hidden_dim
    keys = jax.random.split(key, 12)
    scale = 0.02

    def w(k, shape):
        return (scale * jax.random.normal(k, shape)).astype(jnp.float32)

    # Linear weights stored as (in, out) == PyTorch weight.T ; biases as (1, out).
    return {
        "ln1_g": jnp.ones((1, D), jnp.float32),
        "ln1_b": jnp.zeros((1, D), jnp.float32),
        "wq": w(keys[0], (D, D)), "bq": w(keys[1], (1, D)),
        "wk": w(keys[2], (D, D)), "bk": w(keys[3], (1, D)),
        "wv": w(keys[4], (D, D)), "bv": w(keys[5], (1, D)),
        "wo": w(keys[6], (D, D)), "bo": w(keys[7], (1, D)),
        "ln2_g": jnp.ones((1, D), jnp.float32),
        "ln2_b": jnp.zeros((1, D), jnp.float32),
        "w1": w(keys[8], (D, H)), "b1": w(keys[9], (1, H)),
        "w2": w(keys[10], (H, D)), "b2": w(keys[11], (1, D)),
    }


if __name__ == "__main__":
    # (8,128)-aligned, lane-dense small shapes (D and MLP hidden multiples of 128).
    B, T, D = 2, 128, 128
    NUM_HEADS = 4
    MLP_HIDDEN = 256

    key = jax.random.PRNGKey(0)
    k_x, k_p = jax.random.split(key)
    x = jax.random.normal(k_x, (B, T, D), dtype=jnp.float32)
    params = init_params(k_p, D, MLP_HIDDEN)

    ref = reference_block(x, params, num_heads=NUM_HEADS)

    # Primary path: bf16 MXU inputs, f32 accumulation / LN / softmax / residuals.
    packed_bf16 = pack_params(params, num_heads=NUM_HEADS, compute_dtype=jnp.bfloat16)
    out = jax.block_until_ready(transformer_block(x, packed_bf16, num_heads=NUM_HEADS))
    assert out.shape == (B, T, D)
    assert jnp.allclose(out, ref, atol=3e-2, rtol=3e-2), "bf16 kernel mismatch vs reference"

    # f32 MXU path: tight check vs. reference (approx reciprocal is the only deviation).
    packed_f32 = pack_params(params, num_heads=NUM_HEADS, compute_dtype=jnp.float32)
    out_f32 = jax.block_until_ready(transformer_block(x, packed_f32, num_heads=NUM_HEADS))
    assert jnp.allclose(out_f32, ref, atol=5e-3, rtol=5e-3), "f32 kernel mismatch vs reference"

    print("KERNEL_OK")
</pallas_src>

<mosaic_0001>
module attributes {stable_mosaic.version = 11 : i64} {
  func.func @transformer_block_kernel(%arg0: i32, %arg1: memref<1x128x128xf32, #tpu.memory_space<vmem>>, %arg2: memref<1x128xf32, #tpu.memory_space<vmem>>, %arg3: memref<1x128xf32, #tpu.memory_space<vmem>>, %arg4: memref<128x384xbf16, #tpu.memory_space<vmem>>, %arg5: memref<1x384xf32, #tpu.memory_space<vmem>>, %arg6: memref<128x128xbf16, #tpu.memory_space<vmem>>, %arg7: memref<1x128xf32, #tpu.memory_space<vmem>>, %arg8: memref<1x128xf32, #tpu.memory_space<vmem>>, %arg9: memref<1x128xf32, #tpu.memory_space<vmem>>, %arg10: memref<128x256xbf16, #tpu.memory_space<vmem>>, %arg11: memref<1x256xf32, #tpu.memory_space<vmem>>, %arg12: memref<256x128xbf16, #tpu.memory_space<vmem>>, %arg13: memref<1x128xf32, #tpu.memory_space<vmem>>, %arg14: memref<1x128x128xf32, #tpu.memory_space<vmem>>) attributes {dimension_semantics = [#tpu.dimension_semantics<parallel>], iteration_bounds = array<i64: 2>, scalar_prefetch = 0 : i64, scratch_operands = 0 : i64, tpu.core_type = #tpu.core_type<tc>, window_params = [{transform_indices = @transform_0, window_bounds = array<i64: 1, 128, 128>}, {pipeline_mode = #tpu.pipeline_mode<synchronous>, transform_indices = @transform_1, window_bounds = array<i64: 1, 128>}, {pipeline_mode = #tpu.pipeline_mode<synchronous>, transform_indices = @transform_2, window_bounds = array<i64: 1, 128>}, {pipeline_mode = #tpu.pipeline_mode<synchronous>, transform_indices = @transform_3, window_bounds = array<i64: 128, 384>}, {pipeline_mode = #tpu.pipeline_mode<synchronous>, transform_indices = @transform_4, window_bounds = array<i64: 1, 384>}, {pipeline_mode = #tpu.pipeline_mode<synchronous>, transform_indices = @transform_5, window_bounds = array<i64: 128, 128>}, {pipeline_mode = #tpu.pipeline_mode<synchronous>, transform_indices = @transform_6, window_bounds = array<i64: 1, 128>}, {pipeline_mode = #tpu.pipeline_mode<synchronous>, transform_indices = @transform_7, window_bounds = array<i64: 1, 128>}, {pipeline_mode = #tpu.pipeline_mode<synchronous>, transform_indices = @transform_8, window_bounds = array<i64: 1, 128>}, {pipeline_mode = #tpu.pipeline_mode<synchronous>, transform_indices = @transform_9, window_bounds = array<i64: 128, 256>}, {pipeline_mode = #tpu.pipeline_mode<synchronous>, transform_indices = @transform_10, window_bounds = array<i64: 1, 256>}, {pipeline_mode = #tpu.pipeline_mode<synchronous>, transform_indices = @transform_11, window_bounds = array<i64: 256, 128>}, {pipeline_mode = #tpu.pipeline_mode<synchronous>, transform_indices = @transform_12, window_bounds = array<i64: 1, 128>}, {transform_indices = @transform_13, window_bounds = array<i64: 1, 128, 128>}]} {
    %c0 = arith.constant 0 : index
    %c0_0 = arith.constant 0 : index
    %c0_1 = arith.constant 0 : index
    %0 = vector.load %arg1[%c0, %c0_0, %c0_1] : memref<1x128x128xf32, #tpu.memory_space<vmem>>, vector<1x128x128xf32>
    %1 = vector.shape_cast %0 : vector<1x128x128xf32> to vector<128x128xf32>
    %c0_2 = arith.constant 0 : index
    %c0_3 = arith.constant 0 : index
    %2 = vector.load %arg2[%c0_2, %c0_3] : memref<1x128xf32, #tpu.memory_space<vmem>>, vector<1x128xf32>
    %c0_4 = arith.constant 0 : index
    %c0_5 = arith.constant 0 : index
    %3 = vector.load %arg3[%c0_4, %c0_5] : memref<1x128xf32, #tpu.memory_space<vmem>>, vector<1x128xf32>
    %cst = arith.constant dense<0.000000e+00> : vector<128xf32>
    %4 = vector.multi_reduction <add>, %1, %cst [1] : vector<128x128xf32> to vector<128xf32>
    %5 = vector.shape_cast %4 : vector<128xf32> to vector<128x1xf32>
    %cst_6 = arith.constant 1.280000e+02 : f32
    %6 = vector.broadcast %cst_6 : f32 to vector<128x1xf32>
    %7 = arith.divf %5, %6 : vector<128x1xf32>
    %8 = vector.broadcast %7 : vector<128x1xf32> to vector<128x128xf32>
    %9 = arith.subf %1, %8 : vector<128x128xf32>
    %10 = arith.mulf %9, %9 : vector<128x128xf32>
    %cst_7 = arith.constant dense<0.000000e+00> : vector<128xf32>
    %11 = vector.multi_reduction <add>, %10, %cst_7 [1] : vector<128x128xf32> to vector<128xf32>
    %12 = vector.shape_cast %11 : vector<128xf32> to vector<128x1xf32>
    %cst_8 = arith.constant 1.280000e+02 : f32
    %13 = vector.broadcast %cst_8 : f32 to vector<128x1xf32>
    %14 = arith.divf %12, %13 : vector<128x1xf32>
    %15 = vector.broadcast %7 : vector<128x1xf32> to vector<128x128xf32>
    %16 = arith.subf %1, %15 : vector<128x128xf32>
    %cst_9 = arith.constant 9.99999974E-6 : f32
    %17 = vector.broadcast %cst_9 : f32 to vector<128x1xf32>
    %18 = arith.addf %14, %17 : vector<128x1xf32>
    %19 = math.rsqrt %18 : vector<128x1xf32>
    %20 = vector.broadcast %19 : vector<128x1xf32> to vector<128x128xf32>
    %21 = arith.mulf %16, %20 : vector<128x128xf32>
    %22 = vector.broadcast %2 : vector<1x128xf32> to vector<128x128xf32>
    %23 = arith.mulf %21, %22 : vector<128x128xf32>
    %24 = vector.broadcast %3 : vector<1x128xf32> to vector<128x128xf32>
    %25 = arith.addf %23, %24 : vector<128x128xf32>
    %26 = arith.truncf %25 : vector<128x128xf32> to vector<128x128xbf16>
    %c0_10 = arith.constant 0 : index
    %c0_11 = arith.constant 0 : index
    %27 = vector.load %arg4[%c0_10, %c0_11] : memref<128x384xbf16, #tpu.memory_space<vmem>>, vector<128x384xbf16>
    %cst_12 = arith.constant dense<0.000000e+00> : vector<128x384xf32>
    %28 = tpu.matmul %26, %27, %cst_12 {dimension_numbers = #tpu.dot_dimension_numbers<[1], [0], [0], [1], [0, 0, 1, 1], [], []>} : vector<128x128xbf16>, vector<128x384xbf16>, vector<128x384xf32> -> vector<128x384xf32>
    %c0_13 = arith.constant 0 : index
    %c0_14 = arith.constant 0 : index
    %29 = vector.load %arg5[%c0_13, %c0_14] : memref<1x384xf32, #tpu.memory_space<vmem>>, vector<1x384xf32>
    %30 = vector.broadcast %29 : vector<1x384xf32> to vector<128x384xf32>
    %31 = arith.addf %28, %30 : vector<128x384xf32>
    %c0_15 = arith.constant 0 : index
    %c0_16 = arith.constant 0 : index
    %32 = vector.load %arg6[%c0_15, %c0_16] : memref<128x128xbf16, #tpu.memory_space<vmem>>, vector<128x128xbf16>
    %33 = vector.extract_strided_slice %31 {offsets = [0, 0], sizes = [128, 32], strides = [1, 1]} : vector<128x384xf32> to vector<128x32xf32>
    %34 = arith.truncf %33 : vector<128x32xf32> to vector<128x32xbf16>
    %35 = vector.extract_strided_slice %31 {offsets = [0, 128], sizes = [128, 32], strides = [1, 1]} : vector<128x384xf32> to vector<128x32xf32>
    %36 = arith.truncf %35 : vector<128x32xf32> to vector<128x32xbf16>
    %37 = vector.extract_strided_slice %31 {offsets = [0, 256], sizes = [128, 32], strides = [1, 1]} : vector<128x384xf32> to vector<128x32xf32>
    %38 = arith.truncf %37 : vector<128x32xf32> to vector<128x32xbf16>
    "tpu.trace_start"() <{level = 10 : i32, message = "qd,kd->qk"}> : () -> ()
    %cst_17 = arith.constant dense<0.000000e+00> : vector<128x128xf32>
    %39 = tpu.matmul %34, %36, %cst_17 {dimension_numbers = #tpu.dot_dimension_numbers<[1], [1], [0], [0], [0, 0, 1, 0], [], []>} : vector<128x32xbf16>, vector<128x32xbf16>, vector<128x128xf32> -> vector<128x128xf32>
    "tpu.trace_stop"() : () -> ()
    %cst_18 = arith.constant dense<0xFF800000> : vector<128xf32>
    %40 = vector.multi_reduction <maximumf>, %39, %cst_18 [1] : vector<128x128xf32> to vector<128xf32>
    %41 = vector.shape_cast %40 : vector<128xf32> to vector<128x1xf32>
    %42 = vector.broadcast %41 : vector<128x1xf32> to vector<128x128xf32>
    %43 = arith.subf %39, %42 : vector<128x128xf32>
    %44 = math.exp %43 : vector<128x128xf32>
    %cst_19 = arith.constant dense<0.000000e+00> : vector<128xf32>
    %45 = vector.multi_reduction <add>, %44, %cst_19 [1] : vector<128x128xf32> to vector<128xf32>
    %46 = vector.shape_cast %45 : vector<128xf32> to vector<128x1xf32>
    %47 = tpu.reciprocal %46 {approx = true} : vector<128x1xf32> -> vector<128x1xf32>
    %48 = vector.broadcast %47 : vector<128x1xf32> to vector<128x128xf32>
    %49 = arith.mulf %44, %48 : vector<128x128xf32>
    %50 = arith.truncf %49 : vector<128x128xf32> to vector<128x128xbf16>
    %cst_20 = arith.constant dense<0.000000e+00> : vector<128x32xf32>
    %51 = tpu.matmul %50, %38, %cst_20 {dimension_numbers = #tpu.dot_dimension_numbers<[1], [0], [0], [1], [0, 0, 1, 1], [], []>} : vector<128x128xbf16>, vector<128x32xbf16>, vector<128x32xf32> -> vector<128x32xf32>
    %52 = arith.truncf %51 : vector<128x32xf32> to vector<128x32xbf16>
    %53 = vector.extract_strided_slice %32 {offsets = [0, 0], sizes = [32, 128], strides = [1, 1]} : vector<128x128xbf16> to vector<32x128xbf16>
    %cst_21 = arith.constant dense<0.000000e+00> : vector<128x128xf32>
    %54 = tpu.matmul %52, %53, %cst_21 {dimension_numbers = #tpu.dot_dimension_numbers<[1], [0], [0], [1], [0, 0, 1, 1], [], []>} : vector<128x32xbf16>, vector<32x128xbf16>, vector<128x128xf32> -> vector<128x128xf32>
    %55 = vector.extract_strided_slice %31 {offsets = [0, 32], sizes = [128, 32], strides = [1, 1]} : vector<128x384xf32> to vector<128x32xf32>
    %56 = arith.truncf %55 : vector<128x32xf32> to vector<128x32xbf16>
    %57 = vector.extract_strided_slice %31 {offsets = [0, 160], sizes = [128, 32], strides = [1, 1]} : vector<128x384xf32> to vector<128x32xf32>
    %58 = arith.truncf %57 : vector<128x32xf32> to vector<128x32xbf16>
    %59 = vector.extract_strided_slice %31 {offsets = [0, 288], sizes = [128, 32], strides = [1, 1]} : vector<128x384xf32> to vector<128x32xf32>
    %60 = arith.truncf %59 : vector<128x32xf32> to vector<128x32xbf16>
    "tpu.trace_start"() <{level = 10 : i32, message = "qd,kd->qk"}> : () -> ()
    %cst_22 = arith.constant dense<0.000000e+00> : vector<128x128xf32>
    %61 = tpu.matmul %56, %58, %cst_22 {dimension_numbers = #tpu.dot_dimension_numbers<[1], [1], [0], [0], [0, 0, 1, 0], [], []>} : vector<128x32xbf16>, vector<128x32xbf16>, vector<128x128xf32> -> vector<128x128xf32>
    "tpu.trace_stop"() : () -> ()
    %cst_23 = arith.constant dense<0xFF800000> : vector<128xf32>
    %62 = vector.multi_reduction <maximumf>, %61, %cst_23 [1] : vector<128x128xf32> to vector<128xf32>
    %63 = vector.shape_cast %62 : vector<128xf32> to vector<128x1xf32>
    %64 = vector.broadcast %63 : vector<128x1xf32> to vector<128x128xf32>
    %65 = arith.subf %61, %64 : vector<128x128xf32>
    %66 = math.exp %65 : vector<128x128xf32>
    %cst_24 = arith.constant dense<0.000000e+00> : vector<128xf32>
    %67 = vector.multi_reduction <add>, %66, %cst_24 [1] : vector<128x128xf32> to vector<128xf32>
    %68 = vector.shape_cast %67 : vector<128xf32> to vector<128x1xf32>
    %69 = tpu.reciprocal %68 {approx = true} : vector<128x1xf32> -> vector<128x1xf32>
    %70 = vector.broadcast %69 : vector<128x1xf32> to vector<128x128xf32>
    %71 = arith.mulf %66, %70 : vector<128x128xf32>
    %72 = arith.truncf %71 : vector<128x128xf32> to vector<128x128xbf16>
    %cst_25 = arith.constant dense<0.000000e+00> : vector<128x32xf32>
    %73 = tpu.matmul %72, %60, %cst_25 {dimension_numbers = #tpu.dot_dimension_numbers<[1], [0], [0], [1], [0, 0, 1, 1], [], []>} : vector<128x128xbf16>, vector<128x32xbf16>, vector<128x32xf32> -> vector<128x32xf32>
    %74 = arith.truncf %73 : vector<128x32xf32> to vector<128x32xbf16>
    %75 = vector.extract_strided_slice %32 {offsets = [32, 0], sizes = [32, 128], strides = [1, 1]} : vector<128x128xbf16> to vector<32x128xbf16>
    %cst_26 = arith.constant dense<0.000000e+00> : vector<128x128xf32>
    %76 = tpu.matmul %74, %75, %cst_26 {dimension_numbers = #tpu.dot_dimension_numbers<[1], [0], [0], [1], [0, 0, 1, 1], [], []>} : vector<128x32xbf16>, vector<32x128xbf16>, vector<128x128xf32> -> vector<128x128xf32>
    %77 = arith.addf %54, %76 : vector<128x128xf32>
    %78 = vector.extract_strided_slice %31 {offsets = [0, 64], sizes = [128, 32], strides = [1, 1]} : vector<128x384xf32> to vector<128x32xf32>
    %79 = arith.truncf %78 : vector<128x32xf32> to vector<128x32xbf16>
    %80 = vector.extract_strided_slice %31 {offsets = [0, 192], sizes = [128, 32], strides = [1, 1]} : vector<128x384xf32> to vector<128x32xf32>
    %81 = arith.truncf %80 : vector<128x32xf32> to vector<128x32xbf16>
    %82 = vector.extract_strided_slice %31 {offsets = [0, 320], sizes = [128, 32], strides = [1, 1]} : vector<128x384xf32> to vector<128x32xf32>
    %83 = arith.truncf %82 : vector<128x32xf32> to vector<128x32xbf16>
    "tpu.trace_start"() <{level = 10 : i32, message = "qd,kd->qk"}> : () -> ()
    %cst_27 = arith.constant dense<0.000000e+00> : vector<128x128xf32>
    %84 = tpu.matmul %79, %81, %cst_27 {dimension_numbers = #tpu.dot_dimension_numbers<[1], [1], [0], [0], [0, 0, 1, 0], [], []>} : vector<128x32xbf16>, vector<128x32xbf16>, vector<128x128xf32> -> vector<128x128xf32>
    "tpu.trace_stop"() : () -> ()
    %cst_28 = arith.constant dense<0xFF800000> : vector<128xf32>
    %85 = vector.multi_reduction <maximumf>, %84, %cst_28 [1] : vector<128x128xf32> to vector<128xf32>
    %86 = vector.shape_cast %85 : vector<128xf32> to vector<128x1xf32>
    %87 = vector.broadcast %86 : vector<128x1xf32> to vector<128x128xf32>
    %88 = arith.subf %84, %87 : vector<128x128xf32>
    %89 = math.exp %88 : vector<128x128xf32>
    %cst_29 = arith.constant dense<0.000000e+00> : vector<128xf32>
    %90 = vector.multi_reduction <add>, %89, %cst_29 [1] : vector<128x128xf32> to vector<128xf32>
    %91 = vector.shape_cast %90 : vector<128xf32> to vector<128x1xf32>
    %92 = tpu.reciprocal %91 {approx = true} : vector<128x1xf32> -> vector<128x1xf32>
    %93 = vector.broadcast %92 : vector<128x1xf32> to vector<128x128xf32>
    %94 = arith.mulf %89, %93 : vector<128x128xf32>
    %95 = arith.truncf %94 : vector<128x128xf32> to vector<128x128xbf16>
    %cst_30 = arith.constant dense<0.000000e+00> : vector<128x32xf32>
    %96 = tpu.matmul %95, %83, %cst_30 {dimension_numbers = #tpu.dot_dimension_numbers<[1], [0], [0], [1], [0, 0, 1, 1], [], []>} : vector<128x128xbf16>, vector<128x32xbf16>, vector<128x32xf32> -> vector<128x32xf32>
    %97 = arith.truncf %96 : vector<128x32xf32> to vector<128x32xbf16>
    %98 = vector.extract_strided_slice %32 {offsets = [64, 0], sizes = [32, 128], strides = [1, 1]} : vector<128x128xbf16> to vector<32x128xbf16>
    %cst_31 = arith.constant dense<0.000000e+00> : vector<128x128xf32>
    %99 = tpu.matmul %97, %98, %cst_31 {dimension_numbers = #tpu.dot_dimension_numbers<[1], [0], [0], [1], [0, 0, 1, 1], [], []>} : vector<128x32xbf16>, vector<32x128xbf16>, vector<128x128xf32> -> vector<128x128xf32>
    %100 = arith.addf %77, %99 : vector<128x128xf32>
    %101 = vector.extract_strided_slice %31 {offsets = [0, 96], sizes = [128, 32], strides = [1, 1]} : vector<128x384xf32> to vector<128x32xf32>
    %102 = arith.truncf %101 : vector<128x32xf32> to vector<128x32xbf16>
    %103 = vector.extract_strided_slice %31 {offsets = [0, 224], sizes = [128, 32], strides = [1, 1]} : vector<128x384xf32> to vector<128x32xf32>
    %104 = arith.truncf %103 : vector<128x32xf32> to vector<128x32xbf16>
    %105 = vector.extract_strided_slice %31 {offsets = [0, 352], sizes = [128, 32], strides = [1, 1]} : vector<128x384xf32> to vector<128x32xf32>
    %106 = arith.truncf %105 : vector<128x32xf32> to vector<128x32xbf16>
    "tpu.trace_start"() <{level = 10 : i32, message = "qd,kd->qk"}> : () -> ()
    %cst_32 = arith.constant dense<0.000000e+00> : vector<128x128xf32>
    %107 = tpu.matmul %102, %104, %cst_32 {dimension_numbers = #tpu.dot_dimension_numbers<[1], [1], [0], [0], [0, 0, 1, 0], [], []>} : vector<128x32xbf16>, vector<128x32xbf16>, vector<128x128xf32> -> vector<128x128xf32>
    "tpu.trace_stop"() : () -> ()
    %cst_33 = arith.constant dense<0xFF800000> : vector<128xf32>
    %108 = vector.multi_reduction <maximumf>, %107, %cst_33 [1] : vector<128x128xf32> to vector<128xf32>
    %109 = vector.shape_cast %108 : vector<128xf32> to vector<128x1xf32>
    %110 = vector.broadcast %109 : vector<128x1xf32> to vector<128x128xf32>
    %111 = arith.subf %107, %110 : vector<128x128xf32>
    %112 = math.exp %111 : vector<128x128xf32>
    %cst_34 = arith.constant dense<0.000000e+00> : vector<128xf32>
    %113 = vector.multi_reduction <add>, %112, %cst_34 [1] : vector<128x128xf32> to vector<128xf32>
    %114 = vector.shape_cast %113 : vector<128xf32> to vector<128x1xf32>
    %115 = tpu.reciprocal %114 {approx = true} : vector<128x1xf32> -> vector<128x1xf32>
    %116 = vector.broadcast %115 : vector<128x1xf32> to vector<128x128xf32>
    %117 = arith.mulf %112, %116 : vector<128x128xf32>
    %118 = arith.truncf %117 : vector<128x128xf32> to vector<128x128xbf16>
    %cst_35 = arith.constant dense<0.000000e+00> : vector<128x32xf32>
    %119 = tpu.matmul %118, %106, %cst_35 {dimension_numbers = #tpu.dot_dimension_numbers<[1], [0], [0], [1], [0, 0, 1, 1], [], []>} : vector<128x128xbf16>, vector<128x32xbf16>, vector<128x32xf32> -> vector<128x32xf32>
    %120 = arith.truncf %119 : vector<128x32xf32> to vector<128x32xbf16>
    %121 = vector.extract_strided_slice %32 {offsets = [96, 0], sizes = [32, 128], strides = [1, 1]} : vector<128x128xbf16> to vector<32x128xbf16>
    %cst_36 = arith.constant dense<0.000000e+00> : vector<128x128xf32>
    %122 = tpu.matmul %120, %121, %cst_36 {dimension_numbers = #tpu.dot_dimension_numbers<[1], [0], [0], [1], [0, 0, 1, 1], [], []>} : vector<128x32xbf16>, vector<32x128xbf16>, vector<128x128xf32> -> vector<128x128xf32>
    %123 = arith.addf %100, %122 : vector<128x128xf32>
    %124 = arith.addf %1, %123 : vector<128x128xf32>
    %c0_37 = arith.constant 0 : index
    %c0_38 = arith.constant 0 : index
    %125 = vector.load %arg7[%c0_37, %c0_38] : memref<1x128xf32, #tpu.memory_space<vmem>>, vector<1x128xf32>
    %126 = vector.broadcast %125 : vector<1x128xf32> to vector<128x128xf32>
    %127 = arith.addf %124, %126 : vector<128x128xf32>
    %c0_39 = arith.constant 0 : index
    %c0_40 = arith.constant 0 : index
    %128 = vector.load %arg8[%c0_39, %c0_40] : memref<1x128xf32, #tpu.memory_space<vmem>>, vector<1x128xf32>
    %c0_41 = arith.constant 0 : index
    %c0_42 = arith.constant 0 : index
    %129 = vector.load %arg9[%c0_41, %c0_42] : memref<1x128xf32, #tpu.memory_space<vmem>>, vector<1x128xf32>
    %cst_43 = arith.constant dense<0.000000e+00> : vector<128xf32>
    %130 = vector.multi_reduction <add>, %127, %cst_43 [1] : vector<128x128xf32> to vector<128xf32>
    %131 = vector.shape_cast %130 : vector<128xf32> to vector<128x1xf32>
    %cst_44 = arith.constant 1.280000e+02 : f32
    %132 = vector.broadcast %cst_44 : f32 to vector<128x1xf32>
    %133 = arith.divf %131, %132 : vector<128x1xf32>
    %134 = vector.broadcast %133 : vector<128x1xf32> to vector<128x128xf32>
    %135 = arith.subf %127, %134 : vector<128x128xf32>
    %136 = arith.mulf %135, %135 : vector<128x128xf32>
    %cst_45 = arith.constant dense<0.000000e+00> : vector<128xf32>
    %137 = vector.multi_reduction <add>, %136, %cst_45 [1] : vector<128x128xf32> to vector<128xf32>
    %138 = vector.shape_cast %137 : vector<128xf32> to vector<128x1xf32>
    %cst_46 = arith.constant 1.280000e+02 : f32
    %139 = vector.broadcast %cst_46 : f32 to vector<128x1xf32>
    %140 = arith.divf %138, %139 : vector<128x1xf32>
    %141 = vector.broadcast %133 : vector<128x1xf32> to vector<128x128xf32>
    %142 = arith.subf %127, %141 : vector<128x128xf32>
    %cst_47 = arith.constant 9.99999974E-6 : f32
    %143 = vector.broadcast %cst_47 : f32 to vector<128x1xf32>
    %144 = arith.addf %140, %143 : vector<128x1xf32>
    %145 = math.rsqrt %144 : vector<128x1xf32>
    %146 = vector.broadcast %145 : vector<128x1xf32> to vector<128x128xf32>
    %147 = arith.mulf %142, %146 : vector<128x128xf32>
    %148 = vector.broadcast %128 : vector<1x128xf32> to vector<128x128xf32>
    %149 = arith.mulf %147, %148 : vector<128x128xf32>
    %150 = vector.broadcast %129 : vector<1x128xf32> to vector<128x128xf32>
    %151 = arith.addf %149, %150 : vector<128x128xf32>
    %152 = arith.truncf %151 : vector<128x128xf32> to vector<128x128xbf16>
    %c0_48 = arith.constant 0 : index
    %c0_49 = arith.constant 0 : index
    %153 = vector.load %arg10[%c0_48, %c0_49] : memref<128x256xbf16, #tpu.memory_space<vmem>>, vector<128x256xbf16>
    %cst_50 = arith.constant dense<0.000000e+00> : vector<128x256xf32>
    %154 = tpu.matmul %152, %153, %cst_50 {dimension_numbers = #tpu.dot_dimension_numbers<[1], [0], [0], [1], [0, 0, 1, 1], [], []>} : vector<128x128xbf16>, vector<128x256xbf16>, vector<128x256xf32> -> vector<128x256xf32>
    %c0_51 = arith.constant 0 : index
    %c0_52 = arith.constant 0 : index
    %155 = vector.load %arg11[%c0_51, %c0_52] : memref<1x256xf32, #tpu.memory_space<vmem>>, vector<1x256xf32>
    %156 = vector.broadcast %155 : vector<1x256xf32> to vector<128x256xf32>
    %157 = arith.addf %154, %156 : vector<128x256xf32>
    %cst_53 = arith.constant 0.000000e+00 : f32
    %158 = vector.broadcast %cst_53 : f32 to vector<128x256xf32>
    %159 = arith.maximumf %157, %158 : vector<128x256xf32>
    %160 = arith.truncf %159 : vector<128x256xf32> to vector<128x256xbf16>
    %c0_54 = arith.constant 0 : index
    %c0_55 = arith.constant 0 : index
    %161 = vector.load %arg12[%c0_54, %c0_55] : memref<256x128xbf16, #tpu.memory_space<vmem>>, vector<256x128xbf16>
    %cst_56 = arith.constant dense<0.000000e+00> : vector<128x128xf32>
    %162 = tpu.matmul %160, %161, %cst_56 {dimension_numbers = #tpu.dot_dimension_numbers<[1], [0], [0], [1], [0, 0, 1, 1], [], []>} : vector<128x256xbf16>, vector<256x128xbf16>, vector<128x128xf32> -> vector<128x128xf32>
    %c0_57 = arith.constant 0 : index
    %c0_58 = arith.constant 0 : index
    %163 = vector.load %arg13[%c0_57, %c0_58] : memref<1x128xf32, #tpu.memory_space<vmem>>, vector<1x128xf32>
    %164 = vector.broadcast %163 : vector<1x128xf32> to vector<128x128xf32>
    %165 = arith.addf %162, %164 : vector<128x128xf32>
    %166 = arith.addf %127, %165 : vector<128x128xf32>
    %c0_59 = arith.constant 0 : index
    %c0_60 = arith.constant 0 : index
    %c0_61 = arith.constant 0 : index
    %167 = vector.load %arg14[%c0_59, %c0_60, %c0_61] : memref<1x128x128xf32, #tpu.memory_space<vmem>>, vector<1x128x128xf32>
    %168 = vector.shape_cast %167 : vector<1x128x128xf32> to vector<128x128xf32>
    %169 = vector.shape_cast %166 : vector<128x128xf32> to vector<1x128x128xf32>
    tpu.vector_store %arg14[%c0_59, %c0_60, %c0_61], %169 {strides = array<i32>} : memref<1x128x128xf32, #tpu.memory_space<vmem>>, vector<1x128x128xf32>,
    return
  }
  func.func @transform_0(%arg0: i32) -> (i32, i32, i32) {
    %c0_i32 = arith.constant 0 : i32
    %c0_i32_0 = arith.constant 0 : i32
    %c0_i32_1 = arith.constant 0 : i32
    return %arg0, %c0_i32, %c0_i32_0 : i32, i32, i32
  }
  func.func @transform_1(%arg0: i32) -> (i32, i32) {
    %c0_i32 = arith.constant 0 : i32
    %c0_i32_0 = arith.constant 0 : i32
    %c0_i32_1 = arith.constant 0 : i32
    return %c0_i32, %c0_i32_0 : i32, i32
  }
  func.func @transform_2(%arg0: i32) -> (i32, i32) {
    %c0_i32 = arith.constant 0 : i32
    %c0_i32_0 = arith.constant 0 : i32
    %c0_i32_1 = arith.constant 0 : i32
    return %c0_i32, %c0_i32_0 : i32, i32
  }
  func.func @transform_3(%arg0: i32) -> (i32, i32) {
    %c0_i32 = arith.constant 0 : i32
    %c0_i32_0 = arith.constant 0 : i32
    %c0_i32_1 = arith.constant 0 : i32
    return %c0_i32, %c0_i32_0 : i32, i32
  }
  func.func @transform_4(%arg0: i32) -> (i32, i32) {
    %c0_i32 = arith.constant 0 : i32
    %c0_i32_0 = arith.constant 0 : i32
    %c0_i32_1 = arith.constant 0 : i32
    return %c0_i32, %c0_i32_0 : i32, i32
  }
  func.func @transform_5(%arg0: i32) -> (i32, i32) {
    %c0_i32 = arith.constant 0 : i32
    %c0_i32_0 = arith.constant 0 : i32
    %c0_i32_1 = arith.constant 0 : i32
    return %c0_i32, %c0_i32_0 : i32, i32
  }
  func.func @transform_6(%arg0: i32) -> (i32, i32) {
    %c0_i32 = arith.constant 0 : i32
    %c0_i32_0 = arith.constant 0 : i32
    %c0_i32_1 = arith.constant 0 : i32
    return %c0_i32, %c0_i32_0 : i32, i32
  }
  func.func @transform_7(%arg0: i32) -> (i32, i32) {
    %c0_i32 = arith.constant 0 : i32
    %c0_i32_0 = arith.constant 0 : i32
    %c0_i32_1 = arith.constant 0 : i32
    return %c0_i32, %c0_i32_0 : i32, i32
  }
  func.func @transform_8(%arg0: i32) -> (i32, i32) {
    %c0_i32 = arith.constant 0 : i32
    %c0_i32_0 = arith.constant 0 : i32
    %c0_i32_1 = arith.constant 0 : i32
    return %c0_i32, %c0_i32_0 : i32, i32
  }
  func.func @transform_9(%arg0: i32) -> (i32, i32) {
    %c0_i32 = arith.constant 0 : i32
    %c0_i32_0 = arith.constant 0 : i32
    %c0_i32_1 = arith.constant 0 : i32
    return %c0_i32, %c0_i32_0 : i32, i32
  }
  func.func @transform_10(%arg0: i32) -> (i32, i32) {
    %c0_i32 = arith.constant 0 : i32
    %c0_i32_0 = arith.constant 0 : i32
    %c0_i32_1 = arith.constant 0 : i32
    return %c0_i32, %c0_i32_0 : i32, i32
  }
  func.func @transform_11(%arg0: i32) -> (i32, i32) {
    %c0_i32 = arith.constant 0 : i32
    %c0_i32_0 = arith.constant 0 : i32
    %c0_i32_1 = arith.constant 0 : i32
    return %c0_i32, %c0_i32_0 : i32, i32
  }
  func.func @transform_12(%arg0: i32) -> (i32, i32) {
    %c0_i32 = arith.constant 0 : i32
    %c0_i32_0 = arith.constant 0 : i32
    %c0_i32_1 = arith.constant 0 : i32
    return %c0_i32, %c0_i32_0 : i32, i32
  }
  func.func @transform_13(%arg0: i32) -> (i32, i32, i32) {
    %c0_i32 = arith.constant 0 : i32
    %c0_i32_0 = arith.constant 0 : i32
    %c0_i32_1 = arith.constant 0 : i32
    return %arg0, %c0_i32, %c0_i32_0 : i32, i32, i32
  }
}

</mosaic_0001>

<llo_original>
// kernel: tpu_custom_call.1
$region0: #{tpu_custom_call.1}
  #allocation0 [shape = 'u32[]', space=smem, size = 0x4, offset = 0x4, fixed_abs, tag = 'smem constant byte address 0x4 - core index']
  #allocation1 [shape = 'u32[144,128]{1,0:T(1,128)}', space=vmem, size = 0x12000, scoped, tag = 'internal scratch']
  %s0 = inlined_call_operand.hbm [shape: f32[2,128,128], index: 0, kind: input, shape index: {}]
  %s1 = inlined_call_operand.hbm [shape: f32[1,128], index: 1, kind: input, shape index: {}]
  %s2 = inlined_call_operand.hbm [shape: f32[1,128], index: 2, kind: input, shape index: {}]
  %s3 = inlined_call_operand.hbm [shape: bf16[128,384], index: 3, kind: input, shape index: {}]
  %s4 = inlined_call_operand.hbm [shape: f32[1,384], index: 4, kind: input, shape index: {}]
  %s5 = inlined_call_operand.hbm [shape: bf16[128,128], index: 5, kind: input, shape index: {}]
  %s6 = inlined_call_operand.hbm [shape: f32[1,128], index: 6, kind: input, shape index: {}]
  %s7 = inlined_call_operand.hbm [shape: f32[1,128], index: 7, kind: input, shape index: {}]
  %s8 = inlined_call_operand.hbm [shape: f32[1,128], index: 8, kind: input, shape index: {}]
  %s9 = inlined_call_operand.hbm [shape: bf16[128,256], index: 9, kind: input, shape index: {}]
  %s10 = inlined_call_operand.hbm [shape: f32[1,256], index: 10, kind: input, shape index: {}]
  %s11 = inlined_call_operand.hbm [shape: bf16[256,128], index: 11, kind: input, shape index: {}]
  %s12 = inlined_call_operand.hbm [shape: f32[1,128], index: 12, kind: input, shape index: {}]
  %s13 = inlined_call_operand.hbm [shape: f32[2,128,128], index: 13, kind: output, shape index: {}]
  %s14 = sld [smem:[#allocation0]]
  $region137: #{tpu_custom_call.1} parent=0
    _
  %s16 = ssub.s32 1, %s14
  %s17 = scalar_select 0, %s16, %s14
  $region1: #{tpu_custom_call.1} parent=0
    #allocation2 [shape = 'u8[131072]{0}', space=vmem, size = 0x20000, scoped, tag = 'input window, operand 0']
    #allocation3 [shape = 's32[2]{0}', space=sflag, size = 0x8, scoped, tag = 'scoped memory for tpu_custom_call.1']
    #allocation4 [shape = 's32[2]{0}', space=sflag, size = 0x8, scoped, tag = 'scoped memory for tpu_custom_call.1']
    #allocation5 [shape = 'u8[512]{0}', space=vmem, size = 0x400, scoped, tag = 'input window, operand 1, single buffered']
    #allocation6 [shape = 's32[1]{0}', space=sflag, size = 0x4, scoped, tag = 'scoped memory for tpu_custom_call.1']
    #allocation7 [shape = 'u8[512]{0}', space=vmem, size = 0x400, scoped, tag = 'input window, operand 2, single buffered']
    #allocation8 [shape = 'u8[98304]{0}', space=vmem, size = 0x18000, scoped, tag = 'input window, operand 3, single buffered']
    #allocation9 [shape = 's32[1]{0}', space=sflag, size = 0x4, scoped, tag = 'scoped memory for tpu_custom_call.1']
    #allocation10 [shape = 'u8[1536]{0}', space=vmem, size = 0x800, scoped, tag = 'input window, operand 4, single buffered']
    #allocation11 [shape = 'u8[32768]{0}', space=vmem, size = 0x8000, scoped, tag = 'input window, operand 5, single buffered']
    #allocation12 [shape = 's32[1]{0}', space=sflag, size = 0x4, scoped, tag = 'scoped memory for tpu_custom_call.1']
    #allocation13 [shape = 'u8[512]{0}', space=vmem, size = 0x400, scoped, tag = 'input window, operand 6, single buffered']
    #allocation14 [shape = 'u8[512]{0}', space=vmem, size = 0x400, scoped, tag = 'input window, operand 7, single buffered']
    #allocation15 [shape = 's32[1]{0}', space=sflag, size = 0x4, scoped, tag = 'scoped memory for tpu_custom_call.1']
    #allocation16 [shape = 'u8[512]{0}', space=vmem, size = 0x400, scoped, tag = 'input window, operand 8, single buffered']
    #allocation17 [shape = 'u8[65536]{0}', space=vmem, size = 0x10000, scoped, tag = 'input window, operand 9, single buffered']
    #allocation18 [shape = 's32[1]{0}', space=sflag, size = 0x4, scoped, tag = 'scoped memory for tpu_custom_call.1']
    #allocation19 [shape = 'u8[1024]{0}', space=vmem, size = 0x400, scoped, tag = 'input window, operand 10, single buffered']
    #allocation20 [shape = 'u8[65536]{0}', space=vmem, size = 0x10000, scoped, tag = 'input window, operand 11, single buffered']
    #allocation21 [shape = 's32[1]{0}', space=sflag, size = 0x4, scoped, tag = 'scoped memory for tpu_custom_call.1']
    #allocation22 [shape = 'u8[512]{0}', space=vmem, size = 0x400, scoped, tag = 'input window, operand 12, single buffered']
    #allocation23 [shape = 'u8[131072]{0}', space=vmem, size = 0x20000, scoped, tag = 'output window, operand 0']
    %18 = vsyncpa [#allocation3], 0
    %s19 = scalar_lea.sflag [#allocation3], 1
    %20 = vsyncpa %s19, 0
    %21 = vsyncpa [#allocation6], 0
    %22 = vsyncpa [#allocation9], 0
    %23 = vsyncpa [#allocation12], 0
    %24 = vsyncpa [#allocation15], 0
    %25 = vsyncpa [#allocation18], 0
    %26 = vsyncpa [#allocation21], 0
    %27 = vsyncpa [#allocation4], 0
    %s28 = scalar_lea.sflag [#allocation4], 1
    %29 = vsyncpa %s28, 0
    loop: start=0, step=1, limit=4
    $region2: #{tpu_custom_call.1} parent=1 // loop_pre_header
      _
    $region3: #{tpu_custom_call.1} parent=1 // loop_header
      %s31 = sphi 0, %s35
      %p32 = scmp.ge.s32.totalorder %s31, 4
      %s41 = sphi 0, %s43
      %s44 = sphi 0, %s41
      %s45 = sphi 0, %s44
      %s61 = sphi 0, %s45
      %s65 = sphi 0, %s65
      %s67 = sphi 0, %s65
      %s68 = sphi 0, %s67
      %s82 = sphi 0, %s68
      %s86 = sphi 0, %s86
      %s88 = sphi 0, %s86
      %s89 = sphi 0, %s88
      %s103 = sphi 0, %s89
      %s107 = sphi 0, %s107
      %s109 = sphi 0, %s107
      %s110 = sphi 0, %s109
      %s124 = sphi 0, %s110
      %s128 = sphi 0, %s128
      %s130 = sphi 0, %s128
      %s131 = sphi 0, %s130
      %s145 = sphi 0, %s131
      %s149 = sphi 0, %s149
      %s151 = sphi 0, %s149
      %s152 = sphi 0, %s151
      %s166 = sphi 0, %s152
      %s170 = sphi 0, %s170
      %s172 = sphi 0, %s170
      %s173 = sphi 0, %s172
      %s187 = sphi 0, %s173
      %s191 = sphi 0, %s191
      %s193 = sphi 0, %s191
      %s194 = sphi 0, %s193
      %s208 = sphi 0, %s194
      %s212 = sphi 0, %s212
      %s214 = sphi 0, %s212
      %s215 = sphi 0, %s214
      %s229 = sphi 0, %s215
      %s233 = sphi 0, %s233
      %s235 = sphi 0, %s233
      %s236 = sphi 0, %s235
      %s250 = sphi 0, %s236
      %s254 = sphi 0, %s254
      %s256 = sphi 0, %s254
      %s257 = sphi 0, %s256
      %s271 = sphi 0, %s257
      %s275 = sphi 0, %s275
      %s277 = sphi 0, %s275
      %s278 = sphi 0, %s277
      %s292 = sphi 0, %s278
      %s296 = sphi 0, %s296
      %s298 = sphi 0, %s296
      %s299 = sphi 0, %s298
      %s313 = sphi 0, %s299
      %s319 = sphi 0, %s321
      %s322 = sphi 0, %s319
      %s323 = sphi 0, %s322
      %s339 = sphi 0, %s323
    $region4: #{tpu_custom_call.1} parent=1 // loop_header_branch
      %34 = sbr.rel (%p32) target = $region8
    $region5: #{tpu_custom_call.1} parent=1 // loop_body
      %s36 = ssub.s32 %s31, 1
      %s37 = ssub.s32 %s31, 2
      %s38 = sadd.s32 %s31, 1
      %s39 = ssub.s32 %s31, %s38
      %p40 = scmp.eq.s32.totalorder %s39, 0
      %s42 = sadd.s32 %s41, 1
      %s43 = scalar_select %p40, %s41, %s42
      %p46 = pneg %p40
      %p47 = scmp.eq.s32.totalorder %s31, 1
      %p48 = por %p46, %p47
      %p49 = scmp.ne.s32.totalorder %s41, %s44
      %p50 = scmp.eq.s32.totalorder %s31, 0
      %p51 = por %p49, %p50
      %p52 = scmp.ne.s32.totalorder %s41, %s44
      %p53 = scmp.eq.s32.totalorder %s36, 1
      %p54 = por %p52, %p53
      %p55 = scmp.ne.s32.totalorder %s44, %s45
      %p56 = scmp.eq.s32.totalorder %s36, 0
      %p57 = por %p55, %p56
      %p58 = scmp.ne.s32.totalorder %s44, %s45
      %p59 = scmp.eq.s32.totalorder %s37, 1
      %p60 = por %p58, %p59
      %p62 = scmp.ne.s32.totalorder %s45, %s61
      %p63 = scmp.eq.s32.totalorder %s37, 0
      %p64 = por %p62, %p63
      %s66 = sadd.s32 %s65, 1
      %p69 = scmp.eq.s32.totalorder %s31, 1
      %p70 = scmp.ne.s32.totalorder %s65, %s67
      %p71 = scmp.eq.s32.totalorder %s31, 0
      %p72 = por %p70, %p71
      %p73 = scmp.ne.s32.totalorder %s65, %s67
      %p74 = scmp.eq.s32.totalorder %s36, 1
      %p75 = por %p73, %p74
      %p76 = scmp.ne.s32.totalorder %s67, %s68
      %p77 = scmp.eq.s32.totalorder %s36, 0
      %p78 = por %p76, %p77
      %p79 = scmp.ne.s32.totalorder %s67, %s68
      %p80 = scmp.eq.s32.totalorder %s37, 1
      %p81 = por %p79, %p80
      %p83 = scmp.ne.s32.totalorder %s68, %s82
      %p84 = scmp.eq.s32.totalorder %s37, 0
      %p85 = por %p83, %p84
      %s87 = sadd.s32 %s86, 1
      %p90 = scmp.eq.s32.totalorder %s31, 1
      %p91 = scmp.ne.s32.totalorder %s86, %s88
      %p92 = scmp.eq.s32.totalorder %s31, 0
      %p93 = por %p91, %p92
      %p94 = scmp.ne.s32.totalorder %s86, %s88
      %p95 = scmp.eq.s32.totalorder %s36, 1
      %p96 = por %p94, %p95
      %p97 = scmp.ne.s32.totalorder %s88, %s89
      %p98 = scmp.eq.s32.totalorder %s36, 0
      %p99 = por %p97, %p98
      %p100 = scmp.ne.s32.totalorder %s88, %s89
      %p101 = scmp.eq.s32.totalorder %s37, 1
      %p102 = por %p100, %p101
      %p104 = scmp.ne.s32.totalorder %s89, %s103
      %p105 = scmp.eq.s32.totalorder %s37, 0
      %p106 = por %p104, %p105
      %s108 = sadd.s32 %s107, 1
      %p111 = scmp.eq.s32.totalorder %s31, 1
      %p112 = scmp.ne.s32.totalorder %s107, %s109
      %p113 = scmp.eq.s32.totalorder %s31, 0
      %p114 = por %p112, %p113
      %p115 = scmp.ne.s32.totalorder %s107, %s109
      %p116 = scmp.eq.s32.totalorder %s36, 1
      %p117 = por %p115, %p116
      %p118 = scmp.ne.s32.totalorder %s109, %s110
      %p119 = scmp.eq.s32.totalorder %s36, 0
      %p120 = por %p118, %p119
      %p121 = scmp.ne.s32.totalorder %s109, %s110
      %p122 = scmp.eq.s32.totalorder %s37, 1
      %p123 = por %p121, %p122
      %p125 = scmp.ne.s32.totalorder %s110, %s124
      %p126 = scmp.eq.s32.totalorder %s37, 0
      %p127 = por %p125, %p126
      %s129 = sadd.s32 %s128, 1
      %p132 = scmp.eq.s32.totalorder %s31, 1
      %p133 = scmp.ne.s32.totalorder %s128, %s130
      %p134 = scmp.eq.s32.totalorder %s31, 0
      %p135 = por %p133, %p134
      %p136 = scmp.ne.s32.totalorder %s128, %s130
      %p137 = scmp.eq.s32.totalorder %s36, 1
      %p138 = por %p136, %p137
      %p139 = scmp.ne.s32.totalorder %s130, %s131
      %p140 = scmp.eq.s32.totalorder %s36, 0
      %p141 = por %p139, %p140
      %p142 = scmp.ne.s32.totalorder %s130, %s131
      %p143 = scmp.eq.s32.totalorder %s37, 1
      %p144 = por %p142, %p143
      %p146 = scmp.ne.s32.totalorder %s131, %s145
      %p147 = scmp.eq.s32.totalorder %s37, 0
      %p148 = por %p146, %p147
      %s150 = sadd.s32 %s149, 1
      %p153 = scmp.eq.s32.totalorder %s31, 1
      %p154 = scmp.ne.s32.totalorder %s149, %s151
      %p155 = scmp.eq.s32.totalorder %s31, 0
      %p156 = por %p154, %p155
      %p157 = scmp.ne.s32.totalorder %s149, %s151
      %p158 = scmp.eq.s32.totalorder %s36, 1
      %p159 = por %p157, %p158
      %p160 = scmp.ne.s32.totalorder %s151, %s152
      %p161 = scmp.eq.s32.totalorder %s36, 0
      %p162 = por %p160, %p161
      %p163 = scmp.ne.s32.totalorder %s151, %s152
      %p164 = scmp.eq.s32.totalorder %s37, 1
      %p165 = por %p163, %p164
      %p167 = scmp.ne.s32.totalorder %s152, %s166
      %p168 = scmp.eq.s32.totalorder %s37, 0
      %p169 = por %p167, %p168
      %s171 = sadd.s32 %s170, 1
      %p174 = scmp.eq.s32.totalorder %s31, 1
      %p175 = scmp.ne.s32.totalorder %s170, %s172
      %p176 = scmp.eq.s32.totalorder %s31, 0
      %p177 = por %p175, %p176
      %p178 = scmp.ne.s32.totalorder %s170, %s172
      %p179 = scmp.eq.s32.totalorder %s36, 1
      %p180 = por %p178, %p179
      %p181 = scmp.ne.s32.totalorder %s172, %s173
      %p182 = scmp.eq.s32.totalorder %s36, 0
      %p183 = por %p181, %p182
      %p184 = scmp.ne.s32.totalorder %s172, %s173
      %p185 = scmp.eq.s32.totalorder %s37, 1
      %p186 = por %p184, %p185
      %p188 = scmp.ne.s32.totalorder %s173, %s187
      %p189 = scmp.eq.s32.totalorder %s37, 0
      %p190 = por %p188, %p189
      %s192 = sadd.s32 %s191, 1
      %p195 = scmp.eq.s32.totalorder %s31, 1
      %p196 = scmp.ne.s32.totalorder %s191, %s193
      %p197 = scmp.eq.s32.totalorder %s31, 0
      %p198 = por %p196, %p197
      %p199 = scmp.ne.s32.totalorder %s191, %s193
      %p200 = scmp.eq.s32.totalorder %s36, 1
      %p201 = por %p199, %p200
      %p202 = scmp.ne.s32.totalorder %s193, %s194
      %p203 = scmp.eq.s32.totalorder %s36, 0
      %p204 = por %p202, %p203
      %p205 = scmp.ne.s32.totalorder %s193, %s194
      %p206 = scmp.eq.s32.totalorder %s37, 1
      %p207 = por %p205, %p206
      %p209 = scmp.ne.s32.totalorder %s194, %s208
      %p210 = scmp.eq.s32.totalorder %s37, 0
      %p211 = por %p209, %p210
      %s213 = sadd.s32 %s212, 1
      %p216 = scmp.eq.s32.totalorder %s31, 1
      %p217 = scmp.ne.s32.totalorder %s212, %s214
      %p218 = scmp.eq.s32.totalorder %s31, 0
      %p219 = por %p217, %p218
      %p220 = scmp.ne.s32.totalorder %s212, %s214
      %p221 = scmp.eq.s32.totalorder %s36, 1
      %p222 = por %p220, %p221
      %p223 = scmp.ne.s32.totalorder %s214, %s215
      %p224 = scmp.eq.s32.totalorder %s36, 0
      %p225 = por %p223, %p224
      %p226 = scmp.ne.s32.totalorder %s214, %s215
      %p227 = scmp.eq.s32.totalorder %s37, 1
      %p228 = por %p226, %p227
      %p230 = scmp.ne.s32.totalorder %s215, %s229
      %p231 = scmp.eq.s32.totalorder %s37, 0
      %p232 = por %p230, %p231
      %s234 = sadd.s32 %s233, 1
      %p237 = scmp.eq.s32.totalorder %s31, 1
      %p238 = scmp.ne.s32.totalorder %s233, %s235
      %p239 = scmp.eq.s32.totalorder %s31, 0
      %p240 = por %p238, %p239
      %p241 = scmp.ne.s32.totalorder %s233, %s235
      %p242 = scmp.eq.s32.totalorder %s36, 1
      %p243 = por %p241, %p242
      %p244 = scmp.ne.s32.totalorder %s235, %s236
      %p245 = scmp.eq.s32.totalorder %s36, 0
      %p246 = por %p244, %p245
      %p247 = scmp.ne.s32.totalorder %s235, %s236
      %p248 = scmp.eq.s32.totalorder %s37, 1
      %p249 = por %p247, %p248
      %p251 = scmp.ne.s32.totalorder %s236, %s250
      %p252 = scmp.eq.s32.totalorder %s37, 0
      %p253 = por %p251, %p252
      %s255 = sadd.s32 %s254, 1
      %p258 = scmp.eq.s32.totalorder %s31, 1
      %p259 = scmp.ne.s32.totalorder %s254, %s256
      %p260 = scmp.eq.s32.totalorder %s31, 0
      %p261 = por %p259, %p260
      %p262 = scmp.ne.s32.totalorder %s254, %s256
      %p263 = scmp.eq.s32.totalorder %s36, 1
      %p264 = por %p262, %p263
      %p265 = scmp.ne.s32.totalorder %s256, %s257
      %p266 = scmp.eq.s32.totalorder %s36, 0
      %p267 = por %p265, %p266
      %p268 = scmp.ne.s32.totalorder %s256, %s257
      %p269 = scmp.eq.s32.totalorder %s37, 1
      %p270 = por %p268, %p269
      %p272 = scmp.ne.s32.totalorder %s257, %s271
      %p273 = scmp.eq.s32.totalorder %s37, 0
      %p274 = por %p272, %p273
      %s276 = sadd.s32 %s275, 1
      %p279 = scmp.eq.s32.totalorder %s31, 1
      %p280 = scmp.ne.s32.totalorder %s275, %s277
      %p281 = scmp.eq.s32.totalorder %s31, 0
      %p282 = por %p280, %p281
      %p283 = scmp.ne.s32.totalorder %s275, %s277
      %p284 = scmp.eq.s32.totalorder %s36, 1
      %p285 = por %p283, %p284
      %p286 = scmp.ne.s32.totalorder %s277, %s278
      %p287 = scmp.eq.s32.totalorder %s36, 0
      %p288 = por %p286, %p287
      %p289 = scmp.ne.s32.totalorder %s277, %s278
      %p290 = scmp.eq.s32.totalorder %s37, 1
      %p291 = por %p289, %p290
      %p293 = scmp.ne.s32.totalorder %s278, %s292
      %p294 = scmp.eq.s32.totalorder %s37, 0
      %p295 = por %p293, %p294
      %s297 = sadd.s32 %s296, 1
      %p300 = scmp.eq.s32.totalorder %s31, 1
      %p301 = scmp.ne.s32.totalorder %s296, %s298
      %p302 = scmp.eq.s32.totalorder %s31, 0
      %p303 = por %p301, %p302
      %p304 = scmp.ne.s32.totalorder %s296, %s298
      %p305 = scmp.eq.s32.totalorder %s36, 1
      %p306 = por %p304, %p305
      %p307 = scmp.ne.s32.totalorder %s298, %s299
      %p308 = scmp.eq.s32.totalorder %s36, 0
      %p309 = por %p307, %p308
      %p310 = scmp.ne.s32.totalorder %s298, %s299
      %p311 = scmp.eq.s32.totalorder %s37, 1
      %p312 = por %p310, %p311
      %p314 = scmp.ne.s32.totalorder %s299, %s313
      %p315 = scmp.eq.s32.totalorder %s37, 0
      %p316 = por %p314, %p315
      %s317 = ssub.s32 %s31, %s38
      %p318 = scmp.eq.s32.totalorder %s317, 0
      %s320 = sadd.s32 %s319, 1
      %s321 = scalar_select %p318, %s319, %s320
      %p324 = pneg %p318
      %p325 = scmp.eq.s32.totalorder %s31, 1
      %p326 = por %p324, %p325
      %p327 = scmp.ne.s32.totalorder %s319, %s322
      %p328 = scmp.eq.s32.totalorder %s31, 0
      %p329 = por %p327, %p328
      %p330 = scmp.ne.s32.totalorder %s319, %s322
      %p331 = scmp.eq.s32.totalorder %s36, 1
      %p332 = por %p330, %p331
      %p333 = scmp.ne.s32.totalorder %s322, %s323
      %p334 = scmp.eq.s32.totalorder %s36, 0
      %p335 = por %p333, %p334
      %p336 = scmp.ne.s32.totalorder %s322, %s323
      %p337 = scmp.eq.s32.totalorder %s37, 1
      %p338 = por %p336, %p337
      %p340 = scmp.ne.s32.totalorder %s323, %s339
      %p341 = scmp.eq.s32.totalorder %s37, 0
      %p342 = por %p340, %p341
      %p343 = scmp.le.s32.totalorder 1, %s31
      %p344 = scmp.lt.s32.totalorder %s31, 3
      %p345 = pnand %p343, %p344
      %p346 = pneg %p345
      // Predicated region
      $region9: #{tpu_custom_call.1} parent=5 // pred_check
        _
      $region10: #{tpu_custom_call.1} parent=5 // pred_check_branch
        %348 = sbr.rel (%p345) target = $region12
      $region11: #{tpu_custom_call.1} parent=5 // pred_region
        %s349 = ssub.s32 %s31, 1
        // Predicated region
        $region13: #{tpu_custom_call.1} parent=11 // pred_check
          %p350 = pneg %p78
        $region14: #{tpu_custom_call.1} parent=11 // pred_check_branch
          %352 = sbr.rel (%p350) target = $region16
        $region15: #{tpu_custom_call.1} parent=11 // pred_region
          %s354 = ssub.s32 16, 16
          %355 = vsyncadd [#allocation6], %s354
          %s357 = sshll.u32 [#allocation5], 4
          %s358 = int_to_ptr.vmem [resolvable:$true] %s357
          %360 = dma.hbm_to_vmem [thread:$0]  %s1, 16, %s358, [#allocation6]
        $region16: #{tpu_custom_call.1} parent=11 // pred_fallthru
          _
        // Predicated region
        $region17: #{tpu_custom_call.1} parent=11 // pred_check
          %p361 = pneg %p99
        $region18: #{tpu_custom_call.1} parent=11 // pred_check_branch
          %363 = sbr.rel (%p361) target = $region20
        $region19: #{tpu_custom_call.1} parent=11 // pred_region
          %s365 = ssub.s32 16, 16
          %366 = vsyncadd [#allocation6], %s365
          %s368 = sshll.u32 [#allocation7], 4
          %s369 = int_to_ptr.vmem [resolvable:$true] %s368
          %371 = dma.hbm_to_vmem [thread:$0]  %s2, 16, %s369, [#allocation6]
        $region20: #{tpu_custom_call.1} parent=11 // pred_fallthru
          _
        // Predicated region
        $region21: #{tpu_custom_call.1} parent=11 // pred_check
          %p372 = pneg %p120
        $region22: #{tpu_custom_call.1} parent=11 // pred_check_branch
          %374 = sbr.rel (%p372) target = $region24
        $region23: #{tpu_custom_call.1} parent=11 // pred_region
          %s376 = ssub.s32 3072, 3072
          %377 = vsyncadd [#allocation9], %s376
          %s378 = sshll.u32 [#allocation8], 4
          %s379 = int_to_ptr.vmem [resolvable:$true] %s378
          %384 = dma.hbm_to_vmem [thread:$0]  %s3, 3072, %s379, [#allocation9], 192, 192, 12
        $region24: #{tpu_custom_call.1} parent=11 // pred_fallthru
          _
        // Predicated region
        $region25: #{tpu_custom_call.1} parent=11 // pred_check
          %p385 = pneg %p141
        $region26: #{tpu_custom_call.1} parent=11 // pred_check_branch
          %387 = sbr.rel (%p385) target = $region28
        $region27: #{tpu_custom_call.1} parent=11 // pred_region
          %s389 = ssub.s32 48, 48
          %390 = vsyncadd [#allocation9], %s389
          %s392 = sshll.u32 [#allocation10], 4
          %s393 = int_to_ptr.vmem [resolvable:$true] %s392
          %395 = dma.hbm_to_vmem [thread:$0]  %s4, 48, %s393, [#allocation9]
        $region28: #{tpu_custom_call.1} parent=11 // pred_fallthru
          _
        // Predicated region
        $region29: #{tpu_custom_call.1} parent=11 // pred_check
          %p396 = pneg %p162
        $region30: #{tpu_custom_call.1} parent=11 // pred_check_branch
          %398 = sbr.rel (%p396) target = $region32
        $region31: #{tpu_custom_call.1} parent=11 // pred_region
          %s400 = ssub.s32 1024, 1024
          %401 = vsyncadd [#allocation12], %s400
          %s402 = sshll.u32 [#allocation11], 4
          %s403 = int_to_ptr.vmem [resolvable:$true] %s402
          %408 = dma.hbm_to_vmem [thread:$0]  %s5, 1024, %s403, [#allocation12], 64, 64, 4
        $region32: #{tpu_custom_call.1} parent=11 // pred_fallthru
          _
        // Predicated region
        $region33: #{tpu_custom_call.1} parent=11 // pred_check
          %p409 = pneg %p183
        $region34: #{tpu_custom_call.1} parent=11 // pred_check_branch
          %411 = sbr.rel (%p409) target = $region36
        $region35: #{tpu_custom_call.1} parent=11 // pred_region
          %s413 = ssub.s32 16, 16
          %414 = vsyncadd [#allocation12], %s413
          %s416 = sshll.u32 [#allocation13], 4
          %s417 = int_to_ptr.vmem [resolvable:$true] %s416
          %419 = dma.hbm_to_vmem [thread:$0]  %s6, 16, %s417, [#allocation12]
        $region36: #{tpu_custom_call.1} parent=11 // pred_fallthru
          _
        // Predicated region
        $region37: #{tpu_custom_call.1} parent=11 // pred_check
          %p420 = pneg %p204
        $region38: #{tpu_custom_call.1} parent=11 // pred_check_branch
          %422 = sbr.rel (%p420) target = $region40
        $region39: #{tpu_custom_call.1} parent=11 // pred_region
          %s424 = ssub.s32 16, 16
          %425 = vsyncadd [#allocation15], %s424
          %s427 = sshll.u32 [#allocation14], 4
          %s428 = int_to_ptr.vmem [resolvable:$true] %s427
          %430 = dma.hbm_to_vmem [thread:$0]  %s7, 16, %s428, [#allocation15]
        $region40: #{tpu_custom_call.1} parent=11 // pred_fallthru
          _
        // Predicated region
        $region41: #{tpu_custom_call.1} parent=11 // pred_check
          %p431 = pneg %p225
        $region42: #{tpu_custom_call.1} parent=11 // pred_check_branch
          %433 = sbr.rel (%p431) target = $region44
        $region43: #{tpu_custom_call.1} parent=11 // pred_region
          %s435 = ssub.s32 16, 16
          %436 = vsyncadd [#allocation15], %s435
          %s438 = sshll.u32 [#allocation16], 4
          %s439 = int_to_ptr.vmem [resolvable:$true] %s438
          %441 = dma.hbm_to_vmem [thread:$0]  %s8, 16, %s439, [#allocation15]
        $region44: #{tpu_custom_call.1} parent=11 // pred_fallthru
          _
        // Predicated region
        $region45: #{tpu_custom_call.1} parent=11 // pred_check
          %p442 = pneg %p246
        $region46: #{tpu_custom_call.1} parent=11 // pred_check_branch
          %444 = sbr.rel (%p442) target = $region48
        $region47: #{tpu_custom_call.1} parent=11 // pred_region
          %s446 = ssub.s32 2048, 2048
          %447 = vsyncadd [#allocation18], %s446
          %s448 = sshll.u32 [#allocation17], 4
          %s449 = int_to_ptr.vmem [resolvable:$true] %s448
          %454 = dma.hbm_to_vmem [thread:$0]  %s9, 2048, %s449, [#allocation18], 128, 128, 8
        $region48: #{tpu_custom_call.1} parent=11 // pred_fallthru
          _
        // Predicated region
        $region49: #{tpu_custom_call.1} parent=11 // pred_check
          %p455 = pneg %p267
        $region50: #{tpu_custom_call.1} parent=11 // pred_check_branch
          %457 = sbr.rel (%p455) target = $region52
        $region51: #{tpu_custom_call.1} parent=11 // pred_region
          %s459 = ssub.s32 32, 32
          %460 = vsyncadd [#allocation18], %s459
          %s462 = sshll.u32 [#allocation19], 4
          %s463 = int_to_ptr.vmem [resolvable:$true] %s462
          %465 = dma.hbm_to_vmem [thread:$0]  %s10, 32, %s463, [#allocation18]
        $region52: #{tpu_custom_call.1} parent=11 // pred_fallthru
          _
        // Predicated region
        $region53: #{tpu_custom_call.1} parent=11 // pred_check
          %p466 = pneg %p288
        $region54: #{tpu_custom_call.1} parent=11 // pred_check_branch
          %468 = sbr.rel (%p466) target = $region56
        $region55: #{tpu_custom_call.1} parent=11 // pred_region
          %s470 = ssub.s32 2048, 2048
          %471 = vsyncadd [#allocation21], %s470
          %s472 = sshll.u32 [#allocation20], 4
          %s473 = int_to_ptr.vmem [resolvable:$true] %s472
          %478 = dma.hbm_to_vmem [thread:$0]  %s11, 2048, %s473, [#allocation21], 64, 64, 4
        $region56: #{tpu_custom_call.1} parent=11 // pred_fallthru
          _
        // Predicated region
        $region57: #{tpu_custom_call.1} parent=11 // pred_check
          %p479 = pneg %p309
        $region58: #{tpu_custom_call.1} parent=11 // pred_check_branch
          %481 = sbr.rel (%p479) target = $region60
        $region59: #{tpu_custom_call.1} parent=11 // pred_region
          %s483 = ssub.s32 16, 16
          %484 = vsyncadd [#allocation21], %s483
          %s486 = sshll.u32 [#allocation22], 4
          %s487 = int_to_ptr.vmem [resolvable:$true] %s486
          %489 = dma.hbm_to_vmem [thread:$0]  %s12, 16, %s487, [#allocation21]
        $region60: #{tpu_custom_call.1} parent=11 // pred_fallthru
          _
      $region12: #{tpu_custom_call.1} parent=5 // pred_fallthru
        _
      %p490 = scmp.lt.s32.totalorder %s31, 2
      // Predicated region
      $region61: #{tpu_custom_call.1} parent=5 // pred_check
        %p491 = pneg %p490
      $region62: #{tpu_custom_call.1} parent=5 // pred_check_branch
        %493 = sbr.rel (%p491) target = $region64
      $region63: #{tpu_custom_call.1} parent=5 // pred_region
        // Predicated region
        $region65: #{tpu_custom_call.1} parent=63 // pred_check
          %p494 = pneg %p51
        $region66: #{tpu_custom_call.1} parent=63 // pred_check_branch
          %496 = sbr.rel (%p494) target = $region68
        $region67: #{tpu_custom_call.1} parent=63 // pred_region
          %s497 = sand.u32 %s41, 1
          %s498 = scalar_lea.sflag [#allocation3], %s497
          %s499 = sand.u32 %s41, 1
          %s500 = smul.addr %s499, 128
          %s501 = scalar_lea.vmem [#allocation2], %s500
          %s503 = ssub.s32 2048, 2048
          %504 = vsyncadd %s498, %s503
          %s505 = smul.addr %s31, 16
          %s506 = smul.addr %s505, 128
          %s507 = scalar_lea.hbm %s0, %s506
          %s508 = sshll.u32 %s501, 4
          %s509 = int_to_ptr.vmem [resolvable:$true] %s508
          %514 = dma.hbm_to_vmem [thread:$0]  %s507, 2048, %s509, %s498, 128, 128, 8
        $region68: #{tpu_custom_call.1} parent=63 // pred_fallthru
          _
      $region64: #{tpu_custom_call.1} parent=5 // pred_fallthru
        _
      %p515 = scmp.le.s32.totalorder 1, %s31
      %p516 = scmp.lt.s32.totalorder %s31, 3
      %p517 = pnand %p515, %p516
      %p518 = pneg %p517
      // Predicated region
      $region69: #{tpu_custom_call.1} parent=5 // pred_check
        _
      $region70: #{tpu_custom_call.1} parent=5 // pred_check_branch
        %520 = sbr.rel (%p517) target = $region72
      $region71: #{tpu_custom_call.1} parent=5 // pred_region
        %s521 = ssub.s32 %s31, 1
        %s522 = sand.u32 %s44, 1
        %s523 = scalar_lea.sflag [#allocation3], %s522
        %s524 = sand.u32 %s44, 1
        %s525 = smul.addr %s524, 128
        %s526 = scalar_lea.vmem [#allocation2], %s525
        // Predicated region
        $region73: #{tpu_custom_call.1} parent=71 // pred_check
          %p527 = pneg %p57
        $region74: #{tpu_custom_call.1} parent=71 // pred_check_branch
          %529 = sbr.rel (%p527) target = $region76
        $region75: #{tpu_custom_call.1} parent=71 // pred_region
          %530 = dma.done %s523, 2048
        $region76: #{tpu_custom_call.1} parent=71 // pred_fallthru
          _
        // Predicated region
        $region77: #{tpu_custom_call.1} parent=71 // pred_check
          %p531 = pneg %p78
        $region78: #{tpu_custom_call.1} parent=71 // pred_check_branch
          %533 = sbr.rel (%p531) target = $region80
        $region79: #{tpu_custom_call.1} parent=71 // pred_region
          %534 = dma.done [#allocation6], 16
        $region80: #{tpu_custom_call.1} parent=71 // pred_fallthru
          _
        // Predicated region
        $region81: #{tpu_custom_call.1} parent=71 // pred_check
          %p535 = pneg %p99
        $region82: #{tpu_custom_call.1} parent=71 // pred_check_branch
          %537 = sbr.rel (%p535) target = $region84
        $region83: #{tpu_custom_call.1} parent=71 // pred_region
          %538 = dma.done [#allocation6], 16
        $region84: #{tpu_custom_call.1} parent=71 // pred_fallthru
          _
        // Predicated region
        $region85: #{tpu_custom_call.1} parent=71 // pred_check
          %p539 = pneg %p120
        $region86: #{tpu_custom_call.1} parent=71 // pred_check_branch
          %541 = sbr.rel (%p539) target = $region88
        $region87: #{tpu_custom_call.1} parent=71 // pred_region
          %542 = dma.done [#allocation9], 3072
        $region88: #{tpu_custom_call.1} parent=71 // pred_fallthru
          _
        // Predicated region
        $region89: #{tpu_custom_call.1} parent=71 // pred_check
          %p543 = pneg %p141
        $region90: #{tpu_custom_call.1} parent=71 // pred_check_branch
          %545 = sbr.rel (%p543) target = $region92
        $region91: #{tpu_custom_call.1} parent=71 // pred_region
          %546 = dma.done [#allocation9], 48
        $region92: #{tpu_custom_call.1} parent=71 // pred_fallthru
          _
        // Predicated region
        $region93: #{tpu_custom_call.1} parent=71 // pred_check
          %p547 = pneg %p162
        $region94: #{tpu_custom_call.1} parent=71 // pred_check_branch
          %549 = sbr.rel (%p547) target = $region96
        $region95: #{tpu_custom_call.1} parent=71 // pred_region
          %550 = dma.done [#allocation12], 1024
        $region96: #{tpu_custom_call.1} parent=71 // pred_fallthru
          _
        // Predicated region
        $region97: #{tpu_custom_call.1} parent=71 // pred_check
          %p551 = pneg %p183
        $region98: #{tpu_custom_call.1} parent=71 // pred_check_branch
          %553 = sbr.rel (%p551) target = $region100
        $region99: #{tpu_custom_call.1} parent=71 // pred_region
          %554 = dma.done [#allocation12], 16
        $region100: #{tpu_custom_call.1} parent=71 // pred_fallthru
          _
        // Predicated region
        $region101: #{tpu_custom_call.1} parent=71 // pred_check
          %p555 = pneg %p204
        $region102: #{tpu_custom_call.1} parent=71 // pred_check_branch
          %557 = sbr.rel (%p555) target = $region104
        $region103: #{tpu_custom_call.1} parent=71 // pred_region
          %558 = dma.done [#allocation15], 16
        $region104: #{tpu_custom_call.1} parent=71 // pred_fallthru
          _
        // Predicated region
        $region105: #{tpu_custom_call.1} parent=71 // pred_check
          %p559 = pneg %p225
        $region106: #{tpu_custom_call.1} parent=71 // pred_check_branch
          %561 = sbr.rel (%p559) target = $region108
        $region107: #{tpu_custom_call.1} parent=71 // pred_region
          %562 = dma.done [#allocation15], 16
        $region108: #{tpu_custom_call.1} parent=71 // pred_fallthru
          _
        // Predicated region
        $region109: #{tpu_custom_call.1} parent=71 // pred_check
          %p563 = pneg %p246
        $region110: #{tpu_custom_call.1} parent=71 // pred_check_branch
          %565 = sbr.rel (%p563) target = $region112
        $region111: #{tpu_custom_call.1} parent=71 // pred_region
          %566 = dma.done [#allocation18], 2048
        $region112: #{tpu_custom_call.1} parent=71 // pred_fallthru
          _
        // Predicated region
        $region113: #{tpu_custom_call.1} parent=71 // pred_check
          %p567 = pneg %p267
        $region114: #{tpu_custom_call.1} parent=71 // pred_check_branch
          %569 = sbr.rel (%p567) target = $region116
        $region115: #{tpu_custom_call.1} parent=71 // pred_region
          %570 = dma.done [#allocation18], 32
        $region116: #{tpu_custom_call.1} parent=71 // pred_fallthru
          _
        // Predicated region
        $region117: #{tpu_custom_call.1} parent=71 // pred_check
          %p571 = pneg %p288
        $region118: #{tpu_custom_call.1} parent=71 // pred_check_branch
          %573 = sbr.rel (%p571) target = $region120
        $region119: #{tpu_custom_call.1} parent=71 // pred_region
          %574 = dma.done [#allocation21], 2048
        $region120: #{tpu_custom_call.1} parent=71 // pred_fallthru
          _
        // Predicated region
        $region121: #{tpu_custom_call.1} parent=71 // pred_check
          %p575 = pneg %p309
        $region122: #{tpu_custom_call.1} parent=71 // pred_check_branch
          %577 = sbr.rel (%p575) target = $region124
        $region123: #{tpu_custom_call.1} parent=71 // pred_region
          %578 = dma.done [#allocation21], 16
        $region124: #{tpu_custom_call.1} parent=71 // pred_fallthru
          _
        %s579 = sand.u32 %s44, 1
        %s580 = scalar_lea.sflag [#allocation3], %s579
        %s581 = sand.u32 %s44, 1
        %s582 = smul.addr %s581, 128
        %s583 = scalar_lea.vmem [#allocation2], %s582
        %p584 = pneg %p57
        %p585 = pneg %p54
        %p586 = pneg %p78
        %p587 = pneg %p75
        %p588 = pneg %p99
        %p589 = pneg %p96
        %p590 = pneg %p120
        %p591 = pneg %p117
        %p592 = pneg %p141
        %p593 = pneg %p138
        %p594 = pneg %p162
        %p595 = pneg %p159
        %p596 = pneg %p183
        %p597 = pneg %p180
        %p598 = pneg %p204
        %p599 = pneg %p201
        %p600 = pneg %p225
        %p601 = pneg %p222
        %p602 = pneg %p246
        %p603 = pneg %p243
        %p604 = pneg %p267
        %p605 = pneg %p264
        %p606 = pneg %p288
        %p607 = pneg %p285
        %p608 = pneg %p309
        %p609 = pneg %p306
        %p610 = pneg %p335
        %p611 = pneg %p332
        %s612 = sand.u32 %s322, 1
        %s613 = scalar_lea.sflag [#allocation4], %s612
        %s614 = sand.u32 %s322, 1
        %s615 = smul.addr %s614, 128
        %s616 = scalar_lea.vmem [#allocation23], %s615
        %v618 = vld [vmem:[%s526] sm:$0xff]
        %v619 = vld [vmem:[%s526 + $0x8] sm:$0xff]
        %v620 = vld [vmem:[%s526 + $0x10] sm:$0xff]
        %v621 = vld [vmem:[%s526 + $0x18] sm:$0xff]
        %v622 = vld [vmem:[%s526 + $0x20] sm:$0xff]
        %v623 = vld [vmem:[%s526 + $0x28] sm:$0xff]
        %v624 = vld [vmem:[%s526 + $0x30] sm:$0xff]
        %v625 = vld [vmem:[%s526 + $0x38] sm:$0xff]
        %v626 = vld [vmem:[%s526 + $0x40] sm:$0xff]
        %v627 = vld [vmem:[%s526 + $0x48] sm:$0xff]
        %v628 = vld [vmem:[%s526 + $0x50] sm:$0xff]
        %v629 = vld [vmem:[%s526 + $0x58] sm:$0xff]
        %v630 = vld [vmem:[%s526 + $0x60] sm:$0xff]
        %v631 = vld [vmem:[%s526 + $0x68] sm:$0xff]
        %v632 = vld [vmem:[%s526 + $0x70] sm:$0xff]
        %v633 = vld [vmem:[%s526 + $0x78] sm:$0xff]
        %v634 = vld [vmem:[#allocation5] sm:$0x1]
        %v635 = vld [vmem:[#allocation7] sm:$0x1]
        %636 = vadd.xlane.f32.xlu0 %v618
        %v637 = vpop.xlane.xlu0 %636
        %638 = vadd.xlane.f32.xlu0 %v619
        %v639 = vpop.xlane.xlu0 %638
        %640 = vadd.xlane.f32.xlu0 %v620
        %v641 = vpop.xlane.xlu0 %640
        %642 = vadd.xlane.f32.xlu0 %v621
        %v643 = vpop.xlane.xlu0 %642
        %644 = vadd.xlane.f32.xlu0 %v622
        %v645 = vpop.xlane.xlu0 %644
        %646 = vadd.xlane.f32.xlu0 %v623
        %v647 = vpop.xlane.xlu0 %646
        %648 = vadd.xlane.f32.xlu0 %v624
        %v649 = vpop.xlane.xlu0 %648
        %650 = vadd.xlane.f32.xlu0 %v625
        %v651 = vpop.xlane.xlu0 %650
        %652 = vadd.xlane.f32.xlu0 %v626
        %v653 = vpop.xlane.xlu0 %652
        %654 = vadd.xlane.f32.xlu0 %v627
        %v655 = vpop.xlane.xlu0 %654
        %656 = vadd.xlane.f32.xlu0 %v628
        %v657 = vpop.xlane.xlu0 %656
        %658 = vadd.xlane.f32.xlu0 %v629
        %v659 = vpop.xlane.xlu0 %658
        %660 = vadd.xlane.f32.xlu0 %v630
        %v661 = vpop.xlane.xlu0 %660
        %662 = vadd.xlane.f32.xlu0 %v631
        %v663 = vpop.xlane.xlu0 %662
        %664 = vadd.xlane.f32.xlu0 %v632
        %v665 = vpop.xlane.xlu0 %664
        %666 = vadd.xlane.f32.xlu0 %v633
        %v667 = vpop.xlane.xlu0 %666
        %v668 = vrcp.pop 128.0
        %v669 = vmul.f32 %v637, %v668
        %v670 = vmul.f32 %v639, %v668
        %v671 = vmul.f32 %v641, %v668
        %v672 = vmul.f32 %v643, %v668
        %v673 = vmul.f32 %v645, %v668
        %v674 = vmul.f32 %v647, %v668
        %v675 = vmul.f32 %v649, %v668
        %v676 = vmul.f32 %v651, %v668
        %v677 = vmul.f32 %v653, %v668
        %v678 = vmul.f32 %v655, %v668
        %v679 = vmul.f32 %v657, %v668
        %v680 = vmul.f32 %v659, %v668
        %v681 = vmul.f32 %v661, %v668
        %v682 = vmul.f32 %v663, %v668
        %v683 = vmul.f32 %v665, %v668
        %v684 = vmul.f32 %v667, %v668
        %v685 = vsub.f32 %v618, %v669
        %v686 = vsub.f32 %v619, %v670
        %v687 = vsub.f32 %v620, %v671
        %v688 = vsub.f32 %v621, %v672
        %v689 = vsub.f32 %v622, %v673
        %v690 = vsub.f32 %v623, %v674
        %v691 = vsub.f32 %v624, %v675
        %v692 = vsub.f32 %v625, %v676
        %v693 = vsub.f32 %v626, %v677
        %v694 = vsub.f32 %v627, %v678
        %v695 = vsub.f32 %v628, %v679
        %v696 = vsub.f32 %v629, %v680
        %v697 = vsub.f32 %v630, %v681
        %v698 = vsub.f32 %v631, %v682
        %v699 = vsub.f32 %v632, %v683
        %v700 = vsub.f32 %v633, %v684
        %v701 = vmul.f32 %v685, %v685
        %v702 = vmul.f32 %v686, %v686
        %v703 = vmul.f32 %v687, %v687
        %v704 = vmul.f32 %v688, %v688
        %v705 = vmul.f32 %v689, %v689
        %v706 = vmul.f32 %v690, %v690
        %v707 = vmul.f32 %v691, %v691
        %v708 = vmul.f32 %v692, %v692
        %v709 = vmul.f32 %v693, %v693
        %v710 = vmul.f32 %v694, %v694
        %v711 = vmul.f32 %v695, %v695
        %v712 = vmul.f32 %v696, %v696
        %v713 = vmul.f32 %v697, %v697
        %v714 = vmul.f32 %v698, %v698
        %v715 = vmul.f32 %v699, %v699
        %v716 = vmul.f32 %v700, %v700
        %717 = vadd.xlane.f32.xlu0 %v701
        %v718 = vpop.xlane.xlu0 %717
        %719 = vadd.xlane.f32.xlu0 %v702
        %v720 = vpop.xlane.xlu0 %719
        %721 = vadd.xlane.f32.xlu0 %v703
        %v722 = vpop.xlane.xlu0 %721
        %723 = vadd.xlane.f32.xlu0 %v704
        %v724 = vpop.xlane.xlu0 %723
        %725 = vadd.xlane.f32.xlu0 %v705
        %v726 = vpop.xlane.xlu0 %725
        %727 = vadd.xlane.f32.xlu0 %v706
        %v728 = vpop.xlane.xlu0 %727
        %729 = vadd.xlane.f32.xlu0 %v707
        %v730 = vpop.xlane.xlu0 %729
        %731 = vadd.xlane.f32.xlu0 %v708
        %v732 = vpop.xlane.xlu0 %731
        %733 = vadd.xlane.f32.xlu0 %v709
        %v734 = vpop.xlane.xlu0 %733
        %735 = vadd.xlane.f32.xlu0 %v710
        %v736 = vpop.xlane.xlu0 %735
        %737 = vadd.xlane.f32.xlu0 %v711
        %v738 = vpop.xlane.xlu0 %737
        %739 = vadd.xlane.f32.xlu0 %v712
        %v740 = vpop.xlane.xlu0 %739
        %741 = vadd.xlane.f32.xlu0 %v713
        %v742 = vpop.xlane.xlu0 %741
        %743 = vadd.xlane.f32.xlu0 %v714
        %v744 = vpop.xlane.xlu0 %743
        %745 = vadd.xlane.f32.xlu0 %v715
        %v746 = vpop.xlane.xlu0 %745
        %747 = vadd.xlane.f32.xlu0 %v716
        %v748 = vpop.xlane.xlu0 %747
        %v749 = vmul.f32 %v718, %v668
        %v750 = vmul.f32 %v720, %v668
        %v751 = vmul.f32 %v722, %v668
        %v752 = vmul.f32 %v724, %v668
        %v753 = vmul.f32 %v726, %v668
        %v754 = vmul.f32 %v728, %v668
        %v755 = vmul.f32 %v730, %v668
        %v756 = vmul.f32 %v732, %v668
        %v757 = vmul.f32 %v734, %v668
        %v758 = vmul.f32 %v736, %v668
        %v759 = vmul.f32 %v738, %v668
        %v760 = vmul.f32 %v740, %v668
        %v761 = vmul.f32 %v742, %v668
        %v762 = vmul.f32 %v744, %v668
        %v763 = vmul.f32 %v746, %v668
        %v764 = vmul.f32 %v748, %v668
        %v765 = vadd.f32 %v749, 1e-05
        %v766 = vadd.f32 %v750, 1e-05
        %v767 = vadd.f32 %v751, 1e-05
        %v768 = vadd.f32 %v752, 1e-05
        %v769 = vadd.f32 %v753, 1e-05
        %v770 = vadd.f32 %v754, 1e-05
        %v771 = vadd.f32 %v755, 1e-05
        %v772 = vadd.f32 %v756, 1e-05
        %v773 = vadd.f32 %v757, 1e-05
        %v774 = vadd.f32 %v758, 1e-05
        %v775 = vadd.f32 %v759, 1e-05
        %v776 = vadd.f32 %v760, 1e-05
        %v777 = vadd.f32 %v761, 1e-05
        %v778 = vadd.f32 %v762, 1e-05
        %v779 = vadd.f32 %v763, 1e-05
        %v780 = vadd.f32 %v764, 1e-05
        %v781 = vrsqrt.pop %v765
        %v782 = vrsqrt.pop %v766
        %v783 = vrsqrt.pop %v767
        %v784 = vrsqrt.pop %v768
        %v785 = vrsqrt.pop %v769
        %v786 = vrsqrt.pop %v770
        %v787 = vrsqrt.pop %v771
        %v788 = vrsqrt.pop %v772
        %v789 = vrsqrt.pop %v773
        %v790 = vrsqrt.pop %v774
        %v791 = vrsqrt.pop %v775
        %v792 = vrsqrt.pop %v776
        %v793 = vrsqrt.pop %v777
        %v794 = vrsqrt.pop %v778
        %v795 = vrsqrt.pop %v779
        %v796 = vrsqrt.pop %v780
        %v797 = vmul.f32 %v685, %v781
        %v798 = vmul.f32 %v686, %v782
        %v799 = vmul.f32 %v687, %v783
        %v800 = vmul.f32 %v688, %v784
        %v801 = vmul.f32 %v689, %v785
        %v802 = vmul.f32 %v690, %v786
        %v803 = vmul.f32 %v691, %v787
        %v804 = vmul.f32 %v692, %v788
        %v805 = vmul.f32 %v693, %v789
        %v806 = vmul.f32 %v694, %v790
        %v807 = vmul.f32 %v695, %v791
        %v808 = vmul.f32 %v696, %v792
        %v809 = vmul.f32 %v697, %v793
        %v810 = vmul.f32 %v698, %v794
        %v811 = vmul.f32 %v699, %v795
        %v812 = vmul.f32 %v700, %v796
        %v814 = vlaneseq
        %v815 = vshrl.u32 %v814, 7
        %v816 = vsub.s32 0, %v815
        %v817 = vrot.slane %v634, %v816
        %v819 = vmul.f32 %v797, %v817
        %v820 = vmul.f32 %v798, %v817
        %v821 = vmul.f32 %v799, %v817
        %v822 = vmul.f32 %v800, %v817
        %v823 = vmul.f32 %v801, %v817
        %v824 = vmul.f32 %v802, %v817
        %v825 = vmul.f32 %v803, %v817
        %v826 = vmul.f32 %v804, %v817
        %v827 = vmul.f32 %v805, %v817
        %v828 = vmul.f32 %v806, %v817
        %v829 = vmul.f32 %v807, %v817
        %v830 = vmul.f32 %v808, %v817
        %v831 = vmul.f32 %v809, %v817
        %v832 = vmul.f32 %v810, %v817
        %v833 = vmul.f32 %v811, %v817
        %v834 = vmul.f32 %v812, %v817
        %v836 = vlaneseq
        %v837 = vshrl.u32 %v836, 7
        %v838 = vsub.s32 0, %v837
        %v839 = vrot.slane %v635, %v838
        %v841 = vadd.f32 %v819, %v839
        %v842 = vadd.f32 %v820, %v839
        %v843 = vadd.f32 %v821, %v839
        %v844 = vadd.f32 %v822, %v839
        %v845 = vadd.f32 %v823, %v839
        %v846 = vadd.f32 %v824, %v839
        %v847 = vadd.f32 %v825, %v839
        %v848 = vadd.f32 %v826, %v839
        %v849 = vadd.f32 %v827, %v839
        %v850 = vadd.f32 %v828, %v839
        %v851 = vadd.f32 %v829, %v839
        %v852 = vadd.f32 %v830, %v839
        %v853 = vadd.f32 %v831, %v839
        %v854 = vadd.f32 %v832, %v839
        %v855 = vadd.f32 %v833, %v839
        %v856 = vadd.f32 %v834, %v839
        %v857 = vpack.c.bf16 %v842, %v841
        %v858 = vpack.c.bf16 %v844, %v843
        %v859 = vpack.c.bf16 %v846, %v845
        %v860 = vpack.c.bf16 %v848, %v847
        %v861 = vpack.c.bf16 %v850, %v849
        %v862 = vpack.c.bf16 %v852, %v851
        %v863 = vpack.c.bf16 %v854, %v853
        %v864 = vpack.c.bf16 %v856, %v855
        %v865 = vld [vmem:[#allocation8] sm:$0xff]
        %v866 = vld [vmem:[#allocation8 + $0x8] sm:$0xf]
        %v867 = vld [vmem:[#allocation8 + $0xc] sm:$0xff]
        %v868 = vld [vmem:[#allocation8 + $0x14] sm:$0xf]
        %v869 = vld [vmem:[#allocation8 + $0x18] sm:$0xff]
        %v870 = vld [vmem:[#allocation8 + $0x20] sm:$0xf]
        %v871 = vld [vmem:[#allocation8 + $0x24] sm:$0xff]
        %v872 = vld [vmem:[#allocation8 + $0x2c] sm:$0xf]
        %v873 = vld [vmem:[#allocation8 + $0x30] sm:$0xff]
        %v874 = vld [vmem:[#allocation8 + $0x38] sm:$0xf]
        %v875 = vld [vmem:[#allocation8 + $0x3c] sm:$0xff]
        %v876 = vld [vmem:[#allocation8 + $0x44] sm:$0xf]
        %v877 = vld [vmem:[#allocation8 + $0x48] sm:$0xff]
        %v878 = vld [vmem:[#allocation8 + $0x50] sm:$0xf]
        %v879 = vld [vmem:[#allocation8 + $0x54] sm:$0xff]
        %v880 = vld [vmem:[#allocation8 + $0x5c] sm:$0xf]
        %v881 = vld [vmem:[#allocation8 + $0x60] sm:$0xff]
        %v882 = vld [vmem:[#allocation8 + $0x68] sm:$0xf]
        %v883 = vld [vmem:[#allocation8 + $0x6c] sm:$0xff]
        %v884 = vld [vmem:[#allocation8 + $0x74] sm:$0xf]
        %v885 = vld [vmem:[#allocation8 + $0x78] sm:$0xff]
        %v886 = vld [vmem:[#allocation8 + $0x80] sm:$0xf]
        %v887 = vld [vmem:[#allocation8 + $0x84] sm:$0xff]
        %v888 = vld [vmem:[#allocation8 + $0x8c] sm:$0xf]
        %v889 = vld [vmem:[#allocation8 + $0x90] sm:$0xff]
        %v890 = vld [vmem:[#allocation8 + $0x98] sm:$0xf]
        %v891 = vld [vmem:[#allocation8 + $0x9c] sm:$0xff]
        %v892 = vld [vmem:[#allocation8 + $0xa4] sm:$0xf]
        %v893 = vld [vmem:[#allocation8 + $0xa8] sm:$0xff]
        %v894 = vld [vmem:[#allocation8 + $0xb0] sm:$0xf]
        %v895 = vld [vmem:[#allocation8 + $0xb4] sm:$0xff]
        %v896 = vld [vmem:[#allocation8 + $0xbc] sm:$0xf]
        %v897 = vld [vmem:[#allocation10] sm:$0x7]
        %v899 = vlaneseq
        %v900 = vshrl.u32 %v899, 7
        %v901 = vsub.s32 0, %v900
        %v902 = vrot.slane %v897, %v901
        %v903 = vlaneseq
        %v904 = vshrl.u32 %v903, 7
        %v905 = vsub.s32 1, %v904
        %v906 = vrot.slane %v897, %v905
        %v907 = vlaneseq
        %v908 = vshrl.u32 %v907, 7
        %v909 = vsub.s32 2, %v908
        %v910 = vrot.slane %v897, %v909
        %v946 = vunpack.c.l.b16 %v865
        %v947 = vunpack.c.h.b16 %v865
        %v948 = vunpack.c.l.b16 %v866
        %v949 = vunpack.c.l.b16 %v867
        %v950 = vunpack.c.h.b16 %v867
        %v951 = vunpack.c.l.b16 %v868
        %v952 = vunpack.c.l.b16 %v869
        %v953 = vunpack.c.h.b16 %v869
        %v954 = vunpack.c.l.b16 %v870
        %v955 = vunpack.c.l.b16 %v871
        %v956 = vunpack.c.h.b16 %v871
        %v957 = vunpack.c.l.b16 %v872
        %v958 = vunpack.c.l.b16 %v873
        %v959 = vunpack.c.h.b16 %v873
        %v960 = vunpack.c.l.b16 %v874
        %v961 = vunpack.c.l.b16 %v875
        %v962 = vunpack.c.h.b16 %v875
        %v963 = vunpack.c.l.b16 %v876
        %v964 = vunpack.c.l.b16 %v877
        %v965 = vunpack.c.h.b16 %v877
        %v966 = vunpack.c.l.b16 %v878
        %v967 = vunpack.c.l.b16 %v879
        %v968 = vunpack.c.h.b16 %v879
        %v969 = vunpack.c.l.b16 %v880
        %v970 = vunpack.c.l.b16 %v881
        %v971 = vunpack.c.h.b16 %v881
        %v972 = vunpack.c.l.b16 %v882
        %v973 = vunpack.c.l.b16 %v883
        %v974 = vunpack.c.h.b16 %v883
        %v975 = vunpack.c.l.b16 %v884
        %v976 = vunpack.c.l.b16 %v885
        %v977 = vunpack.c.h.b16 %v885
        %v978 = vunpack.c.l.b16 %v886
        %v979 = vunpack.c.l.b16 %v887
        %v980 = vunpack.c.h.b16 %v887
        %v981 = vunpack.c.l.b16 %v888
        %v982 = vunpack.c.l.b16 %v889
        %v983 = vunpack.c.h.b16 %v889
        %v984 = vunpack.c.l.b16 %v890
        %v985 = vunpack.c.l.b16 %v891
        %v986 = vunpack.c.h.b16 %v891
        %v987 = vunpack.c.l.b16 %v892
        %v988 = vunpack.c.l.b16 %v893
        %v989 = vunpack.c.h.b16 %v893
        %v990 = vunpack.c.l.b16 %v894
        %v991 = vunpack.c.l.b16 %v895
        %v992 = vunpack.c.h.b16 %v895
        %v993 = vunpack.c.l.b16 %v896
        %v994 = vpack.c.b16 %v949, %v946
        %v995 = vpack.c.b16 %v950, %v947
        %v996 = vpack.c.b16 %v951, %v948
        %v997 = vpack.c.b16 %v955, %v952
        %v998 = vpack.c.b16 %v956, %v953
        %v999 = vpack.c.b16 %v957, %v954
        %v1000 = vpack.c.b16 %v961, %v958
        %v1001 = vpack.c.b16 %v962, %v959
        %v1002 = vpack.c.b16 %v963, %v960
        %v1003 = vpack.c.b16 %v967, %v964
        %v1004 = vpack.c.b16 %v968, %v965
        %v1005 = vpack.c.b16 %v969, %v966
        %v1006 = vpack.c.b16 %v973, %v970
        %v1007 = vpack.c.b16 %v974, %v971
        %v1008 = vpack.c.b16 %v975, %v972
        %v1009 = vpack.c.b16 %v979, %v976
        %v1010 = vpack.c.b16 %v980, %v977
        %v1011 = vpack.c.b16 %v981, %v978
        %v1012 = vpack.c.b16 %v985, %v982
        %v1013 = vpack.c.b16 %v986, %v983
        %v1014 = vpack.c.b16 %v987, %v984
        %v1015 = vpack.c.b16 %v991, %v988
        %v1016 = vpack.c.b16 %v992, %v989
        %v1017 = vpack.c.b16 %v993, %v990
        %1042 = vmatprep.subr.bf16.mxu0 %v995
        %1043 = vmatpush1.bf16.msra.mxu0 %v994
        %1044 = vmatprep.subr.bf16.mxu0 %v998
        %1045 = vmatpush1.bf16.msra.mxu0 %v997
        %1046 = vmatprep.subr.bf16.mxu0 %v1001
        %1047 = vmatpush1.bf16.msra.mxu0 %v1000
        %1048 = vmatprep.subr.bf16.mxu0 %v1004
        %1049 = vmatpush1.bf16.msra.mxu0 %v1003
        %1050 = vmatprep.subr.bf16.mxu0 %v1007
        %1051 = vmatpush1.bf16.msra.mxu0 %v1006
        %1052 = vmatprep.subr.bf16.mxu0 %v1010
        %1053 = vmatpush1.bf16.msra.mxu0 %v1009
        %1054 = vmatprep.subr.bf16.mxu0 %v1013
        %1055 = vmatpush1.bf16.msra.mxu0 %v1012
        %1056 = vmatprep.subr.bf16.mxu0 %v1016
        %1057 = vmatpush1.bf16.msra.mxu0 %v1015
        %1058 = vmatprep.subr.bf16.mxu0 0
        %1059 = vmatpush1.bf16.msra.mxu0 0
        %1060 = vmatprep.subr.bf16.mxu0 0
        %1061 = vmatpush1.bf16.msra.mxu0 0
        %1062 = vmatprep.subr.bf16.mxu0 0
        %1063 = vmatpush1.bf16.msra.mxu0 0
        %1064 = vmatprep.subr.bf16.mxu0 0
        %1065 = vmatpush1.bf16.msra.mxu0 0
        %1066 = vmatprep.subr.bf16.mxu0 0
        %1067 = vmatpush1.bf16.msra.mxu0 0
        %1068 = vmatprep.subr.bf16.mxu0 0
        %1069 = vmatpush1.bf16.msra.mxu0 0
        %1070 = vmatprep.subr.bf16.mxu0 0
        %1071 = vmatpush1.bf16.msra.mxu0 0
        %1072 = vmatprep.subr.bf16.mxu0 0
        %1073 = vmatpush1.bf16.msra.mxu0 0
        %1074 = vmatprep.mubr.bf16.mxu0 0
        %1075 = vmatmul.mubr.bf16.gmra.mrb[0].mxu0 %v857
        %v1076 = vpop.f32.mrb[0].mxu0
        %v1077 = vadd.f32 %v902, %v1076
        %v1078 = vpop.f32.mrb[0].mxu0
        %v1079 = vadd.f32 %v906, %v1078
        %v1080 = vpop.f32.mrb[0].mxu0
        %v1081 = vadd.f32 %v902, %v1080
        %v1082 = vpop.f32.mrb[0].mxu0
        %v1083 = vadd.f32 %v906, %v1082
        %1084 = vmatprep.mubr.bf16.mxu0 0
        %1085 = vmatmul.mubr.bf16.gmra.mrb[0].mxu0 %v858
        %v1086 = vpop.f32.mrb[0].mxu0
        %v1087 = vadd.f32 %v902, %v1086
        %v1088 = vpop.f32.mrb[0].mxu0
        %v1089 = vadd.f32 %v906, %v1088
        %v1090 = vpop.f32.mrb[0].mxu0
        %v1091 = vadd.f32 %v902, %v1090
        %v1092 = vpop.f32.mrb[0].mxu0
        %v1093 = vadd.f32 %v906, %v1092
        %1094 = vmatprep.mubr.bf16.mxu0 0
        %1095 = vmatmul.mubr.bf16.gmra.mrb[0].mxu0 %v859
        %v1096 = vpop.f32.mrb[0].mxu0
        %v1097 = vadd.f32 %v902, %v1096
        %v1098 = vpop.f32.mrb[0].mxu0
        %v1099 = vadd.f32 %v906, %v1098
        %v1100 = vpop.f32.mrb[0].mxu0
        %v1101 = vadd.f32 %v902, %v1100
        %v1102 = vpop.f32.mrb[0].mxu0
        %v1103 = vadd.f32 %v906, %v1102
        %1104 = vmatprep.mubr.bf16.mxu0 0
        %1105 = vmatmul.mubr.bf16.gmra.mrb[0].mxu0 %v860
        %v1106 = vpop.f32.mrb[0].mxu0
        %v1107 = vadd.f32 %v902, %v1106
        %v1108 = vpop.f32.mrb[0].mxu0
        %v1109 = vadd.f32 %v906, %v1108
        %v1110 = vpop.f32.mrb[0].mxu0
        %v1111 = vadd.f32 %v902, %v1110
        %v1112 = vpop.f32.mrb[0].mxu0
        %v1113 = vadd.f32 %v906, %v1112
        %1114 = vmatprep.mubr.bf16.mxu0 0
        %1115 = vmatmul.mubr.bf16.gmra.mrb[0].mxu0 %v861
        %v1116 = vpop.f32.mrb[0].mxu0
        %v1117 = vadd.f32 %v902, %v1116
        %v1118 = vpop.f32.mrb[0].mxu0
        %v1119 = vadd.f32 %v906, %v1118
        %v1120 = vpop.f32.mrb[0].mxu0
        %v1121 = vadd.f32 %v902, %v1120
        %v1122 = vpop.f32.mrb[0].mxu0
        %v1123 = vadd.f32 %v906, %v1122
        %1124 = vmatprep.mubr.bf16.mxu0 0
        %1125 = vmatmul.mubr.bf16.gmra.mrb[0].mxu0 %v862
        %v1126 = vpop.f32.mrb[0].mxu0
        %v1127 = vadd.f32 %v902, %v1126
        %v1128 = vpop.f32.mrb[0].mxu0
        %v1129 = vadd.f32 %v906, %v1128
        %v1130 = vpop.f32.mrb[0].mxu0
        %v1131 = vadd.f32 %v902, %v1130
        %v1132 = vpop.f32.mrb[0].mxu0
        %v1133 = vadd.f32 %v906, %v1132
        %1134 = vmatprep.mubr.bf16.mxu0 0
        %1135 = vmatmul.mubr.bf16.gmra.mrb[0].mxu0 %v863
        %v1136 = vpop.f32.mrb[0].mxu0
        %v1137 = vadd.f32 %v902, %v1136
        %v1138 = vpop.f32.mrb[0].mxu0
        %v1139 = vadd.f32 %v906, %v1138
        %v1140 = vpop.f32.mrb[0].mxu0
        %v1141 = vadd.f32 %v902, %v1140
        %v1142 = vpop.f32.mrb[0].mxu0
        %v1143 = vadd.f32 %v906, %v1142
        %1144 = vmatprep.mubr.bf16.mxu0 0
        %1145 = vmatmul.mubr.bf16.gmra.mrb[0].mxu0 %v864
        %v1146 = vpop.f32.mrb[0].mxu0
        %v1147 = vadd.f32 %v902, %v1146
        %v1148 = vpop.f32.mrb[0].mxu0
        %v1149 = vadd.f32 %v906, %v1148
        %v1150 = vpop.f32.mrb[0].mxu0
        %v1151 = vadd.f32 %v902, %v1150
        %v1152 = vpop.f32.mrb[0].mxu0
        %v1153 = vadd.f32 %v906, %v1152
        %1154 = vdwg.mxu0
        %1155 = vmatprep.subr.bf16.mxu0 0
        %1156 = vmatpush1.bf16.msra.mxu0 %v996
        %1157 = vmatprep.subr.bf16.mxu0 0
        %1158 = vmatpush1.bf16.msra.mxu0 %v999
        %1159 = vmatprep.subr.bf16.mxu0 0
        %1160 = vmatpush1.bf16.msra.mxu0 %v1002
        %1161 = vmatprep.subr.bf16.mxu0 0
        %1162 = vmatpush1.bf16.msra.mxu0 %v1005
        %1163 = vmatprep.subr.bf16.mxu0 0
        %1164 = vmatpush1.bf16.msra.mxu0 %v1008
        %1165 = vmatprep.subr.bf16.mxu0 0
        %1166 = vmatpush1.bf16.msra.mxu0 %v1011
        %1167 = vmatprep.subr.bf16.mxu0 0
        %1168 = vmatpush1.bf16.msra.mxu0 %v1014
        %1169 = vmatprep.subr.bf16.mxu0 0
        %1170 = vmatpush1.bf16.msra.mxu0 %v1017
        %1171 = vmatprep.subr.bf16.mxu0 0
        %1172 = vmatpush1.bf16.msra.mxu0 0
        %1173 = vmatprep.subr.bf16.mxu0 0
        %1174 = vmatpush1.bf16.msra.mxu0 0
        %1175 = vmatprep.subr.bf16.mxu0 0
        %1176 = vmatpush1.bf16.msra.mxu0 0
        %1177 = vmatprep.subr.bf16.mxu0 0
        %1178 = vmatpush1.bf16.msra.mxu0 0
        %1179 = vmatprep.subr.bf16.mxu0 0
        %1180 = vmatpush1.bf16.msra.mxu0 0
        %1181 = vmatprep.subr.bf16.mxu0 0
        %1182 = vmatpush1.bf16.msra.mxu0 0
        %1183 = vmatprep.subr.bf16.mxu0 0
        %1184 = vmatpush1.bf16.msra.mxu0 0
        %1185 = vmatprep.subr.bf16.mxu0 0
        %1186 = vmatpush1.bf16.msra.mxu0 0
        %1187 = vmatprep.mubr.bf16.mxu0 0
        %1188 = vmatmul.mubr.bf16.gmra.mrb[0].mxu0 %v857
        %v1189 = vpop.f32.mrb[0].mxu0
        %v1190 = vadd.f32 %v910, %v1189
        %v1191 = vpop.f32.mrb[0].mxu0
        %v1192 = vpop.f32.mrb[0].mxu0
        %v1193 = vadd.f32 %v910, %v1192
        %v1194 = vpop.f32.mrb[0].mxu0
        %1195 = vmatprep.mubr.bf16.mxu0 0
        %1196 = vmatmul.mubr.bf16.gmra.mrb[0].mxu0 %v858
        %v1197 = vpop.f32.mrb[0].mxu0
        %v1198 = vadd.f32 %v910, %v1197
        %v1199 = vpop.f32.mrb[0].mxu0
        %v1200 = vpop.f32.mrb[0].mxu0
        %v1201 = vadd.f32 %v910, %v1200
        %v1202 = vpop.f32.mrb[0].mxu0
        %1203 = vmatprep.mubr.bf16.mxu0 0
        %1204 = vmatmul.mubr.bf16.gmra.mrb[0].mxu0 %v859
        %v1205 = vpop.f32.mrb[0].mxu0
        %v1206 = vadd.f32 %v910, %v1205
        %v1207 = vpop.f32.mrb[0].mxu0
        %v1208 = vpop.f32.mrb[0].mxu0
        %v1209 = vadd.f32 %v910, %v1208
        %v1210 = vpop.f32.mrb[0].mxu0
        %1211 = vmatprep.mubr.bf16.mxu0 0
        %1212 = vmatmul.mubr.bf16.gmra.mrb[0].mxu0 %v860
        %v1213 = vpop.f32.mrb[0].mxu0
        %v1214 = vadd.f32 %v910, %v1213
        %v1215 = vpop.f32.mrb[0].mxu0
        %v1216 = vpop.f32.mrb[0].mxu0
        %v1217 = vadd.f32 %v910, %v1216
        %v1218 = vpop.f32.mrb[0].mxu0
        %1219 = vmatprep.mubr.bf16.mxu0 0
        %1220 = vmatmul.mubr.bf16.gmra.mrb[0].mxu0 %v861
        %v1221 = vpop.f32.mrb[0].mxu0
        %v1222 = vadd.f32 %v910, %v1221
        %v1223 = vpop.f32.mrb[0].mxu0
        %v1224 = vpop.f32.mrb[0].mxu0
        %v1225 = vadd.f32 %v910, %v1224
        %v1226 = vpop.f32.mrb[0].mxu0
        %1227 = vmatprep.mubr.bf16.mxu0 0
        %1228 = vmatmul.mubr.bf16.gmra.mrb[0].mxu0 %v862
        %v1229 = vpop.f32.mrb[0].mxu0
        %v1230 = vadd.f32 %v910, %v1229
        %v1231 = vpop.f32.mrb[0].mxu0
        %v1232 = vpop.f32.mrb[0].mxu0
        %v1233 = vadd.f32 %v910, %v1232
        %v1234 = vpop.f32.mrb[0].mxu0
        %1235 = vmatprep.mubr.bf16.mxu0 0
        %1236 = vmatmul.mubr.bf16.gmra.mrb[0].mxu0 %v863
        %v1237 = vpop.f32.mrb[0].mxu0
        %v1238 = vadd.f32 %v910, %v1237
        %v1239 = vpop.f32.mrb[0].mxu0
        %v1240 = vpop.f32.mrb[0].mxu0
        %v1241 = vadd.f32 %v910, %v1240
        %v1242 = vpop.f32.mrb[0].mxu0
        %1243 = vmatprep.mubr.bf16.mxu0 0
        %1244 = vmatmul.mubr.bf16.gmra.mrb[0].mxu0 %v864
        %v1245 = vpop.f32.mrb[0].mxu0
        %v1246 = vadd.f32 %v910, %v1245
        %v1247 = vpop.f32.mrb[0].mxu0
        %v1248 = vpop.f32.mrb[0].mxu0
        %v1249 = vadd.f32 %v910, %v1248
        %v1250 = vpop.f32.mrb[0].mxu0
        %1251 = vdwg.mxu0
        %v1252 = vld [vmem:[#allocation11] sm:$0xf]
        %v1253 = vld [vmem:[#allocation11 + $0x4] sm:$0xf]
        %v1254 = vld [vmem:[#allocation11 + $0x8] sm:$0xf]
        %v1255 = vld [vmem:[#allocation11 + $0xc] sm:$0xf]
        %v1256 = vld [vmem:[#allocation11 + $0x10] sm:$0xf]
        %v1257 = vld [vmem:[#allocation11 + $0x14] sm:$0xf]
        %v1258 = vld [vmem:[#allocation11 + $0x18] sm:$0xf]
        %v1259 = vld [vmem:[#allocation11 + $0x1c] sm:$0xf]
        %v1260 = vld [vmem:[#allocation11 + $0x20] sm:$0xf]
        %v1261 = vld [vmem:[#allocation11 + $0x24] sm:$0xf]
        %v1262 = vld [vmem:[#allocation11 + $0x28] sm:$0xf]
        %v1263 = vld [vmem:[#allocation11 + $0x2c] sm:$0xf]
        %v1264 = vld [vmem:[#allocation11 + $0x30] sm:$0xf]
        %v1265 = vld [vmem:[#allocation11 + $0x34] sm:$0xf]
        %v1266 = vld [vmem:[#allocation11 + $0x38] sm:$0xf]
        %v1267 = vld [vmem:[#allocation11 + $0x3c] sm:$0xf]
        %v1268 = vpack.c.bf16 %v1081, %v1077
        %v1269 = vpack.c.bf16 %v1091, %v1087
        %v1270 = vpack.c.bf16 %v1101, %v1097
        %v1271 = vpack.c.bf16 %v1111, %v1107
        %v1272 = vpack.c.bf16 %v1121, %v1117
        %v1273 = vpack.c.bf16 %v1131, %v1127
        %v1274 = vpack.c.bf16 %v1141, %v1137
        %v1275 = vpack.c.bf16 %v1151, %v1147
        %v1276 = vpack.c.bf16 %v1083, %v1079
        %v1277 = vpack.c.bf16 %v1093, %v1089
        %v1278 = vpack.c.bf16 %v1103, %v1099
        %v1279 = vpack.c.bf16 %v1113, %v1109
        %v1280 = vpack.c.bf16 %v1123, %v1119
        %v1281 = vpack.c.bf16 %v1133, %v1129
        %v1282 = vpack.c.bf16 %v1143, %v1139
        %v1283 = vpack.c.bf16 %v1153, %v1149
        %v1284 = vpack.c.bf16 %v1193, %v1190
        %v1285 = vpack.c.bf16 %v1201, %v1198
        %v1286 = vpack.c.bf16 %v1209, %v1206
        %v1287 = vpack.c.bf16 %v1217, %v1214
        %v1288 = vpack.c.bf16 %v1225, %v1222
        %v1289 = vpack.c.bf16 %v1233, %v1230
        %v1290 = vpack.c.bf16 %v1241, %v1238
        %v1291 = vpack.c.bf16 %v1249, %v1246
        %vm1292 = vcmask 261120
        %v1294 = vsel %vm1292, %v1268, 0
        %v1297 = vsel %vm1292, %v1269, 0
        %v1300 = vsel %vm1292, %v1270, 0
        %v1303 = vsel %vm1292, %v1271, 0
        %v1306 = vsel %vm1292, %v1272, 0
        %v1309 = vsel %vm1292, %v1273, 0
        %v1312 = vsel %vm1292, %v1274, 0
        %v1315 = vsel %vm1292, %v1275, 0
        %v1318 = vsel %vm1292, %v1276, 0
        %v1321 = vsel %vm1292, %v1277, 0
        %v1324 = vsel %vm1292, %v1278, 0
        %v1327 = vsel %vm1292, %v1279, 0
        %v1330 = vsel %vm1292, %v1280, 0
        %v1333 = vsel %vm1292, %v1281, 0
        %v1336 = vsel %vm1292, %v1282, 0
        %v1339 = vsel %vm1292, %v1283, 0
        %1341 = vmatprep.subr.bf16.mxu0 0
        %1342 = vmatpush1.bf16.xpose.msra.mxu0 %v1318
        %1343 = vmatprep.subr.bf16.mxu0 0
        %1344 = vmatpush1.bf16.xpose.msra.mxu0 %v1321
        %1345 = vmatprep.subr.bf16.mxu0 0
        %1346 = vmatpush1.bf16.xpose.msra.mxu0 %v1324
        %1347 = vmatprep.subr.bf16.mxu0 0
        %1348 = vmatpush1.bf16.xpose.msra.mxu0 %v1327
        %1349 = vmatprep.subr.bf16.mxu0 0
        %1350 = vmatpush1.bf16.xpose.msra.mxu0 %v1330
        %1351 = vmatprep.subr.bf16.mxu0 0
        %1352 = vmatpush1.bf16.xpose.msra.mxu0 %v1333
        %1353 = vmatprep.subr.bf16.mxu0 0
        %1354 = vmatpush1.bf16.xpose.msra.mxu0 %v1336
        %1355 = vmatprep.subr.bf16.mxu0 0
        %1356 = vmatpush1.bf16.xpose.msra.mxu0 %v1339
        %1357 = vmatprep.subr.bf16.mxu0 0
        %1358 = vmatpush1.bf16.xpose.msra.mxu0 0
        %1359 = vmatprep.subr.bf16.mxu0 0
        %1360 = vmatpush1.bf16.xpose.msra.mxu0 0
        %1361 = vmatprep.subr.bf16.mxu0 0
        %1362 = vmatpush1.bf16.xpose.msra.mxu0 0
        %1363 = vmatprep.subr.bf16.mxu0 0
        %1364 = vmatpush1.bf16.xpose.msra.mxu0 0
        %1365 = vmatprep.subr.bf16.mxu0 0
        %1366 = vmatpush1.bf16.xpose.msra.mxu0 0
        %1367 = vmatprep.subr.bf16.mxu0 0
        %1368 = vmatpush1.bf16.xpose.msra.mxu0 0
        %1369 = vmatprep.subr.bf16.mxu0 0
        %1370 = vmatpush1.bf16.xpose.msra.mxu0 0
        %1371 = vmatprep.subr.bf16.mxu0 0
        %1372 = vmatpush1.bf16.xpose.msra.mxu0 0
        %1373 = vmatprep.mubr.bf16.mxu0 0
        %1374 = vmatmul.mubr.bf16.gmra.mrb[0].mxu0 %v1294
        %v1375 = vpop.f32.mrb[0].mxu0
        %v1376 = vadd.f32 0.0, %v1375
        %v1377 = vpop.f32.mrb[0].mxu0
        %v1378 = vpop.f32.mrb[0].mxu0
        %v1379 = vadd.f32 0.0, %v1378
        %v1380 = vpop.f32.mrb[0].mxu0
        %1381 = vmatprep.mubr.bf16.mxu0 0
        %1382 = vmatmul.mubr.bf16.gmra.mrb[0].mxu0 %v1297
        %v1383 = vpop.f32.mrb[0].mxu0
        %v1384 = vadd.f32 0.0, %v1383
        %v1385 = vpop.f32.mrb[0].mxu0
        %v1386 = vpop.f32.mrb[0].mxu0
        %v1387 = vadd.f32 0.0, %v1386
        %v1388 = vpop.f32.mrb[0].mxu0
        %1389 = vmatprep.mubr.bf16.mxu0 0
        %1390 = vmatmul.mubr.bf16.gmra.mrb[0].mxu0 %v1300
        %v1391 = vpop.f32.mrb[0].mxu0
        %v1392 = vadd.f32 0.0, %v1391
        %v1393 = vpop.f32.mrb[0].mxu0
        %v1394 = vpop.f32.mrb[0].mxu0
        %v1395 = vadd.f32 0.0, %v1394
        %v1396 = vpop.f32.mrb[0].mxu0
        %1397 = vmatprep.mubr.bf16.mxu0 0
        %1398 = vmatmul.mubr.bf16.gmra.mrb[0].mxu0 %v1303
        %v1399 = vpop.f32.mrb[0].mxu0
        %v1400 = vadd.f32 0.0, %v1399
        %v1401 = vpop.f32.mrb[0].mxu0
        %v1402 = vpop.f32.mrb[0].mxu0
        %v1403 = vadd.f32 0.0, %v1402
        %v1404 = vpop.f32.mrb[0].mxu0
        %1405 = vmatprep.mubr.bf16.mxu0 0
        %1406 = vmatmul.mubr.bf16.gmra.mrb[0].mxu0 %v1306
        %v1407 = vpop.f32.mrb[0].mxu0
        %v1408 = vadd.f32 0.0, %v1407
        %v1409 = vpop.f32.mrb[0].mxu0
        %v1410 = vpop.f32.mrb[0].mxu0
        %v1411 = vadd.f32 0.0, %v1410
        %v1412 = vpop.f32.mrb[0].mxu0
        %1413 = vmatprep.mubr.bf16.mxu0 0
        %1414 = vmatmul.mubr.bf16.gmra.mrb[0].mxu0 %v1309
        %v1415 = vpop.f32.mrb[0].mxu0
        %v1416 = vadd.f32 0.0, %v1415
        %v1417 = vpop.f32.mrb[0].mxu0
        %v1418 = vpop.f32.mrb[0].mxu0
        %v1419 = vadd.f32 0.0, %v1418
        %v1420 = vpop.f32.mrb[0].mxu0
        %1421 = vmatprep.mubr.bf16.mxu0 0
        %1422 = vmatmul.mubr.bf16.gmra.mrb[0].mxu0 %v1312
        %v1423 = vpop.f32.mrb[0].mxu0
        %v1424 = vadd.f32 0.0, %v1423
        %v1425 = vpop.f32.mrb[0].mxu0
        %v1426 = vpop.f32.mrb[0].mxu0
        %v1427 = vadd.f32 0.0, %v1426
        %v1428 = vpop.f32.mrb[0].mxu0
        %1429 = vmatprep.mubr.bf16.mxu0 0
        %1430 = vmatmul.mubr.bf16.gmra.mrb[0].mxu0 %v1315
        %v1431 = vpop.f32.mrb[0].mxu0
        %v1432 = vadd.f32 0.0, %v1431
        %v1433 = vpop.f32.mrb[0].mxu0
        %v1434 = vpop.f32.mrb[0].mxu0
        %v1435 = vadd.f32 0.0, %v1434
        %v1436 = vpop.f32.mrb[0].mxu0
        %1437 = vdwg.mxu0
        %1438 = vmax.xlane.f32.xlu0 %v1376
        %v1439 = vpop.xlane.xlu0 %1438
        %1440 = vmax.xlane.f32.xlu0 %v1379
        %v1441 = vpop.xlane.xlu0 %1440
        %1442 = vmax.xlane.f32.xlu0 %v1384
        %v1443 = vpop.xlane.xlu0 %1442
        %1444 = vmax.xlane.f32.xlu0 %v1387
        %v1445 = vpop.xlane.xlu0 %1444
        %1446 = vmax.xlane.f32.xlu0 %v1392
        %v1447 = vpop.xlane.xlu0 %1446
        %1448 = vmax.xlane.f32.xlu0 %v1395
        %v1449 = vpop.xlane.xlu0 %1448
        %1450 = vmax.xlane.f32.xlu0 %v1400
        %v1451 = vpop.xlane.xlu0 %1450
        %1452 = vmax.xlane.f32.xlu0 %v1403
        %v1453 = vpop.xlane.xlu0 %1452
        %1454 = vmax.xlane.f32.xlu0 %v1408
        %v1455 = vpop.xlane.xlu0 %1454
        %1456 = vmax.xlane.f32.xlu0 %v1411
        %v1457 = vpop.xlane.xlu0 %1456
        %1458 = vmax.xlane.f32.xlu0 %v1416
        %v1459 = vpop.xlane.xlu0 %1458
        %1460 = vmax.xlane.f32.xlu0 %v1419
        %v1461 = vpop.xlane.xlu0 %1460
        %1462 = vmax.xlane.f32.xlu0 %v1424
        %v1463 = vpop.xlane.xlu0 %1462
        %1464 = vmax.xlane.f32.xlu0 %v1427
        %v1465 = vpop.xlane.xlu0 %1464
        %1466 = vmax.xlane.f32.xlu0 %v1432
        %v1467 = vpop.xlane.xlu0 %1466
        %1468 = vmax.xlane.f32.xlu0 %v1435
        %v1469 = vpop.xlane.xlu0 %1468
        %v1470 = vsub.f32 %v1376, %v1439
        %v1471 = vsub.f32 %v1379, %v1441
        %v1472 = vsub.f32 %v1384, %v1443
        %v1473 = vsub.f32 %v1387, %v1445
        %v1474 = vsub.f32 %v1392, %v1447
        %v1475 = vsub.f32 %v1395, %v1449
        %v1476 = vsub.f32 %v1400, %v1451
        %v1477 = vsub.f32 %v1403, %v1453
        %v1478 = vsub.f32 %v1408, %v1455
        %v1479 = vsub.f32 %v1411, %v1457
        %v1480 = vsub.f32 %v1416, %v1459
        %v1481 = vsub.f32 %v1419, %v1461
        %v1482 = vsub.f32 %v1424, %v1463
        %v1483 = vsub.f32 %v1427, %v1465
        %v1484 = vsub.f32 %v1432, %v1467
        %v1485 = vsub.f32 %v1435, %v1469
        %v1486 = vmul.f32 %v1470, 1.442695
        %v1487 = vpow.pop %v1486
        %v1488 = vmul.f32 %v1471, 1.442695
        %v1489 = vpow.pop %v1488
        %v1490 = vmul.f32 %v1472, 1.442695
        %v1491 = vpow.pop %v1490
        %v1492 = vmul.f32 %v1473, 1.442695
        %v1493 = vpow.pop %v1492
        %v1494 = vmul.f32 %v1474, 1.442695
        %v1495 = vpow.pop %v1494
        %v1496 = vmul.f32 %v1475, 1.442695
        %v1497 = vpow.pop %v1496
        %v1498 = vmul.f32 %v1476, 1.442695
        %v1499 = vpow.pop %v1498
        %v1500 = vmul.f32 %v1477, 1.442695
        %v1501 = vpow.pop %v1500
        %v1502 = vmul.f32 %v1478, 1.442695
        %v1503 = vpow.pop %v1502
        %v1504 = vmul.f32 %v1479, 1.442695
        %v1505 = vpow.pop %v1504
        %v1506 = vmul.f32 %v1480, 1.442695
        %v1507 = vpow.pop %v1506
        %v1508 = vmul.f32 %v1481, 1.442695
        %v1509 = vpow.pop %v1508
        %v1510 = vmul.f32 %v1482, 1.442695
        %v1511 = vpow.pop %v1510
        %v1512 = vmul.f32 %v1483, 1.442695
        %v1513 = vpow.pop %v1512
        %v1514 = vmul.f32 %v1484, 1.442695
        %v1515 = vpow.pop %v1514
        %v1516 = vmul.f32 %v1485, 1.442695
        %v1517 = vpow.pop %v1516
        %1518 = vadd.xlane.f32.xlu0 %v1487
        %v1519 = vpop.xlane.xlu0 %1518
        %1520 = vadd.xlane.f32.xlu0 %v1489
        %v1521 = vpop.xlane.xlu0 %1520
        %1522 = vadd.xlane.f32.xlu0 %v1491
        %v1523 = vpop.xlane.xlu0 %1522
        %1524 = vadd.xlane.f32.xlu0 %v1493
        %v1525 = vpop.xlane.xlu0 %1524
        %1526 = vadd.xlane.f32.xlu0 %v1495
        %v1527 = vpop.xlane.xlu0 %1526
        %1528 = vadd.xlane.f32.xlu0 %v1497
        %v1529 = vpop.xlane.xlu0 %1528
        %1530 = vadd.xlane.f32.xlu0 %v1499
        %v1531 = vpop.xlane.xlu0 %1530
        %1532 = vadd.xlane.f32.xlu0 %v1501
        %v1533 = vpop.xlane.xlu0 %1532
        %1534 = vadd.xlane.f32.xlu0 %v1503
        %v1535 = vpop.xlane.xlu0 %1534
        %1536 = vadd.xlane.f32.xlu0 %v1505
        %v1537 = vpop.xlane.xlu0 %1536
        %1538 = vadd.xlane.f32.xlu0 %v1507
        %v1539 = vpop.xlane.xlu0 %1538
        %1540 = vadd.xlane.f32.xlu0 %v1509
        %v1541 = vpop.xlane.xlu0 %1540
        %1542 = vadd.xlane.f32.xlu0 %v1511
        %v1543 = vpop.xlane.xlu0 %1542
        %1544 = vadd.xlane.f32.xlu0 %v1513
        %v1545 = vpop.xlane.xlu0 %1544
        %1546 = vadd.xlane.f32.xlu0 %v1515
        %v1547 = vpop.xlane.xlu0 %1546
        %1548 = vadd.xlane.f32.xlu0 %v1517
        %v1549 = vpop.xlane.xlu0 %1548
        %v1550 = vrcp.pop %v1519
        %v1551 = vrcp.pop %v1521
        %v1552 = vrcp.pop %v1523
        %v1553 = vrcp.pop %v1525
        %v1554 = vrcp.pop %v1527
        %v1555 = vrcp.pop %v1529
        %v1556 = vrcp.pop %v1531
        %v1557 = vrcp.pop %v1533
        %v1558 = vrcp.pop %v1535
        %v1559 = vrcp.pop %v1537
        %v1560 = vrcp.pop %v1539
        %v1561 = vrcp.pop %v1541
        %v1562 = vrcp.pop %v1543
        %v1563 = vrcp.pop %v1545
        %v1564 = vrcp.pop %v1547
        %v1565 = vrcp.pop %v1549
        %v1566 = vmul.f32 %v1487, %v1550
        %v1567 = vmul.f32 %v1489, %v1551
        %v1568 = vmul.f32 %v1491, %v1552
        %v1569 = vmul.f32 %v1493, %v1553
        %v1570 = vmul.f32 %v1495, %v1554
        %v1571 = vmul.f32 %v1497, %v1555
        %v1572 = vmul.f32 %v1499, %v1556
        %v1573 = vmul.f32 %v1501, %v1557
        %v1574 = vmul.f32 %v1503, %v1558
        %v1575 = vmul.f32 %v1505, %v1559
        %v1576 = vmul.f32 %v1507, %v1560
        %v1577 = vmul.f32 %v1509, %v1561
        %v1578 = vmul.f32 %v1511, %v1562
        %v1579 = vmul.f32 %v1513, %v1563
        %v1580 = vmul.f32 %v1515, %v1564
        %v1581 = vmul.f32 %v1517, %v1565
        %v1582 = vpack.c.bf16 %v1567, %v1566
        %v1583 = vpack.c.bf16 %v1569, %v1568
        %v1584 = vpack.c.bf16 %v1571, %v1570
        %v1585 = vpack.c.bf16 %v1573, %v1572
        %v1586 = vpack.c.bf16 %v1575, %v1574
        %v1587 = vpack.c.bf16 %v1577, %v1576
        %v1588 = vpack.c.bf16 %v1579, %v1578
        %v1589 = vpack.c.bf16 %v1581, %v1580
        %1590 = vmatprep.subr.bf16.mxu0 0
        %1591 = vmatpush1.bf16.msra.mxu0 %v1284
        %1592 = vmatprep.subr.bf16.mxu0 0
        %1593 = vmatpush1.bf16.msra.mxu0 %v1285
        %1594 = vmatprep.subr.bf16.mxu0 0
        %1595 = vmatpush1.bf16.msra.mxu0 %v1286
        %1596 = vmatprep.subr.bf16.mxu0 0
        %1597 = vmatpush1.bf16.msra.mxu0 %v1287
        %1598 = vmatprep.subr.bf16.mxu0 0
        %1599 = vmatpush1.bf16.msra.mxu0 %v1288
        %1600 = vmatprep.subr.bf16.mxu0 0
        %1601 = vmatpush1.bf16.msra.mxu0 %v1289
        %1602 = vmatprep.subr.bf16.mxu0 0
        %1603 = vmatpush1.bf16.msra.mxu0 %v1290
        %1604 = vmatprep.subr.bf16.mxu0 0
        %1605 = vmatpush1.bf16.msra.mxu0 %v1291
        %1606 = vmatprep.subr.bf16.mxu0 0
        %1607 = vmatpush1.bf16.msra.mxu0 0
        %1608 = vmatprep.subr.bf16.mxu0 0
        %1609 = vmatpush1.bf16.msra.mxu0 0
        %1610 = vmatprep.subr.bf16.mxu0 0
        %1611 = vmatpush1.bf16.msra.mxu0 0
        %1612 = vmatprep.subr.bf16.mxu0 0
        %1613 = vmatpush1.bf16.msra.mxu0 0
        %1614 = vmatprep.subr.bf16.mxu0 0
        %1615 = vmatpush1.bf16.msra.mxu0 0
        %1616 = vmatprep.subr.bf16.mxu0 0
        %1617 = vmatpush1.bf16.msra.mxu0 0
        %1618 = vmatprep.subr.bf16.mxu0 0
        %1619 = vmatpush1.bf16.msra.mxu0 0
        %1620 = vmatprep.subr.bf16.mxu0 0
        %1621 = vmatpush1.bf16.msra.mxu0 0
        %1622 = vmatprep.mubr.bf16.mxu0 0
        %1623 = vmatmul.mubr.bf16.gmra.mrb[0].mxu0 %v1582
        %v1624 = vpop.f32.mrb[0].mxu0
        %v1625 = vadd.f32 0.0, %v1624
        %v1626 = vpop.f32.mrb[0].mxu0
        %v1627 = vpop.f32.mrb[0].mxu0
        %v1628 = vadd.f32 0.0, %v1627
        %v1629 = vpop.f32.mrb[0].mxu0
        %1630 = vmatprep.mubr.bf16.mxu0 0
        %1631 = vmatmul.mubr.bf16.gmra.mrb[0].mxu0 %v1583
        %v1632 = vpop.f32.mrb[0].mxu0
        %v1633 = vadd.f32 0.0, %v1632
        %v1634 = vpop.f32.mrb[0].mxu0
        %v1635 = vpop.f32.mrb[0].mxu0
        %v1636 = vadd.f32 0.0, %v1635
        %v1637 = vpop.f32.mrb[0].mxu0
        %1638 = vmatprep.mubr.bf16.mxu0 0
        %1639 = vmatmul.mubr.bf16.gmra.mrb[0].mxu0 %v1584
        %v1640 = vpop.f32.mrb[0].mxu0
        %v1641 = vadd.f32 0.0, %v1640
        %v1642 = vpop.f32.mrb[0].mxu0
        %v1643 = vpop.f32.mrb[0].mxu0
        %v1644 = vadd.f32 0.0, %v1643
        %v1645 = vpop.f32.mrb[0].mxu0
        %1646 = vmatprep.mubr.bf16.mxu0 0
        %1647 = vmatmul.mubr.bf16.gmra.mrb[0].mxu0 %v1585
        %v1648 = vpop.f32.mrb[0].mxu0
        %v1649 = vadd.f32 0.0, %v1648
        %v1650 = vpop.f32.mrb[0].mxu0
        %v1651 = vpop.f32.mrb[0].mxu0
        %v1652 = vadd.f32 0.0, %v1651
        %v1653 = vpop.f32.mrb[0].mxu0
        %1654 = vmatprep.mubr.bf16.mxu0 0
        %1655 = vmatmul.mubr.bf16.gmra.mrb[0].mxu0 %v1586
        %v1656 = vpop.f32.mrb[0].mxu0
        %v1657 = vadd.f32 0.0, %v1656
        %v1658 = vpop.f32.mrb[0].mxu0
        %v1659 = vpop.f32.mrb[0].mxu0
        %v1660 = vadd.f32 0.0, %v1659
        %v1661 = vpop.f32.mrb[0].mxu0
        %1662 = vmatprep.mubr.bf16.mxu0 0
        %1663 = vmatmul.mubr.bf16.gmra.mrb[0].mxu0 %v1587
        %v1664 = vpop.f32.mrb[0].mxu0
        %v1665 = vadd.f32 0.0, %v1664
        %v1666 = vpop.f32.mrb[0].mxu0
        %v1667 = vpop.f32.mrb[0].mxu0
        %v1668 = vadd.f32 0.0, %v1667
        %v1669 = vpop.f32.mrb[0].mxu0
        %1670 = vmatprep.mubr.bf16.mxu0 0
        %1671 = vmatmul.mubr.bf16.gmra.mrb[0].mxu0 %v1588
        %v1672 = vpop.f32.mrb[0].mxu0
        %v1673 = vadd.f32 0.0, %v1672
        %v1674 = vpop.f32.mrb[0].mxu0
        %v1675 = vpop.f32.mrb[0].mxu0
        %v1676 = vadd.f32 0.0, %v1675
        %v1677 = vpop.f32.mrb[0].mxu0
        %1678 = vmatprep.mubr.bf16.mxu0 0
        %1679 = vmatmul.mubr.bf16.gmra.mrb[0].mxu0 %v1589
        %v1680 = vpop.f32.mrb[0].mxu0
        %v1681 = vadd.f32 0.0, %v1680
        %v1682 = vpop.f32.mrb[0].mxu0
        %v1683 = vpop.f32.mrb[0].mxu0
        %v1684 = vadd.f32 0.0, %v1683
        %v1685 = vpop.f32.mrb[0].mxu0
        %1686 = vdwg.mxu0
        %v1687 = vpack.c.bf16 %v1628, %v1625
        %v1688 = vpack.c.bf16 %v1636, %v1633
        %v1689 = vpack.c.bf16 %v1644, %v1641
        %v1690 = vpack.c.bf16 %v1652, %v1649
        %v1691 = vpack.c.bf16 %v1660, %v1657
        %v1692 = vpack.c.bf16 %v1668, %v1665
        %v1693 = vpack.c.bf16 %v1676, %v1673
        %v1694 = vpack.c.bf16 %v1684, %v1681
        %1703 = vrot.lane.b32.xlu0 %v1268, 96
        %v1704 = vpop.permute.xlu0 %1703
        %1705 = vrot.lane.b32.xlu0 %v1269, 96
        %v1706 = vpop.permute.xlu0 %1705
        %1707 = vrot.lane.b32.xlu0 %v1270, 96
        %v1708 = vpop.permute.xlu0 %1707
        %1709 = vrot.lane.b32.xlu0 %v1271, 96
        %v1710 = vpop.permute.xlu0 %1709
        %1711 = vrot.lane.b32.xlu0 %v1272, 96
        %v1712 = vpop.permute.xlu0 %1711
        %1713 = vrot.lane.b32.xlu0 %v1273, 96
        %v1714 = vpop.permute.xlu0 %1713
        %1715 = vrot.lane.b32.xlu0 %v1274, 96
        %v1716 = vpop.permute.xlu0 %1715
        %1717 = vrot.lane.b32.xlu0 %v1275, 96
        %v1718 = vpop.permute.xlu0 %1717
        %1727 = vrot.lane.b32.xlu0 %v1276, 96
        %v1728 = vpop.permute.xlu0 %1727
        %1729 = vrot.lane.b32.xlu0 %v1277, 96
        %v1730 = vpop.permute.xlu0 %1729
        %1731 = vrot.lane.b32.xlu0 %v1278, 96
        %v1732 = vpop.permute.xlu0 %1731
        %1733 = vrot.lane.b32.xlu0 %v1279, 96
        %v1734 = vpop.permute.xlu0 %1733
        %1735 = vrot.lane.b32.xlu0 %v1280, 96
        %v1736 = vpop.permute.xlu0 %1735
        %1737 = vrot.lane.b32.xlu0 %v1281, 96
        %v1738 = vpop.permute.xlu0 %1737
        %1739 = vrot.lane.b32.xlu0 %v1282, 96
        %v1740 = vpop.permute.xlu0 %1739
        %1741 = vrot.lane.b32.xlu0 %v1283, 96
        %v1742 = vpop.permute.xlu0 %1741
        %v1744 = vsel %vm1292, %v1704, 0
        %v1747 = vsel %vm1292, %v1706, 0
        %v1750 = vsel %vm1292, %v1708, 0
        %v1753 = vsel %vm1292, %v1710, 0
        %v1756 = vsel %vm1292, %v1712, 0
        %v1759 = vsel %vm1292, %v1714, 0
        %v1762 = vsel %vm1292, %v1716, 0
        %v1765 = vsel %vm1292, %v1718, 0
        %v1768 = vsel %vm1292, %v1728, 0
        %v1771 = vsel %vm1292, %v1730, 0
        %v1774 = vsel %vm1292, %v1732, 0
        %v1777 = vsel %vm1292, %v1734, 0
        %v1780 = vsel %vm1292, %v1736, 0
        %v1783 = vsel %vm1292, %v1738, 0
        %v1786 = vsel %vm1292, %v1740, 0
        %v1789 = vsel %vm1292, %v1742, 0
        %1791 = vmatprep.subr.bf16.mxu0 0
        %1792 = vmatpush1.bf16.xpose.msra.mxu0 %v1768
        %1793 = vmatprep.subr.bf16.mxu0 0
        %1794 = vmatpush1.bf16.xpose.msra.mxu0 %v1771
        %1795 = vmatprep.subr.bf16.mxu0 0
        %1796 = vmatpush1.bf16.xpose.msra.mxu0 %v1774
        %1797 = vmatprep.subr.bf16.mxu0 0
        %1798 = vmatpush1.bf16.xpose.msra.mxu0 %v1777
        %1799 = vmatprep.subr.bf16.mxu0 0
        %1800 = vmatpush1.bf16.xpose.msra.mxu0 %v1780
        %1801 = vmatprep.subr.bf16.mxu0 0
        %1802 = vmatpush1.bf16.xpose.msra.mxu0 %v1783
        %1803 = vmatprep.subr.bf16.mxu0 0
        %1804 = vmatpush1.bf16.xpose.msra.mxu0 %v1786
        %1805 = vmatprep.subr.bf16.mxu0 0
        %1806 = vmatpush1.bf16.xpose.msra.mxu0 %v1789
        %1807 = vmatprep.subr.bf16.mxu0 0
        %1808 = vmatpush1.bf16.xpose.msra.mxu0 0
        %1809 = vmatprep.subr.bf16.mxu0 0
        %1810 = vmatpush1.bf16.xpose.msra.mxu0 0
        %1811 = vmatprep.subr.bf16.mxu0 0
        %1812 = vmatpush1.bf16.xpose.msra.mxu0 0
        %1813 = vmatprep.subr.bf16.mxu0 0
        %1814 = vmatpush1.bf16.xpose.msra.mxu0 0
        %1815 = vmatprep.subr.bf16.mxu0 0
        %1816 = vmatpush1.bf16.xpose.msra.mxu0 0
        %1817 = vmatprep.subr.bf16.mxu0 0
        %1818 = vmatpush1.bf16.xpose.msra.mxu0 0
        %1819 = vmatprep.subr.bf16.mxu0 0
        %1820 = vmatpush1.bf16.xpose.msra.mxu0 0
        %1821 = vmatprep.subr.bf16.mxu0 0
        %1822 = vmatpush1.bf16.xpose.msra.mxu0 0
        %1823 = vmatprep.mubr.bf16.mxu0 0
        %1824 = vmatmul.mubr.bf16.gmra.mrb[0].mxu0 %v1744
        %v1825 = vpop.f32.mrb[0].mxu0
        %v1826 = vadd.f32 0.0, %v1825
        %v1827 = vpop.f32.mrb[0].mxu0
        %v1828 = vpop.f32.mrb[0].mxu0
        %v1829 = vadd.f32 0.0, %v1828
        %v1830 = vpop.f32.mrb[0].mxu0
        %1831 = vmatprep.mubr.bf16.mxu0 0
        %1832 = vmatmul.mubr.bf16.gmra.mrb[0].mxu0 %v1747
        %v1833 = vpop.f32.mrb[0].mxu0
        %v1834 = vadd.f32 0.0, %v1833
        %v1835 = vpop.f32.mrb[0].mxu0
        %v1836 = vpop.f32.mrb[0].mxu0
        %v1837 = vadd.f32 0.0, %v1836
        %v1838 = vpop.f32.mrb[0].mxu0
        %1839 = vmatprep.mubr.bf16.mxu0 0
        %1840 = vmatmul.mubr.bf16.gmra.mrb[0].mxu0 %v1750
        %v1841 = vpop.f32.mrb[0].mxu0
        %v1842 = vadd.f32 0.0, %v1841
        %v1843 = vpop.f32.mrb[0].mxu0
        %v1844 = vpop.f32.mrb[0].mxu0
        %v1845 = vadd.f32 0.0, %v1844
        %v1846 = vpop.f32.mrb[0].mxu0
        %1847 = vmatprep.mubr.bf16.mxu0 0
        %1848 = vmatmul.mubr.bf16.gmra.mrb[0].mxu0 %v1753
        %v1849 = vpop.f32.mrb[0].mxu0
        %v1850 = vadd.f32 0.0, %v1849
        %v1851 = vpop.f32.mrb[0].mxu0
        %v1852 = vpop.f32.mrb[0].mxu0
        %v1853 = vadd.f32 0.0, %v1852
        %v1854 = vpop.f32.mrb[0].mxu0
        %1855 = vmatprep.mubr.bf16.mxu0 0
        %1856 = vmatmul.mubr.bf16.gmra.mrb[0].mxu0 %v1756
        %v1857 = vpop.f32.mrb[0].mxu0
        %v1858 = vadd.f32 0.0, %v1857
        %v1859 = vpop.f32.mrb[0].mxu0
        %v1860 = vpop.f32.mrb[0].mxu0
        %v1861 = vadd.f32 0.0, %v1860
        %v1862 = vpop.f32.mrb[0].mxu0
        %1863 = vmatprep.mubr.bf16.mxu0 0
        %1864 = vmatmul.mubr.bf16.gmra.mrb[0].mxu0 %v1759
        %v1865 = vpop.f32.mrb[0].mxu0
        %v1866 = vadd.f32 0.0, %v1865
        %v1867 = vpop.f32.mrb[0].mxu0
        %v1868 = vpop.f32.mrb[0].mxu0
        %v1869 = vadd.f32 0.0, %v1868
        %v1870 = vpop.f32.mrb[0].mxu0
        %1871 = vmatprep.mubr.bf16.mxu0 0
        %1872 = vmatmul.mubr.bf16.gmra.mrb[0].mxu0 %v1762
        %v1873 = vpop.f32.mrb[0].mxu0
        %v1874 = vadd.f32 0.0, %v1873
        %v1875 = vpop.f32.mrb[0].mxu0
        %v1876 = vpop.f32.mrb[0].mxu0
        %v1877 = vadd.f32 0.0, %v1876
        %v1878 = vpop.f32.mrb[0].mxu0
        %1879 = vmatprep.mubr.bf16.mxu0 0
        %1880 = vmatmul.mubr.bf16.gmra.mrb[0].mxu0 %v1765
        %v1881 = vpop.f32.mrb[0].mxu0
        %v1882 = vadd.f32 0.0, %v1881
        %v1883 = vpop.f32.mrb[0].mxu0
        %v1884 = vpop.f32.mrb[0].mxu0
        %v1885 = vadd.f32 0.0, %v1884
        %v1886 = vpop.f32.mrb[0].mxu0
        %1887 = vdwg.mxu0
        %1888 = vmax.xlane.f32.xlu0 %v1826
        %v1889 = vpop.xlane.xlu0 %1888
        %1890 = vmax.xlane.f32.xlu0 %v1829
        %v1891 = vpop.xlane.xlu0 %1890
        %1892 = vmax.xlane.f32.xlu0 %v1834
        %v1893 = vpop.xlane.xlu0 %1892
        %1894 = vmax.xlane.f32.xlu0 %v1837
        %v1895 = vpop.xlane.xlu0 %1894
        %1896 = vmax.xlane.f32.xlu0 %v1842
        %v1897 = vpop.xlane.xlu0 %1896
        %1898 = vmax.xlane.f32.xlu0 %v1845
        %v1899 = vpop.xlane.xlu0 %1898
        %1900 = vmax.xlane.f32.xlu0 %v1850
        %v1901 = vpop.xlane.xlu0 %1900
        %1902 = vmax.xlane.f32.xlu0 %v1853
        %v1903 = vpop.xlane.xlu0 %1902
        %1904 = vmax.xlane.f32.xlu0 %v1858
        %v1905 = vpop.xlane.xlu0 %1904
        %1906 = vmax.xlane.f32.xlu0 %v1861
        %v1907 = vpop.xlane.xlu0 %1906
        %1908 = vmax.xlane.f32.xlu0 %v1866
        %v1909 = vpop.xlane.xlu0 %1908
        %1910 = vmax.xlane.f32.xlu0 %v1869
        %v1911 = vpop.xlane.xlu0 %1910
        %1912 = vmax.xlane.f32.xlu0 %v1874
        %v1913 = vpop.xlane.xlu0 %1912
        %1914 = vmax.xlane.f32.xlu0 %v1877
        %v1915 = vpop.xlane.xlu0 %1914
        %1916 = vmax.xlane.f32.xlu0 %v1882
        %v1917 = vpop.xlane.xlu0 %1916
        %1918 = vmax.xlane.f32.xlu0 %v1885
        %v1919 = vpop.xlane.xlu0 %1918
        %v1920 = vsub.f32 %v1826, %v1889
        %v1921 = vsub.f32 %v1829, %v1891
        %v1922 = vsub.f32 %v1834, %v1893
        %v1923 = vsub.f32 %v1837, %v1895
        %v1924 = vsub.f32 %v1842, %v1897
        %v1925 = vsub.f32 %v1845, %v1899
        %v1926 = vsub.f32 %v1850, %v1901
        %v1927 = vsub.f32 %v1853, %v1903
        %v1928 = vsub.f32 %v1858, %v1905
        %v1929 = vsub.f32 %v1861, %v1907
        %v1930 = vsub.f32 %v1866, %v1909
        %v1931 = vsub.f32 %v1869, %v1911
        %v1932 = vsub.f32 %v1874, %v1913
        %v1933 = vsub.f32 %v1877, %v1915
        %v1934 = vsub.f32 %v1882, %v1917
        %v1935 = vsub.f32 %v1885, %v1919
        %v1936 = vmul.f32 %v1920, 1.442695
        %v1937 = vpow.pop %v1936
        %v1938 = vmul.f32 %v1921, 1.442695
        %v1939 = vpow.pop %v1938
        %v1940 = vmul.f32 %v1922, 1.442695
        %v1941 = vpow.pop %v1940
        %v1942 = vmul.f32 %v1923, 1.442695
        %v1943 = vpow.pop %v1942
        %v1944 = vmul.f32 %v1924, 1.442695
        %v1945 = vpow.pop %v1944
        %v1946 = vmul.f32 %v1925, 1.442695
        %v1947 = vpow.pop %v1946
        %v1948 = vmul.f32 %v1926, 1.442695
        %v1949 = vpow.pop %v1948
        %v1950 = vmul.f32 %v1927, 1.442695
        %v1951 = vpow.pop %v1950
        %v1952 = vmul.f32 %v1928, 1.442695
        %v1953 = vpow.pop %v1952
        %v1954 = vmul.f32 %v1929, 1.442695
        %v1955 = vpow.pop %v1954
        %v1956 = vmul.f32 %v1930, 1.442695
        %v1957 = vpow.pop %v1956
        %v1958 = vmul.f32 %v1931, 1.442695
        %v1959 = vpow.pop %v1958
        %v1960 = vmul.f32 %v1932, 1.442695
        %v1961 = vpow.pop %v1960
        %v1962 = vmul.f32 %v1933, 1.442695
        %v1963 = vpow.pop %v1962
        %v1964 = vmul.f32 %v1934, 1.442695
        %v1965 = vpow.pop %v1964
        %v1966 = vmul.f32 %v1935, 1.442695
        %v1967 = vpow.pop %v1966
        %1968 = vadd.xlane.f32.xlu0 %v1937
        %v1969 = vpop.xlane.xlu0 %1968
        %1970 = vadd.xlane.f32.xlu0 %v1939
        %v1971 = vpop.xlane.xlu0 %1970
        %1972 = vadd.xlane.f32.xlu0 %v1941
        %v1973 = vpop.xlane.xlu0 %1972
        %1974 = vadd.xlane.f32.xlu0 %v1943
        %v1975 = vpop.xlane.xlu0 %1974
        %1976 = vadd.xlane.f32.xlu0 %v1945
        %v1977 = vpop.xlane.xlu0 %1976
        %1978 = vadd.xlane.f32.xlu0 %v1947
        %v1979 = vpop.xlane.xlu0 %1978
        %1980 = vadd.xlane.f32.xlu0 %v1949
        %v1981 = vpop.xlane.xlu0 %1980
        %1982 = vadd.xlane.f32.xlu0 %v1951
        %v1983 = vpop.xlane.xlu0 %1982
        %1984 = vadd.xlane.f32.xlu0 %v1953
        %v1985 = vpop.xlane.xlu0 %1984
        %1986 = vadd.xlane.f32.xlu0 %v1955
        %v1987 = vpop.xlane.xlu0 %1986
        %1988 = vadd.xlane.f32.xlu0 %v1957
        %v1989 = vpop.xlane.xlu0 %1988
        %1990 = vadd.xlane.f32.xlu0 %v1959
        %v1991 = vpop.xlane.xlu0 %1990
        %1992 = vadd.xlane.f32.xlu0 %v1961
        %v1993 = vpop.xlane.xlu0 %1992
        %1994 = vadd.xlane.f32.xlu0 %v1963
        %v1995 = vpop.xlane.xlu0 %1994
        %1996 = vadd.xlane.f32.xlu0 %v1965
        %v1997 = vpop.xlane.xlu0 %1996
        %1998 = vadd.xlane.f32.xlu0 %v1967
        %v1999 = vpop.xlane.xlu0 %1998
        %v2000 = vrcp.pop %v1969
        %v2001 = vrcp.pop %v1971
        %v2002 = vrcp.pop %v1973
        %v2003 = vrcp.pop %v1975
        %v2004 = vrcp.pop %v1977
        %v2005 = vrcp.pop %v1979
        %v2006 = vrcp.pop %v1981
        %v2007 = vrcp.pop %v1983
        %v2008 = vrcp.pop %v1985
        %v2009 = vrcp.pop %v1987
        %v2010 = vrcp.pop %v1989
        %v2011 = vrcp.pop %v1991
        %v2012 = vrcp.pop %v1993
        %v2013 = vrcp.pop %v1995
        %v2014 = vrcp.pop %v1997
        %v2015 = vrcp.pop %v1999
        %v2016 = vmul.f32 %v1937, %v2000
        %v2017 = vmul.f32 %v1939, %v2001
        %v2018 = vmul.f32 %v1941, %v2002
        %v2019 = vmul.f32 %v1943, %v2003
        %v2020 = vmul.f32 %v1945, %v2004
        %v2021 = vmul.f32 %v1947, %v2005
        %v2022 = vmul.f32 %v1949, %v2006
        %v2023 = vmul.f32 %v1951, %v2007
        %v2024 = vmul.f32 %v1953, %v2008
        %v2025 = vmul.f32 %v1955, %v2009
        %v2026 = vmul.f32 %v1957, %v2010
        %v2027 = vmul.f32 %v1959, %v2011
        %v2028 = vmul.f32 %v1961, %v2012
        %v2029 = vmul.f32 %v1963, %v2013
        %v2030 = vmul.f32 %v1965, %v2014
        %v2031 = vmul.f32 %v1967, %v2015
        %v2032 = vpack.c.bf16 %v2017, %v2016
        %v2033 = vpack.c.bf16 %v2019, %v2018
        %v2034 = vpack.c.bf16 %v2021, %v2020
        %v2035 = vpack.c.bf16 %v2023, %v2022
        %v2036 = vpack.c.bf16 %v2025, %v2024
        %v2037 = vpack.c.bf16 %v2027, %v2026
        %v2038 = vpack.c.bf16 %v2029, %v2028
        %v2039 = vpack.c.bf16 %v2031, %v2030
        %2048 = vrot.lane.b32.xlu0 %v1284, 96
        %v2049 = vpop.permute.xlu0 %2048
        %2050 = vrot.lane.b32.xlu0 %v1285, 96
        %v2051 = vpop.permute.xlu0 %2050
        %2052 = vrot.lane.b32.xlu0 %v1286, 96
        %v2053 = vpop.permute.xlu0 %2052
        %2054 = vrot.lane.b32.xlu0 %v1287, 96
        %v2055 = vpop.permute.xlu0 %2054
        %2056 = vrot.lane.b32.xlu0 %v1288, 96
        %v2057 = vpop.permute.xlu0 %2056
        %2058 = vrot.lane.b32.xlu0 %v1289, 96
        %v2059 = vpop.permute.xlu0 %2058
        %2060 = vrot.lane.b32.xlu0 %v1290, 96
        %v2061 = vpop.permute.xlu0 %2060
        %2062 = vrot.lane.b32.xlu0 %v1291, 96
        %v2063 = vpop.permute.xlu0 %2062
        %2072 = vmatprep.subr.bf16.mxu0 0
        %2073 = vmatpush1.bf16.msra.mxu0 %v2049
        %2074 = vmatprep.subr.bf16.mxu0 0
        %2075 = vmatpush1.bf16.msra.mxu0 %v2051
        %2076 = vmatprep.subr.bf16.mxu0 0
        %2077 = vmatpush1.bf16.msra.mxu0 %v2053
        %2078 = vmatprep.subr.bf16.mxu0 0
        %2079 = vmatpush1.bf16.msra.mxu0 %v2055
        %2080 = vmatprep.subr.bf16.mxu0 0
        %2081 = vmatpush1.bf16.msra.mxu0 %v2057
        %2082 = vmatprep.subr.bf16.mxu0 0
        %2083 = vmatpush1.bf16.msra.mxu0 %v2059
        %2084 = vmatprep.subr.bf16.mxu0 0
        %2085 = vmatpush1.bf16.msra.mxu0 %v2061
        %2086 = vmatprep.subr.bf16.mxu0 0
        %2087 = vmatpush1.bf16.msra.mxu0 %v2063
        %2088 = vmatprep.subr.bf16.mxu0 0
        %2089 = vmatpush1.bf16.msra.mxu0 0
        %2090 = vmatprep.subr.bf16.mxu0 0
        %2091 = vmatpush1.bf16.msra.mxu0 0
        %2092 = vmatprep.subr.bf16.mxu0 0
        %2093 = vmatpush1.bf16.msra.mxu0 0
        %2094 = vmatprep.subr.bf16.mxu0 0
        %2095 = vmatpush1.bf16.msra.mxu0 0
        %2096 = vmatprep.subr.bf16.mxu0 0
        %2097 = vmatpush1.bf16.msra.mxu0 0
        %2098 = vmatprep.subr.bf16.mxu0 0
        %2099 = vmatpush1.bf16.msra.mxu0 0
        %2100 = vmatprep.subr.bf16.mxu0 0
        %2101 = vmatpush1.bf16.msra.mxu0 0
        %2102 = vmatprep.subr.bf16.mxu0 0
        %2103 = vmatpush1.bf16.msra.mxu0 0
        %2104 = vmatprep.mubr.bf16.mxu0 0
        %2105 = vmatmul.mubr.bf16.gmra.mrb[0].mxu0 %v2032
        %v2106 = vpop.f32.mrb[0].mxu0
        %v2107 = vadd.f32 0.0, %v2106
        %v2108 = vpop.f32.mrb[0].mxu0
        %v2109 = vpop.f32.mrb[0].mxu0
        %v2110 = vadd.f32 0.0, %v2109
        %v2111 = vpop.f32.mrb[0].mxu0
        %2112 = vmatprep.mubr.bf16.mxu0 0
        %2113 = vmatmul.mubr.bf16.gmra.mrb[0].mxu0 %v2033
        %v2114 = vpop.f32.mrb[0].mxu0
        %v2115 = vadd.f32 0.0, %v2114
        %v2116 = vpop.f32.mrb[0].mxu0
        %v2117 = vpop.f32.mrb[0].mxu0
        %v2118 = vadd.f32 0.0, %v2117
        %v2119 = vpop.f32.mrb[0].mxu0
        %2120 = vmatprep.mubr.bf16.mxu0 0
        %2121 = vmatmul.mubr.bf16.gmra.mrb[0].mxu0 %v2034
        %v2122 = vpop.f32.mrb[0].mxu0
        %v2123 = vadd.f32 0.0, %v2122
        %v2124 = vpop.f32.mrb[0].mxu0
        %v2125 = vpop.f32.mrb[0].mxu0
        %v2126 = vadd.f32 0.0, %v2125
        %v2127 = vpop.f32.mrb[0].mxu0
        %2128 = vmatprep.mubr.bf16.mxu0 0
        %2129 = vmatmul.mubr.bf16.gmra.mrb[0].mxu0 %v2035
        %v2130 = vpop.f32.mrb[0].mxu0
        %v2131 = vadd.f32 0.0, %v2130
        %v2132 = vpop.f32.mrb[0].mxu0
        %v2133 = vpop.f32.mrb[0].mxu0
        %v2134 = vadd.f32 0.0, %v2133
        %v2135 = vpop.f32.mrb[0].mxu0
        %2136 = vmatprep.mubr.bf16.mxu0 0
        %2137 = vmatmul.mubr.bf16.gmra.mrb[0].mxu0 %v2036
        %v2138 = vpop.f32.mrb[0].mxu0
        %v2139 = vadd.f32 0.0, %v2138
        %v2140 = vpop.f32.mrb[0].mxu0
        %v2141 = vpop.f32.mrb[0].mxu0
        %v2142 = vadd.f32 0.0, %v2141
        %v2143 = vpop.f32.mrb[0].mxu0
        %2144 = vmatprep.mubr.bf16.mxu0 0
        %2145 = vmatmul.mubr.bf16.gmra.mrb[0].mxu0 %v2037
        %v2146 = vpop.f32.mrb[0].mxu0
        %v2147 = vadd.f32 0.0, %v2146
        %v2148 = vpop.f32.mrb[0].mxu0
        %v2149 = vpop.f32.mrb[0].mxu0
        %v2150 = vadd.f32 0.0, %v2149
        %v2151 = vpop.f32.mrb[0].mxu0
        %2152 = vmatprep.mubr.bf16.mxu0 0
        %2153 = vmatmul.mubr.bf16.gmra.mrb[0].mxu0 %v2038
        %v2154 = vpop.f32.mrb[0].mxu0
        %v2155 = vadd.f32 0.0, %v2154
        %v2156 = vpop.f32.mrb[0].mxu0
        %v2157 = vpop.f32.mrb[0].mxu0
        %v2158 = vadd.f32 0.0, %v2157
        %v2159 = vpop.f32.mrb[0].mxu0
        %2160 = vmatprep.mubr.bf16.mxu0 0
        %2161 = vmatmul.mubr.bf16.gmra.mrb[0].mxu0 %v2039
        %v2162 = vpop.f32.mrb[0].mxu0
        %v2163 = vadd.f32 0.0, %v2162
        %v2164 = vpop.f32.mrb[0].mxu0
        %v2165 = vpop.f32.mrb[0].mxu0
        %v2166 = vadd.f32 0.0, %v2165
        %v2167 = vpop.f32.mrb[0].mxu0
        %2168 = vdwg.mxu0
        %v2169 = vpack.c.bf16 %v2110, %v2107
        %v2170 = vpack.c.bf16 %v2118, %v2115
        %v2171 = vpack.c.bf16 %v2126, %v2123
        %v2172 = vpack.c.bf16 %v2134, %v2131
        %v2173 = vpack.c.bf16 %v2142, %v2139
        %v2174 = vpack.c.bf16 %v2150, %v2147
        %v2175 = vpack.c.bf16 %v2158, %v2155
        %v2176 = vpack.c.bf16 %v2166, %v2163
        %v2181 = vunpack.c.l.b16 %v1256
        %v2182 = vunpack.c.l.b16 %v1257
        %v2183 = vunpack.c.l.b16 %v1258
        %v2184 = vunpack.c.l.b16 %v1259
        %v2185 = vpack.c.b16 %v2182, %v2181
        %v2186 = vpack.c.b16 %v2184, %v2183
        %v2190 = vsel %vm1292, %v2169, 0
        %v2193 = vsel %vm1292, %v2170, 0
        %v2196 = vsel %vm1292, %v2171, 0
        %v2199 = vsel %vm1292, %v2172, 0
        %v2202 = vsel %vm1292, %v2173, 0
        %v2205 = vsel %vm1292, %v2174, 0
        %v2208 = vsel %vm1292, %v2175, 0
        %v2211 = vsel %vm1292, %v2176, 0
        %2213 = vmatprep.subr.bf16.mxu0 0
        %2214 = vmatpush1.bf16.msra.mxu0 %v2185
        %2215 = vmatprep.subr.bf16.mxu0 0
        %2216 = vmatpush1.bf16.msra.mxu0 %v2186
        %2217 = vmatprep.subr.bf16.mxu0 0
        %2218 = vmatpush1.bf16.msra.mxu0 0
        %2219 = vmatprep.subr.bf16.mxu0 0
        %2220 = vmatpush1.bf16.msra.mxu0 0
        %2221 = vmatprep.subr.bf16.mxu0 0
        %2222 = vmatpush1.bf16.msra.mxu0 0
        %2223 = vmatprep.subr.bf16.mxu0 0
        %2224 = vmatpush1.bf16.msra.mxu0 0
        %2225 = vmatprep.subr.bf16.mxu0 0
        %2226 = vmatpush1.bf16.msra.mxu0 0
        %2227 = vmatprep.subr.bf16.mxu0 0
        %2228 = vmatpush1.bf16.msra.mxu0 0
        %2229 = vmatprep.subr.bf16.mxu0 0
        %2230 = vmatpush1.bf16.msra.mxu0 0
        %2231 = vmatprep.subr.bf16.mxu0 0
        %2232 = vmatpush1.bf16.msra.mxu0 0
        %2233 = vmatprep.subr.bf16.mxu0 0
        %2234 = vmatpush1.bf16.msra.mxu0 0
        %2235 = vmatprep.subr.bf16.mxu0 0
        %2236 = vmatpush1.bf16.msra.mxu0 0
        %2237 = vmatprep.subr.bf16.mxu0 0
        %2238 = vmatpush1.bf16.msra.mxu0 0
        %2239 = vmatprep.subr.bf16.mxu0 0
        %2240 = vmatpush1.bf16.msra.mxu0 0
        %2241 = vmatprep.subr.bf16.mxu0 0
        %2242 = vmatpush1.bf16.msra.mxu0 0
        %2243 = vmatprep.subr.bf16.mxu0 0
        %2244 = vmatpush1.bf16.msra.mxu0 0
        %2245 = vmatprep.mubr.bf16.mxu0 0
        %2246 = vmatmul.mubr.bf16.gmra.mrb[0].mxu0 %v2190
        %v2247 = vpop.f32.mrb[0].mxu0
        %v2248 = vadd.f32 0.0, %v2247
        %v2249 = vpop.f32.mrb[0].mxu0
        %v2250 = vpop.f32.mrb[0].mxu0
        %v2251 = vadd.f32 0.0, %v2250
        %v2252 = vpop.f32.mrb[0].mxu0
        %2253 = vmatprep.mubr.bf16.mxu0 0
        %2254 = vmatmul.mubr.bf16.gmra.mrb[0].mxu0 %v2193
        %v2255 = vpop.f32.mrb[0].mxu0
        %v2256 = vadd.f32 0.0, %v2255
        %v2257 = vpop.f32.mrb[0].mxu0
        %v2258 = vpop.f32.mrb[0].mxu0
        %v2259 = vadd.f32 0.0, %v2258
        %v2260 = vpop.f32.mrb[0].mxu0
        %2261 = vmatprep.mubr.bf16.mxu0 0
        %2262 = vmatmul.mubr.bf16.gmra.mrb[0].mxu0 %v2196
        %v2263 = vpop.f32.mrb[0].mxu0
        %v2264 = vadd.f32 0.0, %v2263
        %v2265 = vpop.f32.mrb[0].mxu0
        %v2266 = vpop.f32.mrb[0].mxu0
        %v2267 = vadd.f32 0.0, %v2266
        %v2268 = vpop.f32.mrb[0].mxu0
        %2269 = vmatprep.mubr.bf16.mxu0 0
        %2270 = vmatmul.mubr.bf16.gmra.mrb[0].mxu0 %v2199
        %v2271 = vpop.f32.mrb[0].mxu0
        %v2272 = vadd.f32 0.0, %v2271
        %v2273 = vpop.f32.mrb[0].mxu0
        %v2274 = vpop.f32.mrb[0].mxu0
        %v2275 = vadd.f32 0.0, %v2274
        %v2276 = vpop.f32.mrb[0].mxu0
        %2277 = vmatprep.mubr.bf16.mxu0 0
        %2278 = vmatmul.mubr.bf16.gmra.mrb[0].mxu0 %v2202
        %v2279 = vpop.f32.mrb[0].mxu0
        %v2280 = vadd.f32 0.0, %v2279
        %v2281 = vpop.f32.mrb[0].mxu0
        %v2282 = vpop.f32.mrb[0].mxu0
        %v2283 = vadd.f32 0.0, %v2282
        %v2284 = vpop.f32.mrb[0].mxu0
        %2285 = vmatprep.mubr.bf16.mxu0 0
        %2286 = vmatmul.mubr.bf16.gmra.mrb[0].mxu0 %v2205
        %v2287 = vpop.f32.mrb[0].mxu0
        %v2288 = vadd.f32 0.0, %v2287
        %v2289 = vpop.f32.mrb[0].mxu0
        %v2290 = vpop.f32.mrb[0].mxu0
        %v2291 = vadd.f32 0.0, %v2290
        %v2292 = vpop.f32.mrb[0].mxu0
        %2293 = vmatprep.mubr.bf16.mxu0 0
        %2294 = vmatmul.mubr.bf16.gmra.mrb[0].mxu0 %v2208
        %v2295 = vpop.f32.mrb[0].mxu0
        %v2296 = vadd.f32 0.0, %v2295
        %v2297 = vpop.f32.mrb[0].mxu0
        %v2298 = vpop.f32.mrb[0].mxu0
        %v2299 = vadd.f32 0.0, %v2298
        %v2300 = vpop.f32.mrb[0].mxu0
        %2301 = vmatprep.mubr.bf16.mxu0 0
        %2302 = vmatmul.mubr.bf16.gmra.mrb[0].mxu0 %v2211
        %v2303 = vpop.f32.mrb[0].mxu0
        %v2304 = vadd.f32 0.0, %v2303
        %v2305 = vpop.f32.mrb[0].mxu0
        %v2306 = vpop.f32.mrb[0].mxu0
        %v2307 = vadd.f32 0.0, %v2306
        %v2308 = vpop.f32.mrb[0].mxu0
        %2309 = vdwg.mxu0
        %v2314 = vunpack.c.l.b16 %v1252
        %v2315 = vunpack.c.l.b16 %v1253
        %v2316 = vunpack.c.l.b16 %v1254
        %v2317 = vunpack.c.l.b16 %v1255
        %v2318 = vpack.c.b16 %v2315, %v2314
        %v2319 = vpack.c.b16 %v2317, %v2316
        %v2323 = vsel %vm1292, %v1687, 0
        %v2326 = vsel %vm1292, %v1688, 0
        %v2329 = vsel %vm1292, %v1689, 0
        %v2332 = vsel %vm1292, %v1690, 0
        %v2335 = vsel %vm1292, %v1691, 0
        %v2338 = vsel %vm1292, %v1692, 0
        %v2341 = vsel %vm1292, %v1693, 0
        %v2344 = vsel %vm1292, %v1694, 0
        %2346 = vmatprep.subr.bf16.mxu0 0
        %2347 = vmatpush1.bf16.msra.mxu0 %v2318
        %2348 = vmatprep.subr.bf16.mxu0 0
        %2349 = vmatpush1.bf16.msra.mxu0 %v2319
        %2350 = vmatprep.subr.bf16.mxu0 0
        %2351 = vmatpush1.bf16.msra.mxu0 0
        %2352 = vmatprep.subr.bf16.mxu0 0
        %2353 = vmatpush1.bf16.msra.mxu0 0
        %2354 = vmatprep.subr.bf16.mxu0 0
        %2355 = vmatpush1.bf16.msra.mxu0 0
        %2356 = vmatprep.subr.bf16.mxu0 0
        %2357 = vmatpush1.bf16.msra.mxu0 0
        %2358 = vmatprep.subr.bf16.mxu0 0
        %2359 = vmatpush1.bf16.msra.mxu0 0
        %2360 = vmatprep.subr.bf16.mxu0 0
        %2361 = vmatpush1.bf16.msra.mxu0 0
        %2362 = vmatprep.subr.bf16.mxu0 0
        %2363 = vmatpush1.bf16.msra.mxu0 0
        %2364 = vmatprep.subr.bf16.mxu0 0
        %2365 = vmatpush1.bf16.msra.mxu0 0
        %2366 = vmatprep.subr.bf16.mxu0 0
        %2367 = vmatpush1.bf16.msra.mxu0 0
        %2368 = vmatprep.subr.bf16.mxu0 0
        %2369 = vmatpush1.bf16.msra.mxu0 0
        %2370 = vmatprep.subr.bf16.mxu0 0
        %2371 = vmatpush1.bf16.msra.mxu0 0
        %2372 = vmatprep.subr.bf16.mxu0 0
        %2373 = vmatpush1.bf16.msra.mxu0 0
        %2374 = vmatprep.subr.bf16.mxu0 0
        %2375 = vmatpush1.bf16.msra.mxu0 0
        %2376 = vmatprep.subr.bf16.mxu0 0
        %2377 = vmatpush1.bf16.msra.mxu0 0
        %2378 = vmatprep.mubr.bf16.mxu0 0
        %2379 = vmatmul.mubr.bf16.gmra.mrb[0].mxu0 %v2323
        %v2380 = vpop.f32.mrb[0].mxu0
        %v2381 = vadd.f32 %v2248, %v2380
        %v2382 = vpop.f32.mrb[0].mxu0
        %v2383 = vpop.f32.mrb[0].mxu0
        %v2384 = vadd.f32 %v2251, %v2383
        %v2385 = vpop.f32.mrb[0].mxu0
        %2386 = vmatprep.mubr.bf16.mxu0 0
        %2387 = vmatmul.mubr.bf16.gmra.mrb[0].mxu0 %v2326
        %v2388 = vpop.f32.mrb[0].mxu0
        %v2389 = vadd.f32 %v2256, %v2388
        %v2390 = vpop.f32.mrb[0].mxu0
        %v2391 = vpop.f32.mrb[0].mxu0
        %v2392 = vadd.f32 %v2259, %v2391
        %v2393 = vpop.f32.mrb[0].mxu0
        %2394 = vmatprep.mubr.bf16.mxu0 0
        %2395 = vmatmul.mubr.bf16.gmra.mrb[0].mxu0 %v2329
        %v2396 = vpop.f32.mrb[0].mxu0
        %v2397 = vadd.f32 %v2264, %v2396
        %v2398 = vpop.f32.mrb[0].mxu0
        %v2399 = vpop.f32.mrb[0].mxu0
        %v2400 = vadd.f32 %v2267, %v2399
        %v2401 = vpop.f32.mrb[0].mxu0
        %2402 = vmatprep.mubr.bf16.mxu0 0
        %2403 = vmatmul.mubr.bf16.gmra.mrb[0].mxu0 %v2332
        %v2404 = vpop.f32.mrb[0].mxu0
        %v2405 = vadd.f32 %v2272, %v2404
        %v2406 = vpop.f32.mrb[0].mxu0
        %v2407 = vpop.f32.mrb[0].mxu0
        %v2408 = vadd.f32 %v2275, %v2407
        %v2409 = vpop.f32.mrb[0].mxu0
        %2410 = vmatprep.mubr.bf16.mxu0 0
        %2411 = vmatmul.mubr.bf16.gmra.mrb[0].mxu0 %v2335
        %v2412 = vpop.f32.mrb[0].mxu0
        %v2413 = vadd.f32 %v2280, %v2412
        %v2414 = vpop.f32.mrb[0].mxu0
        %v2415 = vpop.f32.mrb[0].mxu0
        %v2416 = vadd.f32 %v2283, %v2415
        %v2417 = vpop.f32.mrb[0].mxu0
        %2418 = vmatprep.mubr.bf16.mxu0 0
        %2419 = vmatmul.mubr.bf16.gmra.mrb[0].mxu0 %v2338
        %v2420 = vpop.f32.mrb[0].mxu0
        %v2421 = vadd.f32 %v2288, %v2420
        %v2422 = vpop.f32.mrb[0].mxu0
        %v2423 = vpop.f32.mrb[0].mxu0
        %v2424 = vadd.f32 %v2291, %v2423
        %v2425 = vpop.f32.mrb[0].mxu0
        %2426 = vmatprep.mubr.bf16.mxu0 0
        %2427 = vmatmul.mubr.bf16.gmra.mrb[0].mxu0 %v2341
        %v2428 = vpop.f32.mrb[0].mxu0
        %v2429 = vadd.f32 %v2296, %v2428
        %v2430 = vpop.f32.mrb[0].mxu0
        %v2431 = vpop.f32.mrb[0].mxu0
        %v2432 = vadd.f32 %v2299, %v2431
        %v2433 = vpop.f32.mrb[0].mxu0
        %2434 = vmatprep.mubr.bf16.mxu0 0
        %2435 = vmatmul.mubr.bf16.gmra.mrb[0].mxu0 %v2344
        %v2436 = vpop.f32.mrb[0].mxu0
        %v2437 = vadd.f32 %v2304, %v2436
        %v2438 = vpop.f32.mrb[0].mxu0
        %v2439 = vpop.f32.mrb[0].mxu0
        %v2440 = vadd.f32 %v2307, %v2439
        %v2441 = vpop.f32.mrb[0].mxu0
        %2442 = vdwg.mxu0
        %2443 = vrot.lane.b32.xlu0 %v1268, 64
        %v2444 = vpop.permute.xlu0 %2443
        %2445 = vrot.lane.b32.xlu0 %v1269, 64
        %v2446 = vpop.permute.xlu0 %2445
        %2447 = vrot.lane.b32.xlu0 %v1270, 64
        %v2448 = vpop.permute.xlu0 %2447
        %2449 = vrot.lane.b32.xlu0 %v1271, 64
        %v2450 = vpop.permute.xlu0 %2449
        %2451 = vrot.lane.b32.xlu0 %v1272, 64
        %v2452 = vpop.permute.xlu0 %2451
        %2453 = vrot.lane.b32.xlu0 %v1273, 64
        %v2454 = vpop.permute.xlu0 %2453
        %2455 = vrot.lane.b32.xlu0 %v1274, 64
        %v2456 = vpop.permute.xlu0 %2455
        %2457 = vrot.lane.b32.xlu0 %v1275, 64
        %v2458 = vpop.permute.xlu0 %2457
        %2459 = vrot.lane.b32.xlu0 %v1276, 64
        %v2460 = vpop.permute.xlu0 %2459
        %2461 = vrot.lane.b32.xlu0 %v1277, 64
        %v2462 = vpop.permute.xlu0 %2461
        %2463 = vrot.lane.b32.xlu0 %v1278, 64
        %v2464 = vpop.permute.xlu0 %2463
        %2465 = vrot.lane.b32.xlu0 %v1279, 64
        %v2466 = vpop.permute.xlu0 %2465
        %2467 = vrot.lane.b32.xlu0 %v1280, 64
        %v2468 = vpop.permute.xlu0 %2467
        %2469 = vrot.lane.b32.xlu0 %v1281, 64
        %v2470 = vpop.permute.xlu0 %2469
        %2471 = vrot.lane.b32.xlu0 %v1282, 64
        %v2472 = vpop.permute.xlu0 %2471
        %2473 = vrot.lane.b32.xlu0 %v1283, 64
        %v2474 = vpop.permute.xlu0 %2473
        %v2476 = vsel %vm1292, %v2444, 0
        %v2479 = vsel %vm1292, %v2446, 0
        %v2482 = vsel %vm1292, %v2448, 0
        %v2485 = vsel %vm1292, %v2450, 0
        %v2488 = vsel %vm1292, %v2452, 0
        %v2491 = vsel %vm1292, %v2454, 0
        %v2494 = vsel %vm1292, %v2456, 0
        %v2497 = vsel %vm1292, %v2458, 0
        %v2500 = vsel %vm1292, %v2460, 0
        %v2503 = vsel %vm1292, %v2462, 0
        %v2506 = vsel %vm1292, %v2464, 0
        %v2509 = vsel %vm1292, %v2466, 0
        %v2512 = vsel %vm1292, %v2468, 0
        %v2515 = vsel %vm1292, %v2470, 0
        %v2518 = vsel %vm1292, %v2472, 0
        %v2521 = vsel %vm1292, %v2474, 0
        %2523 = vmatprep.subr.bf16.mxu0 0
        %2524 = vmatpush1.bf16.xpose.msra.mxu0 %v2500
        %2525 = vmatprep.subr.bf16.mxu0 0
        %2526 = vmatpush1.bf16.xpose.msra.mxu0 %v2503
        %2527 = vmatprep.subr.bf16.mxu0 0
        %2528 = vmatpush1.bf16.xpose.msra.mxu0 %v2506
        %2529 = vmatprep.subr.bf16.mxu0 0
        %2530 = vmatpush1.bf16.xpose.msra.mxu0 %v2509
        %2531 = vmatprep.subr.bf16.mxu0 0
        %2532 = vmatpush1.bf16.xpose.msra.mxu0 %v2512
        %2533 = vmatprep.subr.bf16.mxu0 0
        %2534 = vmatpush1.bf16.xpose.msra.mxu0 %v2515
        %2535 = vmatprep.subr.bf16.mxu0 0
        %2536 = vmatpush1.bf16.xpose.msra.mxu0 %v2518
        %2537 = vmatprep.subr.bf16.mxu0 0
        %2538 = vmatpush1.bf16.xpose.msra.mxu0 %v2521
        %2539 = vmatprep.subr.bf16.mxu0 0
        %2540 = vmatpush1.bf16.xpose.msra.mxu0 0
        %2541 = vmatprep.subr.bf16.mxu0 0
        %2542 = vmatpush1.bf16.xpose.msra.mxu0 0
        %2543 = vmatprep.subr.bf16.mxu0 0
        %2544 = vmatpush1.bf16.xpose.msra.mxu0 0
        %2545 = vmatprep.subr.bf16.mxu0 0
        %2546 = vmatpush1.bf16.xpose.msra.mxu0 0
        %2547 = vmatprep.subr.bf16.mxu0 0
        %2548 = vmatpush1.bf16.xpose.msra.mxu0 0
        %2549 = vmatprep.subr.bf16.mxu0 0
        %2550 = vmatpush1.bf16.xpose.msra.mxu0 0
        %2551 = vmatprep.subr.bf16.mxu0 0
        %2552 = vmatpush1.bf16.xpose.msra.mxu0 0
        %2553 = vmatprep.subr.bf16.mxu0 0
        %2554 = vmatpush1.bf16.xpose.msra.mxu0 0
        %2555 = vmatprep.mubr.bf16.mxu0 0
        %2556 = vmatmul.mubr.bf16.gmra.mrb[0].mxu0 %v2476
        %v2557 = vpop.f32.mrb[0].mxu0
        %v2558 = vadd.f32 0.0, %v2557
        %v2559 = vpop.f32.mrb[0].mxu0
        %v2560 = vpop.f32.mrb[0].mxu0
        %v2561 = vadd.f32 0.0, %v2560
        %v2562 = vpop.f32.mrb[0].mxu0
        %2563 = vmatprep.mubr.bf16.mxu0 0
        %2564 = vmatmul.mubr.bf16.gmra.mrb[0].mxu0 %v2479
        %v2565 = vpop.f32.mrb[0].mxu0
        %v2566 = vadd.f32 0.0, %v2565
        %v2567 = vpop.f32.mrb[0].mxu0
        %v2568 = vpop.f32.mrb[0].mxu0
        %v2569 = vadd.f32 0.0, %v2568
        %v2570 = vpop.f32.mrb[0].mxu0
        %2571 = vmatprep.mubr.bf16.mxu0 0
        %2572 = vmatmul.mubr.bf16.gmra.mrb[0].mxu0 %v2482
        %v2573 = vpop.f32.mrb[0].mxu0
        %v2574 = vadd.f32 0.0, %v2573
        %v2575 = vpop.f32.mrb[0].mxu0
        %v2576 = vpop.f32.mrb[0].mxu0
        %v2577 = vadd.f32 0.0, %v2576
        %v2578 = vpop.f32.mrb[0].mxu0
        %2579 = vmatprep.mubr.bf16.mxu0 0
        %2580 = vmatmul.mubr.bf16.gmra.mrb[0].mxu0 %v2485
        %v2581 = vpop.f32.mrb[0].mxu0
        %v2582 = vadd.f32 0.0, %v2581
        %v2583 = vpop.f32.mrb[0].mxu0
        %v2584 = vpop.f32.mrb[0].mxu0
        %v2585 = vadd.f32 0.0, %v2584
        %v2586 = vpop.f32.mrb[0].mxu0
        %2587 = vmatprep.mubr.bf16.mxu0 0
        %2588 = vmatmul.mubr.bf16.gmra.mrb[0].mxu0 %v2488
        %v2589 = vpop.f32.mrb[0].mxu0
        %v2590 = vadd.f32 0.0, %v2589
        %v2591 = vpop.f32.mrb[0].mxu0
        %v2592 = vpop.f32.mrb[0].mxu0
        %v2593 = vadd.f32 0.0, %v2592
        %v2594 = vpop.f32.mrb[0].mxu0
        %2595 = vmatprep.mubr.bf16.mxu0 0
        %2596 = vmatmul.mubr.bf16.gmra.mrb[0].mxu0 %v2491
        %v2597 = vpop.f32.mrb[0].mxu0
        %v2598 = vadd.f32 0.0, %v2597
        %v2599 = vpop.f32.mrb[0].mxu0
        %v2600 = vpop.f32.mrb[0].mxu0
        %v2601 = vadd.f32 0.0, %v2600
        %v2602 = vpop.f32.mrb[0].mxu0
        %2603 = vmatprep.mubr.bf16.mxu0 0
        %2604 = vmatmul.mubr.bf16.gmra.mrb[0].mxu0 %v2494
        %v2605 = vpop.f32.mrb[0].mxu0
        %v2606 = vadd.f32 0.0, %v2605
        %v2607 = vpop.f32.mrb[0].mxu0
        %v2608 = vpop.f32.mrb[0].mxu0
        %v2609 = vadd.f32 0.0, %v2608
        %v2610 = vpop.f32.mrb[0].mxu0
        %2611 = vmatprep.mubr.bf16.mxu0 0
        %2612 = vmatmul.mubr.bf16.gmra.mrb[0].mxu0 %v2497
        %v2613 = vpop.f32.mrb[0].mxu0
        %v2614 = vadd.f32 0.0, %v2613
        %v2615 = vpop.f32.mrb[0].mxu0
        %v2616 = vpop.f32.mrb[0].mxu0
        %v2617 = vadd.f32 0.0, %v2616
        %v2618 = vpop.f32.mrb[0].mxu0
        %2619 = vdwg.mxu0
        %2620 = vmax.xlane.f32.xlu0 %v2558
        %v2621 = vpop.xlane.xlu0 %2620
        %2622 = vmax.xlane.f32.xlu0 %v2561
        %v2623 = vpop.xlane.xlu0 %2622
        %2624 = vmax.xlane.f32.xlu0 %v2566
        %v2625 = vpop.xlane.xlu0 %2624
        %2626 = vmax.xlane.f32.xlu0 %v2569
        %v2627 = vpop.xlane.xlu0 %2626
        %2628 = vmax.xlane.f32.xlu0 %v2574
        %v2629 = vpop.xlane.xlu0 %2628
        %2630 = vmax.xlane.f32.xlu0 %v2577
        %v2631 = vpop.xlane.xlu0 %2630
        %2632 = vmax.xlane.f32.xlu0 %v2582
        %v2633 = vpop.xlane.xlu0 %2632
        %2634 = vmax.xlane.f32.xlu0 %v2585
        %v2635 = vpop.xlane.xlu0 %2634
        %2636 = vmax.xlane.f32.xlu0 %v2590
        %v2637 = vpop.xlane.xlu0 %2636
        %2638 = vmax.xlane.f32.xlu0 %v2593
        %v2639 = vpop.xlane.xlu0 %2638
        %2640 = vmax.xlane.f32.xlu0 %v2598
        %v2641 = vpop.xlane.xlu0 %2640
        %2642 = vmax.xlane.f32.xlu0 %v2601
        %v2643 = vpop.xlane.xlu0 %2642
        %2644 = vmax.xlane.f32.xlu0 %v2606
        %v2645 = vpop.xlane.xlu0 %2644
        %2646 = vmax.xlane.f32.xlu0 %v2609
        %v2647 = vpop.xlane.xlu0 %2646
        %2648 = vmax.xlane.f32.xlu0 %v2614
        %v2649 = vpop.xlane.xlu0 %2648
        %2650 = vmax.xlane.f32.xlu0 %v2617
        %v2651 = vpop.xlane.xlu0 %2650
        %v2652 = vsub.f32 %v2558, %v2621
        %v2653 = vsub.f32 %v2561, %v2623
        %v2654 = vsub.f32 %v2566, %v2625
        %v2655 = vsub.f32 %v2569, %v2627
        %v2656 = vsub.f32 %v2574, %v2629
        %v2657 = vsub.f32 %v2577, %v2631
        %v2658 = vsub.f32 %v2582, %v2633
        %v2659 = vsub.f32 %v2585, %v2635
        %v2660 = vsub.f32 %v2590, %v2637
        %v2661 = vsub.f32 %v2593, %v2639
        %v2662 = vsub.f32 %v2598, %v2641
        %v2663 = vsub.f32 %v2601, %v2643
        %v2664 = vsub.f32 %v2606, %v2645
        %v2665 = vsub.f32 %v2609, %v2647
        %v2666 = vsub.f32 %v2614, %v2649
        %v2667 = vsub.f32 %v2617, %v2651
        %v2668 = vmul.f32 %v2652, 1.442695
        %v2669 = vpow.pop %v2668
        %v2670 = vmul.f32 %v2653, 1.442695
        %v2671 = vpow.pop %v2670
        %v2672 = vmul.f32 %v2654, 1.442695
        %v2673 = vpow.pop %v2672
        %v2674 = vmul.f32 %v2655, 1.442695
        %v2675 = vpow.pop %v2674
        %v2676 = vmul.f32 %v2656, 1.442695
        %v2677 = vpow.pop %v2676
        %v2678 = vmul.f32 %v2657, 1.442695
        %v2679 = vpow.pop %v2678
        %v2680 = vmul.f32 %v2658, 1.442695
        %v2681 = vpow.pop %v2680
        %v2682 = vmul.f32 %v2659, 1.442695
        %v2683 = vpow.pop %v2682
        %v2684 = vmul.f32 %v2660, 1.442695
        %v2685 = vpow.pop %v2684
        %v2686 = vmul.f32 %v2661, 1.442695
        %v2687 = vpow.pop %v2686
        %v2688 = vmul.f32 %v2662, 1.442695
        %v2689 = vpow.pop %v2688
        %v2690 = vmul.f32 %v2663, 1.442695
        %v2691 = vpow.pop %v2690
        %v2692 = vmul.f32 %v2664, 1.442695
        %v2693 = vpow.pop %v2692
        %v2694 = vmul.f32 %v2665, 1.442695
        %v2695 = vpow.pop %v2694
        %v2696 = vmul.f32 %v2666, 1.442695
        %v2697 = vpow.pop %v2696
        %v2698 = vmul.f32 %v2667, 1.442695
        %v2699 = vpow.pop %v2698
        %2700 = vadd.xlane.f32.xlu0 %v2669
        %v2701 = vpop.xlane.xlu0 %2700
        %2702 = vadd.xlane.f32.xlu0 %v2671
        %v2703 = vpop.xlane.xlu0 %2702
        %2704 = vadd.xlane.f32.xlu0 %v2673
        %v2705 = vpop.xlane.xlu0 %2704
        %2706 = vadd.xlane.f32.xlu0 %v2675
        %v2707 = vpop.xlane.xlu0 %2706
        %2708 = vadd.xlane.f32.xlu0 %v2677
        %v2709 = vpop.xlane.xlu0 %2708
        %2710 = vadd.xlane.f32.xlu0 %v2679
        %v2711 = vpop.xlane.xlu0 %2710
        %2712 = vadd.xlane.f32.xlu0 %v2681
        %v2713 = vpop.xlane.xlu0 %2712
        %2714 = vadd.xlane.f32.xlu0 %v2683
        %v2715 = vpop.xlane.xlu0 %2714
        %2716 = vadd.xlane.f32.xlu0 %v2685
        %v2717 = vpop.xlane.xlu0 %2716
        %2718 = vadd.xlane.f32.xlu0 %v2687
        %v2719 = vpop.xlane.xlu0 %2718
        %2720 = vadd.xlane.f32.xlu0 %v2689
        %v2721 = vpop.xlane.xlu0 %2720
        %2722 = vadd.xlane.f32.xlu0 %v2691
        %v2723 = vpop.xlane.xlu0 %2722
        %2724 = vadd.xlane.f32.xlu0 %v2693
        %v2725 = vpop.xlane.xlu0 %2724
        %2726 = vadd.xlane.f32.xlu0 %v2695
        %v2727 = vpop.xlane.xlu0 %2726
        %2728 = vadd.xlane.f32.xlu0 %v2697
        %v2729 = vpop.xlane.xlu0 %2728
        %2730 = vadd.xlane.f32.xlu0 %v2699
        %v2731 = vpop.xlane.xlu0 %2730
        %v2732 = vrcp.pop %v2701
        %v2733 = vrcp.pop %v2703
        %v2734 = vrcp.pop %v2705
        %v2735 = vrcp.pop %v2707
        %v2736 = vrcp.pop %v2709
        %v2737 = vrcp.pop %v2711
        %v2738 = vrcp.pop %v2713
        %v2739 = vrcp.pop %v2715
        %v2740 = vrcp.pop %v2717
        %v2741 = vrcp.pop %v2719
        %v2742 = vrcp.pop %v2721
        %v2743 = vrcp.pop %v2723
        %v2744 = vrcp.pop %v2725
        %v2745 = vrcp.pop %v2727
        %v2746 = vrcp.pop %v2729
        %v2747 = vrcp.pop %v2731
        %v2748 = vmul.f32 %v2669, %v2732
        %v2749 = vmul.f32 %v2671, %v2733
        %v2750 = vmul.f32 %v2673, %v2734
        %v2751 = vmul.f32 %v2675, %v2735
        %v2752 = vmul.f32 %v2677, %v2736
        %v2753 = vmul.f32 %v2679, %v2737
        %v2754 = vmul.f32 %v2681, %v2738
        %v2755 = vmul.f32 %v2683, %v2739
        %v2756 = vmul.f32 %v2685, %v2740
        %v2757 = vmul.f32 %v2687, %v2741
        %v2758 = vmul.f32 %v2689, %v2742
        %v2759 = vmul.f32 %v2691, %v2743
        %v2760 = vmul.f32 %v2693, %v2744
        %v2761 = vmul.f32 %v2695, %v2745
        %v2762 = vmul.f32 %v2697, %v2746
        %v2763 = vmul.f32 %v2699, %v2747
        %v2764 = vpack.c.bf16 %v2749, %v2748
        %v2765 = vpack.c.bf16 %v2751, %v2750
        %v2766 = vpack.c.bf16 %v2753, %v2752
        %v2767 = vpack.c.bf16 %v2755, %v2754
        %v2768 = vpack.c.bf16 %v2757, %v2756
        %v2769 = vpack.c.bf16 %v2759, %v2758
        %v2770 = vpack.c.bf16 %v2761, %v2760
        %v2771 = vpack.c.bf16 %v2763, %v2762
        %2772 = vrot.lane.b32.xlu0 %v1284, 64
        %v2773 = vpop.permute.xlu0 %2772
        %2774 = vrot.lane.b32.xlu0 %v1285, 64
        %v2775 = vpop.permute.xlu0 %2774
        %2776 = vrot.lane.b32.xlu0 %v1286, 64
        %v2777 = vpop.permute.xlu0 %2776
        %2778 = vrot.lane.b32.xlu0 %v1287, 64
        %v2779 = vpop.permute.xlu0 %2778
        %2780 = vrot.lane.b32.xlu0 %v1288, 64
        %v2781 = vpop.permute.xlu0 %2780
        %2782 = vrot.lane.b32.xlu0 %v1289, 64
        %v2783 = vpop.permute.xlu0 %2782
        %2784 = vrot.lane.b32.xlu0 %v1290, 64
        %v2785 = vpop.permute.xlu0 %2784
        %2786 = vrot.lane.b32.xlu0 %v1291, 64
        %v2787 = vpop.permute.xlu0 %2786
        %2796 = vmatprep.subr.bf16.mxu0 0
        %2797 = vmatpush1.bf16.msra.mxu0 %v2773
        %2798 = vmatprep.subr.bf16.mxu0 0
        %2799 = vmatpush1.bf16.msra.mxu0 %v2775
        %2800 = vmatprep.subr.bf16.mxu0 0
        %2801 = vmatpush1.bf16.msra.mxu0 %v2777
        %2802 = vmatprep.subr.bf16.mxu0 0
        %2803 = vmatpush1.bf16.msra.mxu0 %v2779
        %2804 = vmatprep.subr.bf16.mxu0 0
        %2805 = vmatpush1.bf16.msra.mxu0 %v2781
        %2806 = vmatprep.subr.bf16.mxu0 0
        %2807 = vmatpush1.bf16.msra.mxu0 %v2783
        %2808 = vmatprep.subr.bf16.mxu0 0
        %2809 = vmatpush1.bf16.msra.mxu0 %v2785
        %2810 = vmatprep.subr.bf16.mxu0 0
        %2811 = vmatpush1.bf16.msra.mxu0 %v2787
        %2812 = vmatprep.subr.bf16.mxu0 0
        %2813 = vmatpush1.bf16.msra.mxu0 0
        %2814 = vmatprep.subr.bf16.mxu0 0
        %2815 = vmatpush1.bf16.msra.mxu0 0
        %2816 = vmatprep.subr.bf16.mxu0 0
        %2817 = vmatpush1.bf16.msra.mxu0 0
        %2818 = vmatprep.subr.bf16.mxu0 0
        %2819 = vmatpush1.bf16.msra.mxu0 0
        %2820 = vmatprep.subr.bf16.mxu0 0
        %2821 = vmatpush1.bf16.msra.mxu0 0
        %2822 = vmatprep.subr.bf16.mxu0 0
        %2823 = vmatpush1.bf16.msra.mxu0 0
        %2824 = vmatprep.subr.bf16.mxu0 0
        %2825 = vmatpush1.bf16.msra.mxu0 0
        %2826 = vmatprep.subr.bf16.mxu0 0
        %2827 = vmatpush1.bf16.msra.mxu0 0
        %2828 = vmatprep.mubr.bf16.mxu0 0
        %2829 = vmatmul.mubr.bf16.gmra.mrb[0].mxu0 %v2764
        %v2830 = vpop.f32.mrb[0].mxu0
        %v2831 = vadd.f32 0.0, %v2830
        %v2832 = vpop.f32.mrb[0].mxu0
        %v2833 = vpop.f32.mrb[0].mxu0
        %v2834 = vadd.f32 0.0, %v2833
        %v2835 = vpop.f32.mrb[0].mxu0
        %2836 = vmatprep.mubr.bf16.mxu0 0
        %2837 = vmatmul.mubr.bf16.gmra.mrb[0].mxu0 %v2765
        %v2838 = vpop.f32.mrb[0].mxu0
        %v2839 = vadd.f32 0.0, %v2838
        %v2840 = vpop.f32.mrb[0].mxu0
        %v2841 = vpop.f32.mrb[0].mxu0
        %v2842 = vadd.f32 0.0, %v2841
        %v2843 = vpop.f32.mrb[0].mxu0
        %2844 = vmatprep.mubr.bf16.mxu0 0
        %2845 = vmatmul.mubr.bf16.gmra.mrb[0].mxu0 %v2766
        %v2846 = vpop.f32.mrb[0].mxu0
        %v2847 = vadd.f32 0.0, %v2846
        %v2848 = vpop.f32.mrb[0].mxu0
        %v2849 = vpop.f32.mrb[0].mxu0
        %v2850 = vadd.f32 0.0, %v2849
        %v2851 = vpop.f32.mrb[0].mxu0
        %2852 = vmatprep.mubr.bf16.mxu0 0
        %2853 = vmatmul.mubr.bf16.gmra.mrb[0].mxu0 %v2767
        %v2854 = vpop.f32.mrb[0].mxu0
        %v2855 = vadd.f32 0.0, %v2854
        %v2856 = vpop.f32.mrb[0].mxu0
        %v2857 = vpop.f32.mrb[0].mxu0
        %v2858 = vadd.f32 0.0, %v2857
        %v2859 = vpop.f32.mrb[0].mxu0
        %2860 = vmatprep.mubr.bf16.mxu0 0
        %2861 = vmatmul.mubr.bf16.gmra.mrb[0].mxu0 %v2768
        %v2862 = vpop.f32.mrb[0].mxu0
        %v2863 = vadd.f32 0.0, %v2862
        %v2864 = vpop.f32.mrb[0].mxu0
        %v2865 = vpop.f32.mrb[0].mxu0
        %v2866 = vadd.f32 0.0, %v2865
        %v2867 = vpop.f32.mrb[0].mxu0
        %2868 = vmatprep.mubr.bf16.mxu0 0
        %2869 = vmatmul.mubr.bf16.gmra.mrb[0].mxu0 %v2769
        %v2870 = vpop.f32.mrb[0].mxu0
        %v2871 = vadd.f32 0.0, %v2870
        %v2872 = vpop.f32.mrb[0].mxu0
        %v2873 = vpop.f32.mrb[0].mxu0
        %v2874 = vadd.f32 0.0, %v2873
        %v2875 = vpop.f32.mrb[0].mxu0
        %2876 = vmatprep.mubr.bf16.mxu0 0
        %2877 = vmatmul.mubr.bf16.gmra.mrb[0].mxu0 %v2770
        %v2878 = vpop.f32.mrb[0].mxu0
        %v2879 = vadd.f32 0.0, %v2878
        %v2880 = vpop.f32.mrb[0].mxu0
        %v2881 = vpop.f32.mrb[0].mxu0
        %v2882 = vadd.f32 0.0, %v2881
        %v2883 = vpop.f32.mrb[0].mxu0
        %2884 = vmatprep.mubr.bf16.mxu0 0
        %2885 = vmatmul.mubr.bf16.gmra.mrb[0].mxu0 %v2771
        %v2886 = vpop.f32.mrb[0].mxu0
        %v2887 = vadd.f32 0.0, %v2886
        %v2888 = vpop.f32.mrb[0].mxu0
        %v2889 = vpop.f32.mrb[0].mxu0
        %v2890 = vadd.f32 0.0, %v2889
        %v2891 = vpop.f32.mrb[0].mxu0
        %2892 = vdwg.mxu0
        %v2893 = vpack.c.bf16 %v2834, %v2831
        %v2894 = vpack.c.bf16 %v2842, %v2839
        %v2895 = vpack.c.bf16 %v2850, %v2847
        %v2896 = vpack.c.bf16 %v2858, %v2855
        %v2897 = vpack.c.bf16 %v2866, %v2863
        %v2898 = vpack.c.bf16 %v2874, %v2871
        %v2899 = vpack.c.bf16 %v2882, %v2879
        %v2900 = vpack.c.bf16 %v2890, %v2887
        %v2905 = vunpack.c.l.b16 %v1260
        %v2906 = vunpack.c.l.b16 %v1261
        %v2907 = vunpack.c.l.b16 %v1262
        %v2908 = vunpack.c.l.b16 %v1263
        %v2909 = vpack.c.b16 %v2906, %v2905
        %v2910 = vpack.c.b16 %v2908, %v2907
        %v2914 = vsel %vm1292, %v2893, 0
        %v2917 = vsel %vm1292, %v2894, 0
        %v2920 = vsel %vm1292, %v2895, 0
        %v2923 = vsel %vm1292, %v2896, 0
        %v2926 = vsel %vm1292, %v2897, 0
        %v2929 = vsel %vm1292, %v2898, 0
        %v2932 = vsel %vm1292, %v2899, 0
        %v2935 = vsel %vm1292, %v2900, 0
        %2937 = vmatprep.subr.bf16.mxu0 0
        %2938 = vmatpush1.bf16.msra.mxu0 %v2909
        %2939 = vmatprep.subr.bf16.mxu0 0
        %2940 = vmatpush1.bf16.msra.mxu0 %v2910
        %2941 = vmatprep.subr.bf16.mxu0 0
        %2942 = vmatpush1.bf16.msra.mxu0 0
        %2943 = vmatprep.subr.bf16.mxu0 0
        %2944 = vmatpush1.bf16.msra.mxu0 0
        %2945 = vmatprep.subr.bf16.mxu0 0
        %2946 = vmatpush1.bf16.msra.mxu0 0
        %2947 = vmatprep.subr.bf16.mxu0 0
        %2948 = vmatpush1.bf16.msra.mxu0 0
        %2949 = vmatprep.subr.bf16.mxu0 0
        %2950 = vmatpush1.bf16.msra.mxu0 0
        %2951 = vmatprep.subr.bf16.mxu0 0
        %2952 = vmatpush1.bf16.msra.mxu0 0
        %2953 = vmatprep.subr.bf16.mxu0 0
        %2954 = vmatpush1.bf16.msra.mxu0 0
        %2955 = vmatprep.subr.bf16.mxu0 0
        %2956 = vmatpush1.bf16.msra.mxu0 0
        %2957 = vmatprep.subr.bf16.mxu0 0
        %2958 = vmatpush1.bf16.msra.mxu0 0
        %2959 = vmatprep.subr.bf16.mxu0 0
        %2960 = vmatpush1.bf16.msra.mxu0 0
        %2961 = vmatprep.subr.bf16.mxu0 0
        %2962 = vmatpush1.bf16.msra.mxu0 0
        %2963 = vmatprep.subr.bf16.mxu0 0
        %2964 = vmatpush1.bf16.msra.mxu0 0
        %2965 = vmatprep.subr.bf16.mxu0 0
        %2966 = vmatpush1.bf16.msra.mxu0 0
        %2967 = vmatprep.subr.bf16.mxu0 0
        %2968 = vmatpush1.bf16.msra.mxu0 0
        %2969 = vmatprep.mubr.bf16.mxu0 0
        %2970 = vmatmul.mubr.bf16.gmra.mrb[0].mxu0 %v2914
        %v2971 = vpop.f32.mrb[0].mxu0
        %v2972 = vadd.f32 0.0, %v2971
        %v2973 = vpop.f32.mrb[0].mxu0
        %v2974 = vpop.f32.mrb[0].mxu0
        %v2975 = vadd.f32 0.0, %v2974
        %v2976 = vpop.f32.mrb[0].mxu0
        %2977 = vmatprep.mubr.bf16.mxu0 0
        %2978 = vmatmul.mubr.bf16.gmra.mrb[0].mxu0 %v2917
        %v2979 = vpop.f32.mrb[0].mxu0
        %v2980 = vadd.f32 0.0, %v2979
        %v2981 = vpop.f32.mrb[0].mxu0
        %v2982 = vpop.f32.mrb[0].mxu0
        %v2983 = vadd.f32 0.0, %v2982
        %v2984 = vpop.f32.mrb[0].mxu0
        %2985 = vmatprep.mubr.bf16.mxu0 0
        %2986 = vmatmul.mubr.bf16.gmra.mrb[0].mxu0 %v2920
        %v2987 = vpop.f32.mrb[0].mxu0
        %v2988 = vadd.f32 0.0, %v2987
        %v2989 = vpop.f32.mrb[0].mxu0
        %v2990 = vpop.f32.mrb[0].mxu0
        %v2991 = vadd.f32 0.0, %v2990
        %v2992 = vpop.f32.mrb[0].mxu0
        %2993 = vmatprep.mubr.bf16.mxu0 0
        %2994 = vmatmul.mubr.bf16.gmra.mrb[0].mxu0 %v2923
        %v2995 = vpop.f32.mrb[0].mxu0
        %v2996 = vadd.f32 0.0, %v2995
        %v2997 = vpop.f32.mrb[0].mxu0
        %v2998 = vpop.f32.mrb[0].mxu0
        %v2999 = vadd.f32 0.0, %v2998
        %v3000 = vpop.f32.mrb[0].mxu0
        %3001 = vmatprep.mubr.bf16.mxu0 0
        %3002 = vmatmul.mubr.bf16.gmra.mrb[0].mxu0 %v2926
        %v3003 = vpop.f32.mrb[0].mxu0
        %v3004 = vadd.f32 0.0, %v3003
        %v3005 = vpop.f32.mrb[0].mxu0
        %v3006 = vpop.f32.mrb[0].mxu0
        %v3007 = vadd.f32 0.0, %v3006
        %v3008 = vpop.f32.mrb[0].mxu0
        %3009 = vmatprep.mubr.bf16.mxu0 0
        %3010 = vmatmul.mubr.bf16.gmra.mrb[0].mxu0 %v2929
        %v3011 = vpop.f32.mrb[0].mxu0
        %v3012 = vadd.f32 0.0, %v3011
        %v3013 = vpop.f32.mrb[0].mxu0
        %v3014 = vpop.f32.mrb[0].mxu0
        %v3015 = vadd.f32 0.0, %v3014
        %v3016 = vpop.f32.mrb[0].mxu0
        %3017 = vmatprep.mubr.bf16.mxu0 0
        %3018 = vmatmul.mubr.bf16.gmra.mrb[0].mxu0 %v2932
        %v3019 = vpop.f32.mrb[0].mxu0
        %v3020 = vadd.f32 0.0, %v3019
        %v3021 = vpop.f32.mrb[0].mxu0
        %v3022 = vpop.f32.mrb[0].mxu0
        %v3023 = vadd.f32 0.0, %v3022
        %v3024 = vpop.f32.mrb[0].mxu0
        %3025 = vmatprep.mubr.bf16.mxu0 0
        %3026 = vmatmul.mubr.bf16.gmra.mrb[0].mxu0 %v2935
        %v3027 = vpop.f32.mrb[0].mxu0
        %v3028 = vadd.f32 0.0, %v3027
        %v3029 = vpop.f32.mrb[0].mxu0
        %v3030 = vpop.f32.mrb[0].mxu0
        %v3031 = vadd.f32 0.0, %v3030
        %v3032 = vpop.f32.mrb[0].mxu0
        %3033 = vdwg.mxu0
        %v3034 = vadd.f32 %v2381, %v2972
        %v3035 = vadd.f32 %v2384, %v2975
        %v3036 = vadd.f32 %v2389, %v2980
        %v3037 = vadd.f32 %v2392, %v2983
        %v3038 = vadd.f32 %v2397, %v2988
        %v3039 = vadd.f32 %v2400, %v2991
        %v3040 = vadd.f32 %v2405, %v2996
        %v3041 = vadd.f32 %v2408, %v2999
        %v3042 = vadd.f32 %v2413, %v3004
        %v3043 = vadd.f32 %v2416, %v3007
        %v3044 = vadd.f32 %v2421, %v3012
        %v3045 = vadd.f32 %v2424, %v3015
        %v3046 = vadd.f32 %v2429, %v3020
        %v3047 = vadd.f32 %v2432, %v3023
        %v3048 = vadd.f32 %v2437, %v3028
        %v3049 = vadd.f32 %v2440, %v3031
        %3050 = vrot.lane.b32.xlu0 %v1268, 32
        %v3051 = vpop.permute.xlu0 %3050
        %3052 = vrot.lane.b32.xlu0 %v1269, 32
        %v3053 = vpop.permute.xlu0 %3052
        %3054 = vrot.lane.b32.xlu0 %v1270, 32
        %v3055 = vpop.permute.xlu0 %3054
        %3056 = vrot.lane.b32.xlu0 %v1271, 32
        %v3057 = vpop.permute.xlu0 %3056
        %3058 = vrot.lane.b32.xlu0 %v1272, 32
        %v3059 = vpop.permute.xlu0 %3058
        %3060 = vrot.lane.b32.xlu0 %v1273, 32
        %v3061 = vpop.permute.xlu0 %3060
        %3062 = vrot.lane.b32.xlu0 %v1274, 32
        %v3063 = vpop.permute.xlu0 %3062
        %3064 = vrot.lane.b32.xlu0 %v1275, 32
        %v3065 = vpop.permute.xlu0 %3064
        %3066 = vrot.lane.b32.xlu0 %v1276, 32
        %v3067 = vpop.permute.xlu0 %3066
        %3068 = vrot.lane.b32.xlu0 %v1277, 32
        %v3069 = vpop.permute.xlu0 %3068
        %3070 = vrot.lane.b32.xlu0 %v1278, 32
        %v3071 = vpop.permute.xlu0 %3070
        %3072 = vrot.lane.b32.xlu0 %v1279, 32
        %v3073 = vpop.permute.xlu0 %3072
        %3074 = vrot.lane.b32.xlu0 %v1280, 32
        %v3075 = vpop.permute.xlu0 %3074
        %3076 = vrot.lane.b32.xlu0 %v1281, 32
        %v3077 = vpop.permute.xlu0 %3076
        %3078 = vrot.lane.b32.xlu0 %v1282, 32
        %v3079 = vpop.permute.xlu0 %3078
        %3080 = vrot.lane.b32.xlu0 %v1283, 32
        %v3081 = vpop.permute.xlu0 %3080
        %v3083 = vsel %vm1292, %v3051, 0
        %v3086 = vsel %vm1292, %v3053, 0
        %v3089 = vsel %vm1292, %v3055, 0
        %v3092 = vsel %vm1292, %v3057, 0
        %v3095 = vsel %vm1292, %v3059, 0
        %v3098 = vsel %vm1292, %v3061, 0
        %v3101 = vsel %vm1292, %v3063, 0
        %v3104 = vsel %vm1292, %v3065, 0
        %v3107 = vsel %vm1292, %v3067, 0
        %v3110 = vsel %vm1292, %v3069, 0
        %v3113 = vsel %vm1292, %v3071, 0
        %v3116 = vsel %vm1292, %v3073, 0
        %v3119 = vsel %vm1292, %v3075, 0
        %v3122 = vsel %vm1292, %v3077, 0
        %v3125 = vsel %vm1292, %v3079, 0
        %v3128 = vsel %vm1292, %v3081, 0
        %3130 = vmatprep.subr.bf16.mxu0 0
        %3131 = vmatpush1.bf16.xpose.msra.mxu0 %v3107
        %3132 = vmatprep.subr.bf16.mxu0 0
        %3133 = vmatpush1.bf16.xpose.msra.mxu0 %v3110
        %3134 = vmatprep.subr.bf16.mxu0 0
        %3135 = vmatpush1.bf16.xpose.msra.mxu0 %v3113
        %3136 = vmatprep.subr.bf16.mxu0 0
        %3137 = vmatpush1.bf16.xpose.msra.mxu0 %v3116
        %3138 = vmatprep.subr.bf16.mxu0 0
        %3139 = vmatpush1.bf16.xpose.msra.mxu0 %v3119
        %3140 = vmatprep.subr.bf16.mxu0 0
        %3141 = vmatpush1.bf16.xpose.msra.mxu0 %v3122
        %3142 = vmatprep.subr.bf16.mxu0 0
        %3143 = vmatpush1.bf16.xpose.msra.mxu0 %v3125
        %3144 = vmatprep.subr.bf16.mxu0 0
        %3145 = vmatpush1.bf16.xpose.msra.mxu0 %v3128
        %3146 = vmatprep.subr.bf16.mxu0 0
        %3147 = vmatpush1.bf16.xpose.msra.mxu0 0
        %3148 = vmatprep.subr.bf16.mxu0 0
        %3149 = vmatpush1.bf16.xpose.msra.mxu0 0
        %3150 = vmatprep.subr.bf16.mxu0 0
        %3151 = vmatpush1.bf16.xpose.msra.mxu0 0
        %3152 = vmatprep.subr.bf16.mxu0 0
        %3153 = vmatpush1.bf16.xpose.msra.mxu0 0
        %3154 = vmatprep.subr.bf16.mxu0 0
        %3155 = vmatpush1.bf16.xpose.msra.mxu0 0
        %3156 = vmatprep.subr.bf16.mxu0 0
        %3157 = vmatpush1.bf16.xpose.msra.mxu0 0
        %3158 = vmatprep.subr.bf16.mxu0 0
        %3159 = vmatpush1.bf16.xpose.msra.mxu0 0
        %3160 = vmatprep.subr.bf16.mxu0 0
        %3161 = vmatpush1.bf16.xpose.msra.mxu0 0
        %3162 = vmatprep.mubr.bf16.mxu0 0
        %3163 = vmatmul.mubr.bf16.gmra.mrb[0].mxu0 %v3083
        %v3164 = vpop.f32.mrb[0].mxu0
        %v3165 = vadd.f32 0.0, %v3164
        %v3166 = vpop.f32.mrb[0].mxu0
        %v3167 = vpop.f32.mrb[0].mxu0
        %v3168 = vadd.f32 0.0, %v3167
        %v3169 = vpop.f32.mrb[0].mxu0
        %3170 = vmatprep.mubr.bf16.mxu0 0
        %3171 = vmatmul.mubr.bf16.gmra.mrb[0].mxu0 %v3086
        %v3172 = vpop.f32.mrb[0].mxu0
        %v3173 = vadd.f32 0.0, %v3172
        %v3174 = vpop.f32.mrb[0].mxu0
        %v3175 = vpop.f32.mrb[0].mxu0
        %v3176 = vadd.f32 0.0, %v3175
        %v3177 = vpop.f32.mrb[0].mxu0
        %3178 = vmatprep.mubr.bf16.mxu0 0
        %3179 = vmatmul.mubr.bf16.gmra.mrb[0].mxu0 %v3089
        %v3180 = vpop.f32.mrb[0].mxu0
        %v3181 = vadd.f32 0.0, %v3180
        %v3182 = vpop.f32.mrb[0].mxu0
        %v3183 = vpop.f32.mrb[0].mxu0
        %v3184 = vadd.f32 0.0, %v3183
        %v3185 = vpop.f32.mrb[0].mxu0
        %3186 = vmatprep.mubr.bf16.mxu0 0
        %3187 = vmatmul.mubr.bf16.gmra.mrb[0].mxu0 %v3092
        %v3188 = vpop.f32.mrb[0].mxu0
        %v3189 = vadd.f32 0.0, %v3188
        %v3190 = vpop.f32.mrb[0].mxu0
        %v3191 = vpop.f32.mrb[0].mxu0
        %v3192 = vadd.f32 0.0, %v3191
        %v3193 = vpop.f32.mrb[0].mxu0
        %3194 = vmatprep.mubr.bf16.mxu0 0
        %3195 = vmatmul.mubr.bf16.gmra.mrb[0].mxu0 %v3095
        %v3196 = vpop.f32.mrb[0].mxu0
        %v3197 = vadd.f32 0.0, %v3196
        %v3198 = vpop.f32.mrb[0].mxu0
        %v3199 = vpop.f32.mrb[0].mxu0
        %v3200 = vadd.f32 0.0, %v3199
        %v3201 = vpop.f32.mrb[0].mxu0
        %3202 = vmatprep.mubr.bf16.mxu0 0
        %3203 = vmatmul.mubr.bf16.gmra.mrb[0].mxu0 %v3098
        %v3204 = vpop.f32.mrb[0].mxu0
        %v3205 = vadd.f32 0.0, %v3204
        %v3206 = vpop.f32.mrb[0].mxu0
        %v3207 = vpop.f32.mrb[0].mxu0
        %v3208 = vadd.f32 0.0, %v3207
        %v3209 = vpop.f32.mrb[0].mxu0
        %3210 = vmatprep.mubr.bf16.mxu0 0
        %3211 = vmatmul.mubr.bf16.gmra.mrb[0].mxu0 %v3101
        %v3212 = vpop.f32.mrb[0].mxu0
        %v3213 = vadd.f32 0.0, %v3212
        %v3214 = vpop.f32.mrb[0].mxu0
        %v3215 = vpop.f32.mrb[0].mxu0
        %v3216 = vadd.f32 0.0, %v3215
        %v3217 = vpop.f32.mrb[0].mxu0
        %3218 = vmatprep.mubr.bf16.mxu0 0
        %3219 = vmatmul.mubr.bf16.gmra.mrb[0].mxu0 %v3104
        %v3220 = vpop.f32.mrb[0].mxu0
        %v3221 = vadd.f32 0.0, %v3220
        %v3222 = vpop.f32.mrb[0].mxu0
        %v3223 = vpop.f32.mrb[0].mxu0
        %v3224 = vadd.f32 0.0, %v3223
        %v3225 = vpop.f32.mrb[0].mxu0
        %3226 = vdwg.mxu0
        %3227 = vmax.xlane.f32.xlu0 %v3165
        %v3228 = vpop.xlane.xlu0 %3227
        %3229 = vmax.xlane.f32.xlu0 %v3168
        %v3230 = vpop.xlane.xlu0 %3229
        %3231 = vmax.xlane.f32.xlu0 %v3173
        %v3232 = vpop.xlane.xlu0 %3231
        %3233 = vmax.xlane.f32.xlu0 %v3176
        %v3234 = vpop.xlane.xlu0 %3233
        %3235 = vmax.xlane.f32.xlu0 %v3181
        %v3236 = vpop.xlane.xlu0 %3235
        %3237 = vmax.xlane.f32.xlu0 %v3184
        %v3238 = vpop.xlane.xlu0 %3237
        %3239 = vmax.xlane.f32.xlu0 %v3189
        %v3240 = vpop.xlane.xlu0 %3239
        %3241 = vmax.xlane.f32.xlu0 %v3192
        %v3242 = vpop.xlane.xlu0 %3241
        %3243 = vmax.xlane.f32.xlu0 %v3197
        %v3244 = vpop.xlane.xlu0 %3243
        %3245 = vmax.xlane.f32.xlu0 %v3200
        %v3246 = vpop.xlane.xlu0 %3245
        %3247 = vmax.xlane.f32.xlu0 %v3205
        %v3248 = vpop.xlane.xlu0 %3247
        %3249 = vmax.xlane.f32.xlu0 %v3208
        %v3250 = vpop.xlane.xlu0 %3249
        %3251 = vmax.xlane.f32.xlu0 %v3213
        %v3252 = vpop.xlane.xlu0 %3251
        %3253 = vmax.xlane.f32.xlu0 %v3216
        %v3254 = vpop.xlane.xlu0 %3253
        %3255 = vmax.xlane.f32.xlu0 %v3221
        %v3256 = vpop.xlane.xlu0 %3255
        %3257 = vmax.xlane.f32.xlu0 %v3224
        %v3258 = vpop.xlane.xlu0 %3257
        %v3259 = vsub.f32 %v3165, %v3228
        %v3260 = vsub.f32 %v3168, %v3230
        %v3261 = vsub.f32 %v3173, %v3232
        %v3262 = vsub.f32 %v3176, %v3234
        %v3263 = vsub.f32 %v3181, %v3236
        %v3264 = vsub.f32 %v3184, %v3238
        %v3265 = vsub.f32 %v3189, %v3240
        %v3266 = vsub.f32 %v3192, %v3242
        %v3267 = vsub.f32 %v3197, %v3244
        %v3268 = vsub.f32 %v3200, %v3246
        %v3269 = vsub.f32 %v3205, %v3248
        %v3270 = vsub.f32 %v3208, %v3250
        %v3271 = vsub.f32 %v3213, %v3252
        %v3272 = vsub.f32 %v3216, %v3254
        %v3273 = vsub.f32 %v3221, %v3256
        %v3274 = vsub.f32 %v3224, %v3258
        %v3275 = vmul.f32 %v3259, 1.442695
        %v3276 = vpow.pop %v3275
        %v3277 = vmul.f32 %v3260, 1.442695
        %v3278 = vpow.pop %v3277
        %v3279 = vmul.f32 %v3261, 1.442695
        %v3280 = vpow.pop %v3279
        %v3281 = vmul.f32 %v3262, 1.442695
        %v3282 = vpow.pop %v3281
        %v3283 = vmul.f32 %v3263, 1.442695
        %v3284 = vpow.pop %v3283
        %v3285 = vmul.f32 %v3264, 1.442695
        %v3286 = vpow.pop %v3285
        %v3287 = vmul.f32 %v3265, 1.442695
        %v3288 = vpow.pop %v3287
        %v3289 = vmul.f32 %v3266, 1.442695
        %v3290 = vpow.pop %v3289
        %v3291 = vmul.f32 %v3267, 1.442695
        %v3292 = vpow.pop %v3291
        %v3293 = vmul.f32 %v3268, 1.442695
        %v3294 = vpow.pop %v3293
        %v3295 = vmul.f32 %v3269, 1.442695
        %v3296 = vpow.pop %v3295
        %v3297 = vmul.f32 %v3270, 1.442695
        %v3298 = vpow.pop %v3297
        %v3299 = vmul.f32 %v3271, 1.442695
        %v3300 = vpow.pop %v3299
        %v3301 = vmul.f32 %v3272, 1.442695
        %v3302 = vpow.pop %v3301
        %v3303 = vmul.f32 %v3273, 1.442695
        %v3304 = vpow.pop %v3303
        %v3305 = vmul.f32 %v3274, 1.442695
        %v3306 = vpow.pop %v3305
        %3307 = vadd.xlane.f32.xlu0 %v3276
        %v3308 = vpop.xlane.xlu0 %3307
        %3309 = vadd.xlane.f32.xlu0 %v3278
        %v3310 = vpop.xlane.xlu0 %3309
        %3311 = vadd.xlane.f32.xlu0 %v3280
        %v3312 = vpop.xlane.xlu0 %3311
        %3313 = vadd.xlane.f32.xlu0 %v3282
        %v3314 = vpop.xlane.xlu0 %3313
        %3315 = vadd.xlane.f32.xlu0 %v3284
        %v3316 = vpop.xlane.xlu0 %3315
        %3317 = vadd.xlane.f32.xlu0 %v3286
        %v3318 = vpop.xlane.xlu0 %3317
        %3319 = vadd.xlane.f32.xlu0 %v3288
        %v3320 = vpop.xlane.xlu0 %3319
        %3321 = vadd.xlane.f32.xlu0 %v3290
        %v3322 = vpop.xlane.xlu0 %3321
        %3323 = vadd.xlane.f32.xlu0 %v3292
        %v3324 = vpop.xlane.xlu0 %3323
        %3325 = vadd.xlane.f32.xlu0 %v3294
        %v3326 = vpop.xlane.xlu0 %3325
        %3327 = vadd.xlane.f32.xlu0 %v3296
        %v3328 = vpop.xlane.xlu0 %3327
        %3329 = vadd.xlane.f32.xlu0 %v3298
        %v3330 = vpop.xlane.xlu0 %3329
        %3331 = vadd.xlane.f32.xlu0 %v3300
        %v3332 = vpop.xlane.xlu0 %3331
        %3333 = vadd.xlane.f32.xlu0 %v3302
        %v3334 = vpop.xlane.xlu0 %3333
        %3335 = vadd.xlane.f32.xlu0 %v3304
        %v3336 = vpop.xlane.xlu0 %3335
        %3337 = vadd.xlane.f32.xlu0 %v3306
        %v3338 = vpop.xlane.xlu0 %3337
        %v3339 = vrcp.pop %v3308
        %v3340 = vrcp.pop %v3310
        %v3341 = vrcp.pop %v3312
        %v3342 = vrcp.pop %v3314
        %v3343 = vrcp.pop %v3316
        %v3344 = vrcp.pop %v3318
        %v3345 = vrcp.pop %v3320
        %v3346 = vrcp.pop %v3322
        %v3347 = vrcp.pop %v3324
        %v3348 = vrcp.pop %v3326
        %v3349 = vrcp.pop %v3328
        %v3350 = vrcp.pop %v3330
        %v3351 = vrcp.pop %v3332
        %v3352 = vrcp.pop %v3334
        %v3353 = vrcp.pop %v3336
        %v3354 = vrcp.pop %v3338
        %v3355 = vmul.f32 %v3276, %v3339
        %v3356 = vmul.f32 %v3278, %v3340
        %v3357 = vmul.f32 %v3280, %v3341
        %v3358 = vmul.f32 %v3282, %v3342
        %v3359 = vmul.f32 %v3284, %v3343
        %v3360 = vmul.f32 %v3286, %v3344
        %v3361 = vmul.f32 %v3288, %v3345
        %v3362 = vmul.f32 %v3290, %v3346
        %v3363 = vmul.f32 %v3292, %v3347
        %v3364 = vmul.f32 %v3294, %v3348
        %v3365 = vmul.f32 %v3296, %v3349
        %v3366 = vmul.f32 %v3298, %v3350
        %v3367 = vmul.f32 %v3300, %v3351
        %v3368 = vmul.f32 %v3302, %v3352
        %v3369 = vmul.f32 %v3304, %v3353
        %v3370 = vmul.f32 %v3306, %v3354
        %v3371 = vpack.c.bf16 %v3356, %v3355
        %v3372 = vpack.c.bf16 %v3358, %v3357
        %v3373 = vpack.c.bf16 %v3360, %v3359
        %v3374 = vpack.c.bf16 %v3362, %v3361
        %v3375 = vpack.c.bf16 %v3364, %v3363
        %v3376 = vpack.c.bf16 %v3366, %v3365
        %v3377 = vpack.c.bf16 %v3368, %v3367
        %v3378 = vpack.c.bf16 %v3370, %v3369
        %3379 = vrot.lane.b32.xlu0 %v1284, 32
        %v3380 = vpop.permute.xlu0 %3379
        %3381 = vrot.lane.b32.xlu0 %v1285, 32
        %v3382 = vpop.permute.xlu0 %3381
        %3383 = vrot.lane.b32.xlu0 %v1286, 32
        %v3384 = vpop.permute.xlu0 %3383
        %3385 = vrot.lane.b32.xlu0 %v1287, 32
        %v3386 = vpop.permute.xlu0 %3385
        %3387 = vrot.lane.b32.xlu0 %v1288, 32
        %v3388 = vpop.permute.xlu0 %3387
        %3389 = vrot.lane.b32.xlu0 %v1289, 32
        %v3390 = vpop.permute.xlu0 %3389
        %3391 = vrot.lane.b32.xlu0 %v1290, 32
        %v3392 = vpop.permute.xlu0 %3391
        %3393 = vrot.lane.b32.xlu0 %v1291, 32
        %v3394 = vpop.permute.xlu0 %3393
        %3403 = vmatprep.subr.bf16.mxu0 0
        %3404 = vmatpush1.bf16.msra.mxu0 %v3380
        %3405 = vmatprep.subr.bf16.mxu0 0
        %3406 = vmatpush1.bf16.msra.mxu0 %v3382
        %3407 = vmatprep.subr.bf16.mxu0 0
        %3408 = vmatpush1.bf16.msra.mxu0 %v3384
        %3409 = vmatprep.subr.bf16.mxu0 0
        %3410 = vmatpush1.bf16.msra.mxu0 %v3386
        %3411 = vmatprep.subr.bf16.mxu0 0
        %3412 = vmatpush1.bf16.msra.mxu0 %v3388
        %3413 = vmatprep.subr.bf16.mxu0 0
        %3414 = vmatpush1.bf16.msra.mxu0 %v3390
        %3415 = vmatprep.subr.bf16.mxu0 0
        %3416 = vmatpush1.bf16.msra.mxu0 %v3392
        %3417 = vmatprep.subr.bf16.mxu0 0
        %3418 = vmatpush1.bf16.msra.mxu0 %v3394
        %3419 = vmatprep.subr.bf16.mxu0 0
        %3420 = vmatpush1.bf16.msra.mxu0 0
        %3421 = vmatprep.subr.bf16.mxu0 0
        %3422 = vmatpush1.bf16.msra.mxu0 0
        %3423 = vmatprep.subr.bf16.mxu0 0
        %3424 = vmatpush1.bf16.msra.mxu0 0
        %3425 = vmatprep.subr.bf16.mxu0 0
        %3426 = vmatpush1.bf16.msra.mxu0 0
        %3427 = vmatprep.subr.bf16.mxu0 0
        %3428 = vmatpush1.bf16.msra.mxu0 0
        %3429 = vmatprep.subr.bf16.mxu0 0
        %3430 = vmatpush1.bf16.msra.mxu0 0
        %3431 = vmatprep.subr.bf16.mxu0 0
        %3432 = vmatpush1.bf16.msra.mxu0 0
        %3433 = vmatprep.subr.bf16.mxu0 0
        %3434 = vmatpush1.bf16.msra.mxu0 0
        %3435 = vmatprep.mubr.bf16.mxu0 0
        %3436 = vmatmul.mubr.bf16.gmra.mrb[0].mxu0 %v3371
        %v3437 = vpop.f32.mrb[0].mxu0
        %v3438 = vadd.f32 0.0, %v3437
        %v3439 = vpop.f32.mrb[0].mxu0
        %v3440 = vpop.f32.mrb[0].mxu0
        %v3441 = vadd.f32 0.0, %v3440
        %v3442 = vpop.f32.mrb[0].mxu0
        %3443 = vmatprep.mubr.bf16.mxu0 0
        %3444 = vmatmul.mubr.bf16.gmra.mrb[0].mxu0 %v3372
        %v3445 = vpop.f32.mrb[0].mxu0
        %v3446 = vadd.f32 0.0, %v3445
        %v3447 = vpop.f32.mrb[0].mxu0
        %v3448 = vpop.f32.mrb[0].mxu0
        %v3449 = vadd.f32 0.0, %v3448
        %v3450 = vpop.f32.mrb[0].mxu0
        %3451 = vmatprep.mubr.bf16.mxu0 0
        %3452 = vmatmul.mubr.bf16.gmra.mrb[0].mxu0 %v3373
        %v3453 = vpop.f32.mrb[0].mxu0
        %v3454 = vadd.f32 0.0, %v3453
        %v3455 = vpop.f32.mrb[0].mxu0
        %v3456 = vpop.f32.mrb[0].mxu0
        %v3457 = vadd.f32 0.0, %v3456
        %v3458 = vpop.f32.mrb[0].mxu0
        %3459 = vmatprep.mubr.bf16.mxu0 0
        %3460 = vmatmul.mubr.bf16.gmra.mrb[0].mxu0 %v3374
        %v3461 = vpop.f32.mrb[0].mxu0
        %v3462 = vadd.f32 0.0, %v3461
        %v3463 = vpop.f32.mrb[0].mxu0
        %v3464 = vpop.f32.mrb[0].mxu0
        %v3465 = vadd.f32 0.0, %v3464
        %v3466 = vpop.f32.mrb[0].mxu0
        %3467 = vmatprep.mubr.bf16.mxu0 0
        %3468 = vmatmul.mubr.bf16.gmra.mrb[0].mxu0 %v3375
        %v3469 = vpop.f32.mrb[0].mxu0
        %v3470 = vadd.f32 0.0, %v3469
        %v3471 = vpop.f32.mrb[0].mxu0
        %v3472 = vpop.f32.mrb[0].mxu0
        %v3473 = vadd.f32 0.0, %v3472
        %v3474 = vpop.f32.mrb[0].mxu0
        %3475 = vmatprep.mubr.bf16.mxu0 0
        %3476 = vmatmul.mubr.bf16.gmra.mrb[0].mxu0 %v3376
        %v3477 = vpop.f32.mrb[0].mxu0
        %v3478 = vadd.f32 0.0, %v3477
        %v3479 = vpop.f32.mrb[0].mxu0
        %v3480 = vpop.f32.mrb[0].mxu0
        %v3481 = vadd.f32 0.0, %v3480
        %v3482 = vpop.f32.mrb[0].mxu0
        %3483 = vmatprep.mubr.bf16.mxu0 0
        %3484 = vmatmul.mubr.bf16.gmra.mrb[0].mxu0 %v3377
        %v3485 = vpop.f32.mrb[0].mxu0
        %v3486 = vadd.f32 0.0, %v3485
        %v3487 = vpop.f32.mrb[0].mxu0
        %v3488 = vpop.f32.mrb[0].mxu0
        %v3489 = vadd.f32 0.0, %v3488
        %v3490 = vpop.f32.mrb[0].mxu0
        %3491 = vmatprep.mubr.bf16.mxu0 0
        %3492 = vmatmul.mubr.bf16.gmra.mrb[0].mxu0 %v3378
        %v3493 = vpop.f32.mrb[0].mxu0
        %v3494 = vadd.f32 0.0, %v3493
        %v3495 = vpop.f32.mrb[0].mxu0
        %v3496 = vpop.f32.mrb[0].mxu0
        %v3497 = vadd.f32 0.0, %v3496
        %v3498 = vpop.f32.mrb[0].mxu0
        %3499 = vdwg.mxu0
        %v3500 = vpack.c.bf16 %v3441, %v3438
        %v3501 = vpack.c.bf16 %v3449, %v3446
        %v3502 = vpack.c.bf16 %v3457, %v3454
        %v3503 = vpack.c.bf16 %v3465, %v3462
        %v3504 = vpack.c.bf16 %v3473, %v3470
        %v3505 = vpack.c.bf16 %v3481, %v3478
        %v3506 = vpack.c.bf16 %v3489, %v3486
        %v3507 = vpack.c.bf16 %v3497, %v3494
        %v3512 = vunpack.c.l.b16 %v1264
        %v3513 = vunpack.c.l.b16 %v1265
        %v3514 = vunpack.c.l.b16 %v1266
        %v3515 = vunpack.c.l.b16 %v1267
        %v3516 = vpack.c.b16 %v3513, %v3512
        %v3517 = vpack.c.b16 %v3515, %v3514
        %v3521 = vsel %vm1292, %v3500, 0
        %v3524 = vsel %vm1292, %v3501, 0
        %v3527 = vsel %vm1292, %v3502, 0
        %v3530 = vsel %vm1292, %v3503, 0
        %v3533 = vsel %vm1292, %v3504, 0
        %v3536 = vsel %vm1292, %v3505, 0
        %v3539 = vsel %vm1292, %v3506, 0
        %v3542 = vsel %vm1292, %v3507, 0
        %3544 = vmatprep.subr.bf16.mxu0 0
        %3545 = vmatpush1.bf16.msra.mxu0 %v3516
        %3546 = vmatprep.subr.bf16.mxu0 0
        %3547 = vmatpush1.bf16.msra.mxu0 %v3517
        %3548 = vmatprep.subr.bf16.mxu0 0
        %3549 = vmatpush1.bf16.msra.mxu0 0
        %3550 = vmatprep.subr.bf16.mxu0 0
        %3551 = vmatpush1.bf16.msra.mxu0 0
        %3552 = vmatprep.subr.bf16.mxu0 0
        %3553 = vmatpush1.bf16.msra.mxu0 0
        %3554 = vmatprep.subr.bf16.mxu0 0
        %3555 = vmatpush1.bf16.msra.mxu0 0
        %3556 = vmatprep.subr.bf16.mxu0 0
        %3557 = vmatpush1.bf16.msra.mxu0 0
        %3558 = vmatprep.subr.bf16.mxu0 0
        %3559 = vmatpush1.bf16.msra.mxu0 0
        %3560 = vmatprep.subr.bf16.mxu0 0
        %3561 = vmatpush1.bf16.msra.mxu0 0
        %3562 = vmatprep.subr.bf16.mxu0 0
        %3563 = vmatpush1.bf16.msra.mxu0 0
        %3564 = vmatprep.subr.bf16.mxu0 0
        %3565 = vmatpush1.bf16.msra.mxu0 0
        %3566 = vmatprep.subr.bf16.mxu0 0
        %3567 = vmatpush1.bf16.msra.mxu0 0
        %3568 = vmatprep.subr.bf16.mxu0 0
        %3569 = vmatpush1.bf16.msra.mxu0 0
        %3570 = vmatprep.subr.bf16.mxu0 0
        %3571 = vmatpush1.bf16.msra.mxu0 0
        %3572 = vmatprep.subr.bf16.mxu0 0
        %3573 = vmatpush1.bf16.msra.mxu0 0
        %3574 = vmatprep.subr.bf16.mxu0 0
        %3575 = vmatpush1.bf16.msra.mxu0 0
        %3576 = vmatprep.mubr.bf16.mxu0 0
        %3577 = vmatmul.mubr.bf16.gmra.mrb[0].mxu0 %v3521
        %v3578 = vpop.f32.mrb[0].mxu0
        %v3579 = vadd.f32 0.0, %v3578
        %v3580 = vpop.f32.mrb[0].mxu0
        %v3581 = vpop.f32.mrb[0].mxu0
        %v3582 = vadd.f32 0.0, %v3581
        %v3583 = vpop.f32.mrb[0].mxu0
        %3584 = vmatprep.mubr.bf16.mxu0 0
        %3585 = vmatmul.mubr.bf16.gmra.mrb[0].mxu0 %v3524
        %v3586 = vpop.f32.mrb[0].mxu0
        %v3587 = vadd.f32 0.0, %v3586
        %v3588 = vpop.f32.mrb[0].mxu0
        %v3589 = vpop.f32.mrb[0].mxu0
        %v3590 = vadd.f32 0.0, %v3589
        %v3591 = vpop.f32.mrb[0].mxu0
        %3592 = vmatprep.mubr.bf16.mxu0 0
        %3593 = vmatmul.mubr.bf16.gmra.mrb[0].mxu0 %v3527
        %v3594 = vpop.f32.mrb[0].mxu0
        %v3595 = vadd.f32 0.0, %v3594
        %v3596 = vpop.f32.mrb[0].mxu0
        %v3597 = vpop.f32.mrb[0].mxu0
        %v3598 = vadd.f32 0.0, %v3597
        %v3599 = vpop.f32.mrb[0].mxu0
        %3600 = vmatprep.mubr.bf16.mxu0 0
        %3601 = vmatmul.mubr.bf16.gmra.mrb[0].mxu0 %v3530
        %v3602 = vpop.f32.mrb[0].mxu0
        %v3603 = vadd.f32 0.0, %v3602
        %v3604 = vpop.f32.mrb[0].mxu0
        %v3605 = vpop.f32.mrb[0].mxu0
        %v3606 = vadd.f32 0.0, %v3605
        %v3607 = vpop.f32.mrb[0].mxu0
        %3608 = vmatprep.mubr.bf16.mxu0 0
        %3609 = vmatmul.mubr.bf16.gmra.mrb[0].mxu0 %v3533
        %v3610 = vpop.f32.mrb[0].mxu0
        %v3611 = vadd.f32 0.0, %v3610
        %v3612 = vpop.f32.mrb[0].mxu0
        %v3613 = vpop.f32.mrb[0].mxu0
        %v3614 = vadd.f32 0.0, %v3613
        %v3615 = vpop.f32.mrb[0].mxu0
        %3616 = vmatprep.mubr.bf16.mxu0 0
        %3617 = vmatmul.mubr.bf16.gmra.mrb[0].mxu0 %v3536
        %v3618 = vpop.f32.mrb[0].mxu0
        %v3619 = vadd.f32 0.0, %v3618
        %v3620 = vpop.f32.mrb[0].mxu0
        %v3621 = vpop.f32.mrb[0].mxu0
        %v3622 = vadd.f32 0.0, %v3621
        %v3623 = vpop.f32.mrb[0].mxu0
        %3624 = vmatprep.mubr.bf16.mxu0 0
        %3625 = vmatmul.mubr.bf16.gmra.mrb[0].mxu0 %v3539
        %v3626 = vpop.f32.mrb[0].mxu0
        %v3627 = vadd.f32 0.0, %v3626
        %v3628 = vpop.f32.mrb[0].mxu0
        %v3629 = vpop.f32.mrb[0].mxu0
        %v3630 = vadd.f32 0.0, %v3629
        %v3631 = vpop.f32.mrb[0].mxu0
        %3632 = vmatprep.mubr.bf16.mxu0 0
        %3633 = vmatmul.mubr.bf16.gmra.mrb[0].mxu0 %v3542
        %v3634 = vpop.f32.mrb[0].mxu0
        %v3635 = vadd.f32 0.0, %v3634
        %v3636 = vpop.f32.mrb[0].mxu0
        %v3637 = vpop.f32.mrb[0].mxu0
        %v3638 = vadd.f32 0.0, %v3637
        %v3639 = vpop.f32.mrb[0].mxu0
        %3640 = vdwg.mxu0
        %v3641 = vadd.f32 %v3034, %v3579
        %v3642 = vadd.f32 %v3035, %v3582
        %v3643 = vadd.f32 %v3036, %v3587
        %v3644 = vadd.f32 %v3037, %v3590
        %v3645 = vadd.f32 %v3038, %v3595
        %v3646 = vadd.f32 %v3039, %v3598
        %v3647 = vadd.f32 %v3040, %v3603
        %v3648 = vadd.f32 %v3041, %v3606
        %v3649 = vadd.f32 %v3042, %v3611
        %v3650 = vadd.f32 %v3043, %v3614
        %v3651 = vadd.f32 %v3044, %v3619
        %v3652 = vadd.f32 %v3045, %v3622
        %v3653 = vadd.f32 %v3046, %v3627
        %v3654 = vadd.f32 %v3047, %v3630
        %v3655 = vadd.f32 %v3048, %v3635
        %v3656 = vadd.f32 %v3049, %v3638
        %v3657 = vadd.f32 %v618, %v3641
        %v3658 = vadd.f32 %v619, %v3642
        %v3659 = vadd.f32 %v620, %v3643
        %v3660 = vadd.f32 %v621, %v3644
        %v3661 = vadd.f32 %v622, %v3645
        %v3662 = vadd.f32 %v623, %v3646
        %v3663 = vadd.f32 %v624, %v3647
        %v3664 = vadd.f32 %v625, %v3648
        %v3665 = vadd.f32 %v626, %v3649
        %v3666 = vadd.f32 %v627, %v3650
        %v3667 = vadd.f32 %v628, %v3651
        %v3668 = vadd.f32 %v629, %v3652
        %v3669 = vadd.f32 %v630, %v3653
        %v3670 = vadd.f32 %v631, %v3654
        %v3671 = vadd.f32 %v632, %v3655
        %v3672 = vadd.f32 %v633, %v3656
        %v3673 = vld [vmem:[#allocation13] sm:$0x1]
        %v3675 = vlaneseq
        %v3676 = vshrl.u32 %v3675, 7
        %v3677 = vsub.s32 0, %v3676
        %v3678 = vrot.slane %v3673, %v3677
        %v3680 = vadd.f32 %v3657, %v3678
        %v3681 = vadd.f32 %v3658, %v3678
        %v3682 = vadd.f32 %v3659, %v3678
        %v3683 = vadd.f32 %v3660, %v3678
        %v3684 = vadd.f32 %v3661, %v3678
        %v3685 = vadd.f32 %v3662, %v3678
        %v3686 = vadd.f32 %v3663, %v3678
        %v3687 = vadd.f32 %v3664, %v3678
        %v3688 = vadd.f32 %v3665, %v3678
        %v3689 = vadd.f32 %v3666, %v3678
        %v3690 = vadd.f32 %v3667, %v3678
        %v3691 = vadd.f32 %v3668, %v3678
        %v3692 = vadd.f32 %v3669, %v3678
        %v3693 = vadd.f32 %v3670, %v3678
        %v3694 = vadd.f32 %v3671, %v3678
        %v3695 = vadd.f32 %v3672, %v3678
        %v3696 = vld [vmem:[#allocation14] sm:$0x1]
        %v3697 = vld [vmem:[#allocation16] sm:$0x1]
        %3698 = vadd.xlane.f32.xlu0 %v3680
        %v3699 = vpop.xlane.xlu0 %3698
        %3700 = vadd.xlane.f32.xlu0 %v3681
        %v3701 = vpop.xlane.xlu0 %3700
        %3702 = vadd.xlane.f32.xlu0 %v3682
        %v3703 = vpop.xlane.xlu0 %3702
        %3704 = vadd.xlane.f32.xlu0 %v3683
        %v3705 = vpop.xlane.xlu0 %3704
        %3706 = vadd.xlane.f32.xlu0 %v3684
        %v3707 = vpop.xlane.xlu0 %3706
        %3708 = vadd.xlane.f32.xlu0 %v3685
        %v3709 = vpop.xlane.xlu0 %3708
        %3710 = vadd.xlane.f32.xlu0 %v3686
        %v3711 = vpop.xlane.xlu0 %3710
        %3712 = vadd.xlane.f32.xlu0 %v3687
        %v3713 = vpop.xlane.xlu0 %3712
        %3714 = vadd.xlane.f32.xlu0 %v3688
        %v3715 = vpop.xlane.xlu0 %3714
        %3716 = vadd.xlane.f32.xlu0 %v3689
        %v3717 = vpop.xlane.xlu0 %3716
        %3718 = vadd.xlane.f32.xlu0 %v3690
        %v3719 = vpop.xlane.xlu0 %3718
        %3720 = vadd.xlane.f32.xlu0 %v3691
        %v3721 = vpop.xlane.xlu0 %3720
        %3722 = vadd.xlane.f32.xlu0 %v3692
        %v3723 = vpop.xlane.xlu0 %3722
        %3724 = vadd.xlane.f32.xlu0 %v3693
        %v3725 = vpop.xlane.xlu0 %3724
        %3726 = vadd.xlane.f32.xlu0 %v3694
        %v3727 = vpop.xlane.xlu0 %3726
        %3728 = vadd.xlane.f32.xlu0 %v3695
        %v3729 = vpop.xlane.xlu0 %3728
        %v3730 = vmul.f32 %v3699, %v668
        %v3731 = vmul.f32 %v3701, %v668
        %v3732 = vmul.f32 %v3703, %v668
        %v3733 = vmul.f32 %v3705, %v668
        %v3734 = vmul.f32 %v3707, %v668
        %v3735 = vmul.f32 %v3709, %v668
        %v3736 = vmul.f32 %v3711, %v668
        %v3737 = vmul.f32 %v3713, %v668
        %v3738 = vmul.f32 %v3715, %v668
        %v3739 = vmul.f32 %v3717, %v668
        %v3740 = vmul.f32 %v3719, %v668
        %v3741 = vmul.f32 %v3721, %v668
        %v3742 = vmul.f32 %v3723, %v668
        %v3743 = vmul.f32 %v3725, %v668
        %v3744 = vmul.f32 %v3727, %v668
        %v3745 = vmul.f32 %v3729, %v668
        %v3746 = vsub.f32 %v3680, %v3730
        %v3747 = vsub.f32 %v3681, %v3731
        %v3748 = vsub.f32 %v3682, %v3732
        %v3749 = vsub.f32 %v3683, %v3733
        %v3750 = vsub.f32 %v3684, %v3734
        %v3751 = vsub.f32 %v3685, %v3735
        %v3752 = vsub.f32 %v3686, %v3736
        %v3753 = vsub.f32 %v3687, %v3737
        %v3754 = vsub.f32 %v3688, %v3738
        %v3755 = vsub.f32 %v3689, %v3739
        %v3756 = vsub.f32 %v3690, %v3740
        %v3757 = vsub.f32 %v3691, %v3741
        %v3758 = vsub.f32 %v3692, %v3742
        %v3759 = vsub.f32 %v3693, %v3743
        %v3760 = vsub.f32 %v3694, %v3744
        %v3761 = vsub.f32 %v3695, %v3745
        %v3762 = vmul.f32 %v3746, %v3746
        %v3763 = vmul.f32 %v3747, %v3747
        %v3764 = vmul.f32 %v3748, %v3748
        %v3765 = vmul.f32 %v3749, %v3749
        %v3766 = vmul.f32 %v3750, %v3750
        %v3767 = vmul.f32 %v3751, %v3751
        %v3768 = vmul.f32 %v3752, %v3752
        %v3769 = vmul.f32 %v3753, %v3753
        %v3770 = vmul.f32 %v3754, %v3754
        %v3771 = vmul.f32 %v3755, %v3755
        %v3772 = vmul.f32 %v3756, %v3756
        %v3773 = vmul.f32 %v3757, %v3757
        %v3774 = vmul.f32 %v3758, %v3758
        %v3775 = vmul.f32 %v3759, %v3759
        %v3776 = vmul.f32 %v3760, %v3760
        %v3777 = vmul.f32 %v3761, %v3761
        %3778 = vadd.xlane.f32.xlu0 %v3762
        %v3779 = vpop.xlane.xlu0 %3778
        %3780 = vadd.xlane.f32.xlu0 %v3763
        %v3781 = vpop.xlane.xlu0 %3780
        %3782 = vadd.xlane.f32.xlu0 %v3764
        %v3783 = vpop.xlane.xlu0 %3782
        %3784 = vadd.xlane.f32.xlu0 %v3765
        %v3785 = vpop.xlane.xlu0 %3784
        %3786 = vadd.xlane.f32.xlu0 %v3766
        %v3787 = vpop.xlane.xlu0 %3786
        %3788 = vadd.xlane.f32.xlu0 %v3767
        %v3789 = vpop.xlane.xlu0 %3788
        %3790 = vadd.xlane.f32.xlu0 %v3768
        %v3791 = vpop.xlane.xlu0 %3790
        %3792 = vadd.xlane.f32.xlu0 %v3769
        %v3793 = vpop.xlane.xlu0 %3792
        %3794 = vadd.xlane.f32.xlu0 %v3770
        %v3795 = vpop.xlane.xlu0 %3794
        %3796 = vadd.xlane.f32.xlu0 %v3771
        %v3797 = vpop.xlane.xlu0 %3796
        %3798 = vadd.xlane.f32.xlu0 %v3772
        %v3799 = vpop.xlane.xlu0 %3798
        %3800 = vadd.xlane.f32.xlu0 %v3773
        %v3801 = vpop.xlane.xlu0 %3800
        %3802 = vadd.xlane.f32.xlu0 %v3774
        %v3803 = vpop.xlane.xlu0 %3802
        %3804 = vadd.xlane.f32.xlu0 %v3775
        %v3805 = vpop.xlane.xlu0 %3804
        %3806 = vadd.xlane.f32.xlu0 %v3776
        %v3807 = vpop.xlane.xlu0 %3806
        %3808 = vadd.xlane.f32.xlu0 %v3777
        %v3809 = vpop.xlane.xlu0 %3808
        %v3810 = vmul.f32 %v3779, %v668
        %v3811 = vmul.f32 %v3781, %v668
        %v3812 = vmul.f32 %v3783, %v668
        %v3813 = vmul.f32 %v3785, %v668
        %v3814 = vmul.f32 %v3787, %v668
        %v3815 = vmul.f32 %v3789, %v668
        %v3816 = vmul.f32 %v3791, %v668
        %v3817 = vmul.f32 %v3793, %v668
        %v3818 = vmul.f32 %v3795, %v668
        %v3819 = vmul.f32 %v3797, %v668
        %v3820 = vmul.f32 %v3799, %v668
        %v3821 = vmul.f32 %v3801, %v668
        %v3822 = vmul.f32 %v3803, %v668
        %v3823 = vmul.f32 %v3805, %v668
        %v3824 = vmul.f32 %v3807, %v668
        %v3825 = vmul.f32 %v3809, %v668
        %v3826 = vadd.f32 %v3810, 1e-05
        %v3827 = vadd.f32 %v3811, 1e-05
        %v3828 = vadd.f32 %v3812, 1e-05
        %v3829 = vadd.f32 %v3813, 1e-05
        %v3830 = vadd.f32 %v3814, 1e-05
        %v3831 = vadd.f32 %v3815, 1e-05
        %v3832 = vadd.f32 %v3816, 1e-05
        %v3833 = vadd.f32 %v3817, 1e-05
        %v3834 = vadd.f32 %v3818, 1e-05
        %v3835 = vadd.f32 %v3819, 1e-05
        %v3836 = vadd.f32 %v3820, 1e-05
        %v3837 = vadd.f32 %v3821, 1e-05
        %v3838 = vadd.f32 %v3822, 1e-05
        %v3839 = vadd.f32 %v3823, 1e-05
        %v3840 = vadd.f32 %v3824, 1e-05
        %v3841 = vadd.f32 %v3825, 1e-05
        %v3842 = vrsqrt.pop %v3826
        %v3843 = vrsqrt.pop %v3827
        %v3844 = vrsqrt.pop %v3828
        %v3845 = vrsqrt.pop %v3829
        %v3846 = vrsqrt.pop %v3830
        %v3847 = vrsqrt.pop %v3831
        %v3848 = vrsqrt.pop %v3832
        %v3849 = vrsqrt.pop %v3833
        %v3850 = vrsqrt.pop %v3834
        %v3851 = vrsqrt.pop %v3835
        %v3852 = vrsqrt.pop %v3836
        %v3853 = vrsqrt.pop %v3837
        %v3854 = vrsqrt.pop %v3838
        %v3855 = vrsqrt.pop %v3839
        %v3856 = vrsqrt.pop %v3840
        %v3857 = vrsqrt.pop %v3841
        %v3858 = vmul.f32 %v3746, %v3842
        %v3859 = vmul.f32 %v3747, %v3843
        %v3860 = vmul.f32 %v3748, %v3844
        %v3861 = vmul.f32 %v3749, %v3845
        %v3862 = vmul.f32 %v3750, %v3846
        %v3863 = vmul.f32 %v3751, %v3847
        %v3864 = vmul.f32 %v3752, %v3848
        %v3865 = vmul.f32 %v3753, %v3849
        %v3866 = vmul.f32 %v3754, %v3850
        %v3867 = vmul.f32 %v3755, %v3851
        %v3868 = vmul.f32 %v3756, %v3852
        %v3869 = vmul.f32 %v3757, %v3853
        %v3870 = vmul.f32 %v3758, %v3854
        %v3871 = vmul.f32 %v3759, %v3855
        %v3872 = vmul.f32 %v3760, %v3856
        %v3873 = vmul.f32 %v3761, %v3857
        %v3875 = vlaneseq
        %v3876 = vshrl.u32 %v3875, 7
        %v3877 = vsub.s32 0, %v3876
        %v3878 = vrot.slane %v3696, %v3877
        %v3880 = vmul.f32 %v3858, %v3878
        %v3881 = vmul.f32 %v3859, %v3878
        %v3882 = vmul.f32 %v3860, %v3878
        %v3883 = vmul.f32 %v3861, %v3878
        %v3884 = vmul.f32 %v3862, %v3878
        %v3885 = vmul.f32 %v3863, %v3878
        %v3886 = vmul.f32 %v3864, %v3878
        %v3887 = vmul.f32 %v3865, %v3878
        %v3888 = vmul.f32 %v3866, %v3878
        %v3889 = vmul.f32 %v3867, %v3878
        %v3890 = vmul.f32 %v3868, %v3878
        %v3891 = vmul.f32 %v3869, %v3878
        %v3892 = vmul.f32 %v3870, %v3878
        %v3893 = vmul.f32 %v3871, %v3878
        %v3894 = vmul.f32 %v3872, %v3878
        %v3895 = vmul.f32 %v3873, %v3878
        %v3897 = vlaneseq
        %v3898 = vshrl.u32 %v3897, 7
        %v3899 = vsub.s32 0, %v3898
        %v3900 = vrot.slane %v3697, %v3899
        %v3902 = vadd.f32 %v3880, %v3900
        %v3903 = vadd.f32 %v3881, %v3900
        %v3904 = vadd.f32 %v3882, %v3900
        %v3905 = vadd.f32 %v3883, %v3900
        %v3906 = vadd.f32 %v3884, %v3900
        %v3907 = vadd.f32 %v3885, %v3900
        %v3908 = vadd.f32 %v3886, %v3900
        %v3909 = vadd.f32 %v3887, %v3900
        %v3910 = vadd.f32 %v3888, %v3900
        %v3911 = vadd.f32 %v3889, %v3900
        %v3912 = vadd.f32 %v3890, %v3900
        %v3913 = vadd.f32 %v3891, %v3900
        %v3914 = vadd.f32 %v3892, %v3900
        %v3915 = vadd.f32 %v3893, %v3900
        %v3916 = vadd.f32 %v3894, %v3900
        %v3917 = vadd.f32 %v3895, %v3900
        %v3918 = vpack.c.bf16 %v3903, %v3902
        %v3919 = vpack.c.bf16 %v3905, %v3904
        %v3920 = vpack.c.bf16 %v3907, %v3906
        %v3921 = vpack.c.bf16 %v3909, %v3908
        %v3922 = vpack.c.bf16 %v3911, %v3910
        %v3923 = vpack.c.bf16 %v3913, %v3912
        %v3924 = vpack.c.bf16 %v3915, %v3914
        %v3925 = vpack.c.bf16 %v3917, %v3916
        %v3926 = vld [vmem:[#allocation17] sm:$0xff]
        %v3927 = vld [vmem:[#allocation17 + $0x8] sm:$0xff]
        %v3928 = vld [vmem:[#allocation17 + $0x10] sm:$0xff]
        %v3929 = vld [vmem:[#allocation17 + $0x18] sm:$0xff]
        %v3930 = vld [vmem:[#allocation17 + $0x20] sm:$0xff]
        %v3931 = vld [vmem:[#allocation17 + $0x28] sm:$0xff]
        %v3932 = vld [vmem:[#allocation17 + $0x30] sm:$0xff]
        %v3933 = vld [vmem:[#allocation17 + $0x38] sm:$0xff]
        %v3934 = vld [vmem:[#allocation17 + $0x40] sm:$0xff]
        %v3935 = vld [vmem:[#allocation17 + $0x48] sm:$0xff]
        %v3936 = vld [vmem:[#allocation17 + $0x50] sm:$0xff]
        %v3937 = vld [vmem:[#allocation17 + $0x58] sm:$0xff]
        %v3938 = vld [vmem:[#allocation17 + $0x60] sm:$0xff]
        %v3939 = vld [vmem:[#allocation17 + $0x68] sm:$0xff]
        %v3940 = vld [vmem:[#allocation17 + $0x70] sm:$0xff]
        %v3941 = vld [vmem:[#allocation17 + $0x78] sm:$0xff]
        %v3942 = vld [vmem:[#allocation19] sm:$0x3]
        %v3944 = vlaneseq
        %v3945 = vshrl.u32 %v3944, 7
        %v3946 = vsub.s32 0, %v3945
        %v3947 = vrot.slane %v3942, %v3946
        %v3948 = vlaneseq
        %v3949 = vshrl.u32 %v3948, 7
        %v3950 = vsub.s32 1, %v3949
        %v3951 = vrot.slane %v3942, %v3950
        %v3970 = vunpack.c.l.b16 %v3926
        %v3971 = vunpack.c.h.b16 %v3926
        %v3972 = vunpack.c.l.b16 %v3927
        %v3973 = vunpack.c.h.b16 %v3927
        %v3974 = vunpack.c.l.b16 %v3928
        %v3975 = vunpack.c.h.b16 %v3928
        %v3976 = vunpack.c.l.b16 %v3929
        %v3977 = vunpack.c.h.b16 %v3929
        %v3978 = vunpack.c.l.b16 %v3930
        %v3979 = vunpack.c.h.b16 %v3930
        %v3980 = vunpack.c.l.b16 %v3931
        %v3981 = vunpack.c.h.b16 %v3931
        %v3982 = vunpack.c.l.b16 %v3932
        %v3983 = vunpack.c.h.b16 %v3932
        %v3984 = vunpack.c.l.b16 %v3933
        %v3985 = vunpack.c.h.b16 %v3933
        %v3986 = vunpack.c.l.b16 %v3934
        %v3987 = vunpack.c.h.b16 %v3934
        %v3988 = vunpack.c.l.b16 %v3935
        %v3989 = vunpack.c.h.b16 %v3935
        %v3990 = vunpack.c.l.b16 %v3936
        %v3991 = vunpack.c.h.b16 %v3936
        %v3992 = vunpack.c.l.b16 %v3937
        %v3993 = vunpack.c.h.b16 %v3937
        %v3994 = vunpack.c.l.b16 %v3938
        %v3995 = vunpack.c.h.b16 %v3938
        %v3996 = vunpack.c.l.b16 %v3939
        %v3997 = vunpack.c.h.b16 %v3939
        %v3998 = vunpack.c.l.b16 %v3940
        %v3999 = vunpack.c.h.b16 %v3940
        %v4000 = vunpack.c.l.b16 %v3941
        %v4001 = vunpack.c.h.b16 %v3941
        %v4002 = vpack.c.b16 %v3972, %v3970
        %v4003 = vpack.c.b16 %v3973, %v3971
        %v4004 = vpack.c.b16 %v3976, %v3974
        %v4005 = vpack.c.b16 %v3977, %v3975
        %v4006 = vpack.c.b16 %v3980, %v3978
        %v4007 = vpack.c.b16 %v3981, %v3979
        %v4008 = vpack.c.b16 %v3984, %v3982
        %v4009 = vpack.c.b16 %v3985, %v3983
        %v4010 = vpack.c.b16 %v3988, %v3986
        %v4011 = vpack.c.b16 %v3989, %v3987
        %v4012 = vpack.c.b16 %v3992, %v3990
        %v4013 = vpack.c.b16 %v3993, %v3991
        %v4014 = vpack.c.b16 %v3996, %v3994
        %v4015 = vpack.c.b16 %v3997, %v3995
        %v4016 = vpack.c.b16 %v4000, %v3998
        %v4017 = vpack.c.b16 %v4001, %v3999
        %4034 = vmatprep.subr.bf16.mxu0 %v4003
        %4035 = vmatpush1.bf16.msra.mxu0 %v4002
        %4036 = vmatprep.subr.bf16.mxu0 %v4005
        %4037 = vmatpush1.bf16.msra.mxu0 %v4004
        %4038 = vmatprep.subr.bf16.mxu0 %v4007
        %4039 = vmatpush1.bf16.msra.mxu0 %v4006
        %4040 = vmatprep.subr.bf16.mxu0 %v4009
        %4041 = vmatpush1.bf16.msra.mxu0 %v4008
        %4042 = vmatprep.subr.bf16.mxu0 %v4011
        %4043 = vmatpush1.bf16.msra.mxu0 %v4010
        %4044 = vmatprep.subr.bf16.mxu0 %v4013
        %4045 = vmatpush1.bf16.msra.mxu0 %v4012
        %4046 = vmatprep.subr.bf16.mxu0 %v4015
        %4047 = vmatpush1.bf16.msra.mxu0 %v4014
        %4048 = vmatprep.subr.bf16.mxu0 %v4017
        %4049 = vmatpush1.bf16.msra.mxu0 %v4016
        %4050 = vmatprep.subr.bf16.mxu0 0
        %4051 = vmatpush1.bf16.msra.mxu0 0
        %4052 = vmatprep.subr.bf16.mxu0 0
        %4053 = vmatpush1.bf16.msra.mxu0 0
        %4054 = vmatprep.subr.bf16.mxu0 0
        %4055 = vmatpush1.bf16.msra.mxu0 0
        %4056 = vmatprep.subr.bf16.mxu0 0
        %4057 = vmatpush1.bf16.msra.mxu0 0
        %4058 = vmatprep.subr.bf16.mxu0 0
        %4059 = vmatpush1.bf16.msra.mxu0 0
        %4060 = vmatprep.subr.bf16.mxu0 0
        %4061 = vmatpush1.bf16.msra.mxu0 0
        %4062 = vmatprep.subr.bf16.mxu0 0
        %4063 = vmatpush1.bf16.msra.mxu0 0
        %4064 = vmatprep.subr.bf16.mxu0 0
        %4065 = vmatpush1.bf16.msra.mxu0 0
        %4066 = vmatprep.mubr.bf16.mxu0 0
        %4067 = vmatmul.mubr.bf16.gmra.mrb[0].mxu0 %v3918
        %v4068 = vpop.f32.mrb[0].mxu0
        %v4069 = vadd.f32 %v3947, %v4068
        %v4070 = vpop.f32.mrb[0].mxu0
        %v4071 = vadd.f32 %v3951, %v4070
        %v4072 = vpop.f32.mrb[0].mxu0
        %v4073 = vadd.f32 %v3947, %v4072
        %v4074 = vpop.f32.mrb[0].mxu0
        %v4075 = vadd.f32 %v3951, %v4074
        %4076 = vmatprep.mubr.bf16.mxu0 0
        %4077 = vmatmul.mubr.bf16.gmra.mrb[0].mxu0 %v3919
        %v4078 = vpop.f32.mrb[0].mxu0
        %v4079 = vadd.f32 %v3947, %v4078
        %v4080 = vpop.f32.mrb[0].mxu0
        %v4081 = vadd.f32 %v3951, %v4080
        %v4082 = vpop.f32.mrb[0].mxu0
        %v4083 = vadd.f32 %v3947, %v4082
        %v4084 = vpop.f32.mrb[0].mxu0
        %v4085 = vadd.f32 %v3951, %v4084
        %4086 = vmatprep.mubr.bf16.mxu0 0
        %4087 = vmatmul.mubr.bf16.gmra.mrb[0].mxu0 %v3920
        %v4088 = vpop.f32.mrb[0].mxu0
        %v4089 = vadd.f32 %v3947, %v4088
        %v4090 = vpop.f32.mrb[0].mxu0
        %v4091 = vadd.f32 %v3951, %v4090
        %v4092 = vpop.f32.mrb[0].mxu0
        %v4093 = vadd.f32 %v3947, %v4092
        %v4094 = vpop.f32.mrb[0].mxu0
        %v4095 = vadd.f32 %v3951, %v4094
        %4096 = vmatprep.mubr.bf16.mxu0 0
        %4097 = vmatmul.mubr.bf16.gmra.mrb[0].mxu0 %v3921
        %v4098 = vpop.f32.mrb[0].mxu0
        %v4099 = vadd.f32 %v3947, %v4098
        %v4100 = vpop.f32.mrb[0].mxu0
        %v4101 = vadd.f32 %v3951, %v4100
        %v4102 = vpop.f32.mrb[0].mxu0
        %v4103 = vadd.f32 %v3947, %v4102
        %v4104 = vpop.f32.mrb[0].mxu0
        %v4105 = vadd.f32 %v3951, %v4104
        %4106 = vmatprep.mubr.bf16.mxu0 0
        %4107 = vmatmul.mubr.bf16.gmra.mrb[0].mxu0 %v3922
        %v4108 = vpop.f32.mrb[0].mxu0
        %v4109 = vadd.f32 %v3947, %v4108
        %v4110 = vpop.f32.mrb[0].mxu0
        %v4111 = vadd.f32 %v3951, %v4110
        %v4112 = vpop.f32.mrb[0].mxu0
        %v4113 = vadd.f32 %v3947, %v4112
        %v4114 = vpop.f32.mrb[0].mxu0
        %v4115 = vadd.f32 %v3951, %v4114
        %4116 = vmatprep.mubr.bf16.mxu0 0
        %4117 = vmatmul.mubr.bf16.gmra.mrb[0].mxu0 %v3923
        %v4118 = vpop.f32.mrb[0].mxu0
        %v4119 = vadd.f32 %v3947, %v4118
        %v4120 = vpop.f32.mrb[0].mxu0
        %v4121 = vadd.f32 %v3951, %v4120
        %v4122 = vpop.f32.mrb[0].mxu0
        %v4123 = vadd.f32 %v3947, %v4122
        %v4124 = vpop.f32.mrb[0].mxu0
        %v4125 = vadd.f32 %v3951, %v4124
        %4126 = vmatprep.mubr.bf16.mxu0 0
        %4127 = vmatmul.mubr.bf16.gmra.mrb[0].mxu0 %v3924
        %v4128 = vpop.f32.mrb[0].mxu0
        %v4129 = vadd.f32 %v3947, %v4128
        %v4130 = vpop.f32.mrb[0].mxu0
        %v4131 = vadd.f32 %v3951, %v4130
        %v4132 = vpop.f32.mrb[0].mxu0
        %v4133 = vadd.f32 %v3947, %v4132
        %v4134 = vpop.f32.mrb[0].mxu0
        %v4135 = vadd.f32 %v3951, %v4134
        %4136 = vmatprep.mubr.bf16.mxu0 0
        %4137 = vmatmul.mubr.bf16.gmra.mrb[0].mxu0 %v3925
        %v4138 = vpop.f32.mrb[0].mxu0
        %v4139 = vadd.f32 %v3947, %v4138
        %v4140 = vpop.f32.mrb[0].mxu0
        %v4141 = vadd.f32 %v3951, %v4140
        %v4142 = vpop.f32.mrb[0].mxu0
        %v4143 = vadd.f32 %v3947, %v4142
        %v4144 = vpop.f32.mrb[0].mxu0
        %v4145 = vadd.f32 %v3951, %v4144
        %4146 = vdwg.mxu0
        %v4147 = vmax.f32 %v4069, 0.0
        %v4148 = vmax.f32 %v4071, 0.0
        %v4149 = vmax.f32 %v4073, 0.0
        %v4150 = vmax.f32 %v4075, 0.0
        %v4151 = vmax.f32 %v4079, 0.0
        %v4152 = vmax.f32 %v4081, 0.0
        %v4153 = vmax.f32 %v4083, 0.0
        %v4154 = vmax.f32 %v4085, 0.0
        %v4155 = vmax.f32 %v4089, 0.0
        %v4156 = vmax.f32 %v4091, 0.0
        %v4157 = vmax.f32 %v4093, 0.0
        %v4158 = vmax.f32 %v4095, 0.0
        %v4159 = vmax.f32 %v4099, 0.0
        %v4160 = vmax.f32 %v4101, 0.0
        %v4161 = vmax.f32 %v4103, 0.0
        %v4162 = vmax.f32 %v4105, 0.0
        %v4163 = vmax.f32 %v4109, 0.0
        %v4164 = vmax.f32 %v4111, 0.0
        %v4165 = vmax.f32 %v4113, 0.0
        %v4166 = vmax.f32 %v4115, 0.0
        %v4167 = vmax.f32 %v4119, 0.0
        %v4168 = vmax.f32 %v4121, 0.0
        %v4169 = vmax.f32 %v4123, 0.0
        %v4170 = vmax.f32 %v4125, 0.0
        %v4171 = vmax.f32 %v4129, 0.0
        %v4172 = vmax.f32 %v4131, 0.0
        %v4173 = vmax.f32 %v4133, 0.0
        %v4174 = vmax.f32 %v4135, 0.0
        %v4175 = vmax.f32 %v4139, 0.0
        %v4176 = vmax.f32 %v4141, 0.0
        %v4177 = vmax.f32 %v4143, 0.0
        %v4178 = vmax.f32 %v4145, 0.0
        %v4179 = vpack.c.bf16 %v4149, %v4147
        %v4180 = vpack.c.bf16 %v4150, %v4148
        %v4181 = vpack.c.bf16 %v4153, %v4151
        %v4182 = vpack.c.bf16 %v4154, %v4152
        %v4183 = vpack.c.bf16 %v4157, %v4155
        %v4184 = vpack.c.bf16 %v4158, %v4156
        %v4185 = vpack.c.bf16 %v4161, %v4159
        %v4186 = vpack.c.bf16 %v4162, %v4160
        %v4187 = vpack.c.bf16 %v4165, %v4163
        %v4188 = vpack.c.bf16 %v4166, %v4164
        %v4189 = vpack.c.bf16 %v4169, %v4167
        %v4190 = vpack.c.bf16 %v4170, %v4168
        %v4191 = vpack.c.bf16 %v4173, %v4171
        %v4192 = vpack.c.bf16 %v4174, %v4172
        %v4193 = vpack.c.bf16 %v4177, %v4175
        %v4194 = vpack.c.bf16 %v4178, %v4176
        %v4195 = vld [vmem:[#allocation20] sm:$0xf]
        %v4196 = vld [vmem:[#allocation20 + $0x4] sm:$0xf]
        %v4197 = vld [vmem:[#allocation20 + $0x8] sm:$0xf]
        %v4198 = vld [vmem:[#allocation20 + $0xc] sm:$0xf]
        %v4199 = vld [vmem:[#allocation20 + $0x10] sm:$0xf]
        %v4200 = vld [vmem:[#allocation20 + $0x14] sm:$0xf]
        %v4201 = vld [vmem:[#allocation20 + $0x18] sm:$0xf]
        %v4202 = vld [vmem:[#allocation20 + $0x1c] sm:$0xf]
        %v4203 = vld [vmem:[#allocation20 + $0x20] sm:$0xf]
        %v4204 = vld [vmem:[#allocation20 + $0x24] sm:$0xf]
        %v4205 = vld [vmem:[#allocation20 + $0x28] sm:$0xf]
        %v4206 = vld [vmem:[#allocation20 + $0x2c] sm:$0xf]
        %v4207 = vld [vmem:[#allocation20 + $0x30] sm:$0xf]
        %v4208 = vld [vmem:[#allocation20 + $0x34] sm:$0xf]
        %v4209 = vld [vmem:[#allocation20 + $0x38] sm:$0xf]
        %v4210 = vld [vmem:[#allocation20 + $0x3c] sm:$0xf]
        %v4211 = vld [vmem:[#allocation20 + $0x40] sm:$0xf]
        %v4212 = vld [vmem:[#allocation20 + $0x44] sm:$0xf]
        %v4213 = vld [vmem:[#allocation20 + $0x48] sm:$0xf]
        %v4214 = vld [vmem:[#allocation20 + $0x4c] sm:$0xf]
        %v4215 = vld [vmem:[#allocation20 + $0x50] sm:$0xf]
        %v4216 = vld [vmem:[#allocation20 + $0x54] sm:$0xf]
        %v4217 = vld [vmem:[#allocation20 + $0x58] sm:$0xf]
        %v4218 = vld [vmem:[#allocation20 + $0x5c] sm:$0xf]
        %v4219 = vld [vmem:[#allocation20 + $0x60] sm:$0xf]
        %v4220 = vld [vmem:[#allocation20 + $0x64] sm:$0xf]
        %v4221 = vld [vmem:[#allocation20 + $0x68] sm:$0xf]
        %v4222 = vld [vmem:[#allocation20 + $0x6c] sm:$0xf]
        %v4223 = vld [vmem:[#allocation20 + $0x70] sm:$0xf]
        %v4224 = vld [vmem:[#allocation20 + $0x74] sm:$0xf]
        %v4225 = vld [vmem:[#allocation20 + $0x78] sm:$0xf]
        %v4226 = vld [vmem:[#allocation20 + $0x7c] sm:$0xf]
        %v4227 = vld [vmem:[#allocation22] sm:$0x1]
        %v4229 = vlaneseq
        %v4230 = vshrl.u32 %v4229, 7
        %v4231 = vsub.s32 0, %v4230
        %v4232 = vrot.slane %v4227, %v4231
        %v4266 = vunpack.c.l.b16 %v4195
        %v4267 = vunpack.c.l.b16 %v4196
        %v4268 = vunpack.c.l.b16 %v4197
        %v4269 = vunpack.c.l.b16 %v4198
        %v4270 = vunpack.c.l.b16 %v4199
        %v4271 = vunpack.c.l.b16 %v4200
        %v4272 = vunpack.c.l.b16 %v4201
        %v4273 = vunpack.c.l.b16 %v4202
        %v4274 = vunpack.c.l.b16 %v4203
        %v4275 = vunpack.c.l.b16 %v4204
        %v4276 = vunpack.c.l.b16 %v4205
        %v4277 = vunpack.c.l.b16 %v4206
        %v4278 = vunpack.c.l.b16 %v4207
        %v4279 = vunpack.c.l.b16 %v4208
        %v4280 = vunpack.c.l.b16 %v4209
        %v4281 = vunpack.c.l.b16 %v4210
        %v4282 = vunpack.c.l.b16 %v4211
        %v4283 = vunpack.c.l.b16 %v4212
        %v4284 = vunpack.c.l.b16 %v4213
        %v4285 = vunpack.c.l.b16 %v4214
        %v4286 = vunpack.c.l.b16 %v4215
        %v4287 = vunpack.c.l.b16 %v4216
        %v4288 = vunpack.c.l.b16 %v4217
        %v4289 = vunpack.c.l.b16 %v4218
        %v4290 = vunpack.c.l.b16 %v4219
        %v4291 = vunpack.c.l.b16 %v4220
        %v4292 = vunpack.c.l.b16 %v4221
        %v4293 = vunpack.c.l.b16 %v4222
        %v4294 = vunpack.c.l.b16 %v4223
        %v4295 = vunpack.c.l.b16 %v4224
        %v4296 = vunpack.c.l.b16 %v4225
        %v4297 = vunpack.c.l.b16 %v4226
        %v4298 = vpack.c.b16 %v4267, %v4266
        %v4299 = vpack.c.b16 %v4269, %v4268
        %v4300 = vpack.c.b16 %v4271, %v4270
        %v4301 = vpack.c.b16 %v4273, %v4272
        %v4302 = vpack.c.b16 %v4275, %v4274
        %v4303 = vpack.c.b16 %v4277, %v4276
        %v4304 = vpack.c.b16 %v4279, %v4278
        %v4305 = vpack.c.b16 %v4281, %v4280
        %v4306 = vpack.c.b16 %v4283, %v4282
        %v4307 = vpack.c.b16 %v4285, %v4284
        %v4308 = vpack.c.b16 %v4287, %v4286
        %v4309 = vpack.c.b16 %v4289, %v4288
        %v4310 = vpack.c.b16 %v4291, %v4290
        %v4311 = vpack.c.b16 %v4293, %v4292
        %v4312 = vpack.c.b16 %v4295, %v4294
        %v4313 = vpack.c.b16 %v4297, %v4296
        %4330 = vmatprep.subr.bf16.mxu0 0
        %4331 = vmatpush1.bf16.msra.mxu0 %v4298
        %4332 = vmatprep.subr.bf16.mxu0 0
        %4333 = vmatpush1.bf16.msra.mxu0 %v4299
        %4334 = vmatprep.subr.bf16.mxu0 0
        %4335 = vmatpush1.bf16.msra.mxu0 %v4300
        %4336 = vmatprep.subr.bf16.mxu0 0
        %4337 = vmatpush1.bf16.msra.mxu0 %v4301
        %4338 = vmatprep.subr.bf16.mxu0 0
        %4339 = vmatpush1.bf16.msra.mxu0 %v4302
        %4340 = vmatprep.subr.bf16.mxu0 0
        %4341 = vmatpush1.bf16.msra.mxu0 %v4303
        %4342 = vmatprep.subr.bf16.mxu0 0
        %4343 = vmatpush1.bf16.msra.mxu0 %v4304
        %4344 = vmatprep.subr.bf16.mxu0 0
        %4345 = vmatpush1.bf16.msra.mxu0 %v4305
        %4346 = vmatprep.subr.bf16.mxu0 0
        %4347 = vmatpush1.bf16.msra.mxu0 %v4306
        %4348 = vmatprep.subr.bf16.mxu0 0
        %4349 = vmatpush1.bf16.msra.mxu0 %v4307
        %4350 = vmatprep.subr.bf16.mxu0 0
        %4351 = vmatpush1.bf16.msra.mxu0 %v4308
        %4352 = vmatprep.subr.bf16.mxu0 0
        %4353 = vmatpush1.bf16.msra.mxu0 %v4309
        %4354 = vmatprep.subr.bf16.mxu0 0
        %4355 = vmatpush1.bf16.msra.mxu0 %v4310
        %4356 = vmatprep.subr.bf16.mxu0 0
        %4357 = vmatpush1.bf16.msra.mxu0 %v4311
        %4358 = vmatprep.subr.bf16.mxu0 0
        %4359 = vmatpush1.bf16.msra.mxu0 %v4312
        %4360 = vmatprep.subr.bf16.mxu0 0
        %4361 = vmatpush1.bf16.msra.mxu0 %v4313
        %4362 = vmatprep.mubr.bf16.mxu0 %v4180
        %4363 = vmatmul.mubr.bf16.gmra.mrb[0].mxu0 %v4179
        %v4364 = vpop.f32.mrb[0].mxu0
        %v4365 = vadd.f32 %v4232, %v4364
        %v4366 = vpop.f32.mrb[0].mxu0
        %v4367 = vpop.f32.mrb[0].mxu0
        %v4368 = vadd.f32 %v4232, %v4367
        %v4369 = vpop.f32.mrb[0].mxu0
        %4370 = vmatprep.mubr.bf16.mxu0 %v4182
        %4371 = vmatmul.mubr.bf16.gmra.mrb[0].mxu0 %v4181
        %v4372 = vpop.f32.mrb[0].mxu0
        %v4373 = vadd.f32 %v4232, %v4372
        %v4374 = vpop.f32.mrb[0].mxu0
        %v4375 = vpop.f32.mrb[0].mxu0
        %v4376 = vadd.f32 %v4232, %v4375
        %v4377 = vpop.f32.mrb[0].mxu0
        %4378 = vmatprep.mubr.bf16.mxu0 %v4184
        %4379 = vmatmul.mubr.bf16.gmra.mrb[0].mxu0 %v4183
        %v4380 = vpop.f32.mrb[0].mxu0
        %v4381 = vadd.f32 %v4232, %v4380
        %v4382 = vpop.f32.mrb[0].mxu0
        %v4383 = vpop.f32.mrb[0].mxu0
        %v4384 = vadd.f32 %v4232, %v4383
        %v4385 = vpop.f32.mrb[0].mxu0
        %4386 = vmatprep.mubr.bf16.mxu0 %v4186
        %4387 = vmatmul.mubr.bf16.gmra.mrb[0].mxu0 %v4185
        %v4388 = vpop.f32.mrb[0].mxu0
        %v4389 = vadd.f32 %v4232, %v4388
        %v4390 = vpop.f32.mrb[0].mxu0
        %v4391 = vpop.f32.mrb[0].mxu0
        %v4392 = vadd.f32 %v4232, %v4391
        %v4393 = vpop.f32.mrb[0].mxu0
        %4394 = vmatprep.mubr.bf16.mxu0 %v4188
        %4395 = vmatmul.mubr.bf16.gmra.mrb[0].mxu0 %v4187
        %v4396 = vpop.f32.mrb[0].mxu0
        %v4397 = vadd.f32 %v4232, %v4396
        %v4398 = vpop.f32.mrb[0].mxu0
        %v4399 = vpop.f32.mrb[0].mxu0
        %v4400 = vadd.f32 %v4232, %v4399
        %v4401 = vpop.f32.mrb[0].mxu0
        %4402 = vmatprep.mubr.bf16.mxu0 %v4190
        %4403 = vmatmul.mubr.bf16.gmra.mrb[0].mxu0 %v4189
        %v4404 = vpop.f32.mrb[0].mxu0
        %v4405 = vadd.f32 %v4232, %v4404
        %v4406 = vpop.f32.mrb[0].mxu0
        %v4407 = vpop.f32.mrb[0].mxu0
        %v4408 = vadd.f32 %v4232, %v4407
        %v4409 = vpop.f32.mrb[0].mxu0
        %4410 = vmatprep.mubr.bf16.mxu0 %v4192
        %4411 = vmatmul.mubr.bf16.gmra.mrb[0].mxu0 %v4191
        %v4412 = vpop.f32.mrb[0].mxu0
        %v4413 = vadd.f32 %v4232, %v4412
        %v4414 = vpop.f32.mrb[0].mxu0
        %v4415 = vpop.f32.mrb[0].mxu0
        %v4416 = vadd.f32 %v4232, %v4415
        %v4417 = vpop.f32.mrb[0].mxu0
        %4418 = vmatprep.mubr.bf16.mxu0 %v4194
        %4419 = vmatmul.mubr.bf16.gmra.mrb[0].mxu0 %v4193
        %v4420 = vpop.f32.mrb[0].mxu0
        %v4421 = vadd.f32 %v4232, %v4420
        %v4422 = vpop.f32.mrb[0].mxu0
        %v4423 = vpop.f32.mrb[0].mxu0
        %v4424 = vadd.f32 %v4232, %v4423
        %v4425 = vpop.f32.mrb[0].mxu0
        %4426 = vdwg.mxu0
        %v4427 = vadd.f32 %v3680, %v4365
        %v4428 = vadd.f32 %v3681, %v4368
        %v4429 = vadd.f32 %v3682, %v4373
        %v4430 = vadd.f32 %v3683, %v4376
        %v4431 = vadd.f32 %v3684, %v4381
        %v4432 = vadd.f32 %v3685, %v4384
        %v4433 = vadd.f32 %v3686, %v4389
        %v4434 = vadd.f32 %v3687, %v4392
        %v4435 = vadd.f32 %v3688, %v4397
        %v4436 = vadd.f32 %v3689, %v4400
        %v4437 = vadd.f32 %v3690, %v4405
        %v4438 = vadd.f32 %v3691, %v4408
        %v4439 = vadd.f32 %v3692, %v4413
        %v4440 = vadd.f32 %v3693, %v4416
        %v4441 = vadd.f32 %v3694, %v4421
        %v4442 = vadd.f32 %v3695, %v4424
        %4443 = vst [vmem:[%s616] sm:$0xff] %v4427
        %4444 = vst [vmem:[%s616 + $0x8] sm:$0xff] %v4428
        %4445 = vst [vmem:[%s616 + $0x10] sm:$0xff] %v4429
        %4446 = vst [vmem:[%s616 + $0x18] sm:$0xff] %v4430
        %4447 = vst [vmem:[%s616 + $0x20] sm:$0xff] %v4431
        %4448 = vst [vmem:[%s616 + $0x28] sm:$0xff] %v4432
        %4449 = vst [vmem:[%s616 + $0x30] sm:$0xff] %v4433
        %4450 = vst [vmem:[%s616 + $0x38] sm:$0xff] %v4434
        %4451 = vst [vmem:[%s616 + $0x40] sm:$0xff] %v4435
        %4452 = vst [vmem:[%s616 + $0x48] sm:$0xff] %v4436
        %4453 = vst [vmem:[%s616 + $0x50] sm:$0xff] %v4437
        %4454 = vst [vmem:[%s616 + $0x58] sm:$0xff] %v4438
        %4455 = vst [vmem:[%s616 + $0x60] sm:$0xff] %v4439
        %4456 = vst [vmem:[%s616 + $0x68] sm:$0xff] %v4440
        %4457 = vst [vmem:[%s616 + $0x70] sm:$0xff] %v4441
        %4458 = vst [vmem:[%s616 + $0x78] sm:$0xff] %v4442
        %s4459 = sand.u32 %s322, 1
        %s4460 = scalar_lea.sflag [#allocation4], %s4459
        %s4461 = sand.u32 %s322, 1
        %s4462 = smul.addr %s4461, 128
        %s4463 = scalar_lea.vmem [#allocation23], %s4462
        // Predicated region
        $region125: #{tpu_custom_call.1} parent=71 // pred_check
          %p4464 = pneg %p332
        $region126: #{tpu_custom_call.1} parent=71 // pred_check_branch
          %4466 = sbr.rel (%p4464) target = $region128
        $region127: #{tpu_custom_call.1} parent=71 // pred_region
          %s4468 = ssub.s32 2048, 2048
          %4469 = vsyncadd %s4460, %s4468
          %s4470 = smul.addr %s36, 16
          %s4471 = smul.addr %s4470, 128
          %s4472 = scalar_lea.hbm %s13, %s4471
          %s4473 = sshll.u32 %s4463, 4
          %s4474 = int_to_ptr.vmem [resolvable:$true] %s4473
          %4479 = dma.vmem_to_hbm [thread:$0]  %s4474, 2048, %s4472, %s4460, 128, 128, 8
        $region128: #{tpu_custom_call.1} parent=71 // pred_fallthru
          _
      $region72: #{tpu_custom_call.1} parent=5 // pred_fallthru
        _
      %p4480 = scmp.le.s32.totalorder 2, %s31
      // Predicated region
      $region129: #{tpu_custom_call.1} parent=5 // pred_check
        %p4481 = pneg %p4480
      $region130: #{tpu_custom_call.1} parent=5 // pred_check_branch
        %4483 = sbr.rel (%p4481) target = $region132
      $region131: #{tpu_custom_call.1} parent=5 // pred_region
        %s4484 = ssub.s32 %s31, 2
        // Predicated region
        $region133: #{tpu_custom_call.1} parent=131 // pred_check
          %p4485 = pneg %p338
        $region134: #{tpu_custom_call.1} parent=131 // pred_check_branch
          %4487 = sbr.rel (%p4485) target = $region136
        $region135: #{tpu_custom_call.1} parent=131 // pred_region
          %s4488 = sand.u32 %s323, 1
          %s4489 = scalar_lea.sflag [#allocation4], %s4488
          %s4490 = sand.u32 %s323, 1
          %s4491 = smul.addr %s4490, 128
          %s4492 = scalar_lea.vmem [#allocation23], %s4491
          %4493 = dma.done %s4489, 2048
        $region136: #{tpu_custom_call.1} parent=131 // pred_fallthru
          _
      $region132: #{tpu_custom_call.1} parent=5 // pred_fallthru
        _
    $region6: #{tpu_custom_call.1} parent=1 // loop_footer
      %s35 = sadd.s32 1, %s31
    $region7: #{tpu_custom_call.1} parent=1 // loop_footer_branch
      %30 = sbr.rel target = $region3
    $region8: #{tpu_custom_call.1} parent=1 // loop_exit
      _
    %4494 = vsyncpa [#allocation3], 1
    %s4495 = scalar_lea.sflag [#allocation3], 1
    %4496 = vsyncpa %s4495, 1
    %4497 = vsyncpa [#allocation6], 1
    %4498 = vsyncpa [#allocation9], 1
    %4499 = vsyncpa [#allocation12], 1
    %4500 = vsyncpa [#allocation15], 1
    %4501 = vsyncpa [#allocation18], 1
    %4502 = vsyncpa [#allocation21], 1
    %4503 = vsyncpa [#allocation4], 1
    %s4504 = scalar_lea.sflag [#allocation4], 1
    %4505 = vsyncpa %s4504, 1

</llo_original>
